<compile_context>
chip_gen: v7x
topology: tpu7x:2x2x1
jax: 0.10.0
libtpu: 0.0.40
codegen_flags: <defaults>
</compile_context>

<pallas_src>
import functools

import jax
import jax.numpy as jnp
from jax import lax
from jax.experimental import pallas as pl
from jax.experimental.pallas import tpu as pltpu


def _rup(n, m=128):
    return ((n + m - 1) // m) * m


# ----------------------------- Pallas kernels ------------------------------ #

def _backbone_kernel(W, cin, x_ref, pool_ref, cw_ref, cb_ref, mw_ref, mb_ref,
                     o_ref):
    """conv3x3(pad=1)+folded BN+ReLU -> AdaptiveAvgPool2d((1,T)) -> Linear+ReLU
    for the whole mini-batch in one invocation.

    * the 3 column taps of the row-tap halo are gathered in-register and
      contracted in a single K=9*cin MXU dot (bf16 x bf16 -> f32),
    * the pooling matrix also performs the (b, t) -> row = t*BP + b permute and
      the batch padding, so the output already has the (T*BP, GIN) layout the
      GRU kernel consumes (no XLA transpose between kernels),
    * feature lanes padded to FP / GIN = 128-multiples; padded columns stay 0.
    """
    FP = cw_ref.shape[-1]
    GIN = o_ref.shape[-1]
    BH = x_ref.shape[0]                                   # B*H
    xw = x_ref[...]                                       # (B*H, W+2, 3*cin) f32
    taps = [xw[:, dj:dj + W, :].reshape(BH * W, 3 * cin) for dj in range(3)]
    xt = jnp.concatenate(taps, axis=-1).astype(jnp.bfloat16)   # (B*H*W, 9*cin)
    y = jnp.dot(xt, cw_ref[...], preferred_element_type=jnp.float32) + cb_ref[...]
    y = jnp.maximum(y, 0.0).astype(jnp.bfloat16)               # (B*H*W, FP)
    pooled = jnp.dot(pool_ref[...], y,
                     preferred_element_type=jnp.float32)       # (T*BP, FP)
    m = jnp.dot(pooled.astype(jnp.bfloat16), mw_ref[...],
                preferred_element_type=jnp.float32) + mb_ref[...]
    m = jnp.maximum(m, 0.0)                                    # mapSeq Linear+ReLU
    o_ref[:, 0:FP] = m
    if GIN > FP:
        o_ref[:, FP:GIN] = jnp.zeros((o_ref.shape[0], GIN - FP), jnp.float32)


def _gru_ln_out_kernel(T, BP, L, HP, hidden, eps,
                       x_ref, wih_ref, bih_ref, whh_ref, bhh_ref,
                       g_ref, b_ref, ow_ref, ob_ref,
                       o_ref, seq_buf, xgf_ref, xgb_ref, hcat_ref):
    """Bidirectional multi-layer GRU stack + LayerNorm + Linear + LogSoftmax.

    * per-layer input projections: one full-sequence MXU matmul per direction,
      staged into VMEM scratch and sliced per step (bounded live ranges),
    * per-step fwd/bwd recurrent dots fused into one MXU push via a
      block-diagonal (2HP, 2*3HP) W_hh and a concatenated [h_fwd | h_bwd] carry,
    * batch rows padded to BP=8 -> every per-step slice / store is a whole
      (8,128) tile (unmasked),
    * padded hidden / gate columns stay exactly 0 through the recurrence, so
      the LayerNorm statistics over the real width are exact; padded vocab
      logits carry a -1e30 bias (f32) and drop out of the softmax normalizer.
    """
    H3 = 3 * HP
    GIN = 2 * HP

    for l in range(L):                                    # static: few layers
        src = x_ref if l == 0 else seq_buf
        x_all = src[...].astype(jnp.bfloat16)             # (T*BP, GIN)
        xgf_ref[...] = jnp.dot(x_all, wih_ref[l, 0],
                               preferred_element_type=jnp.float32) + bih_ref[l, 0]
        xgb_ref[...] = jnp.dot(x_all, wih_ref[l, 1],
                               preferred_element_type=jnp.float32) + bih_ref[l, 1]
        whh = whh_ref[l]                                  # (GIN, 2*H3) bf16
        bhh = bhh_ref[l]                                  # (1, 2*H3)  f32
        hcat_ref[...] = jnp.zeros_like(hcat_ref)

        def step(i, carry):
            rf = pl.multiple_of(i * BP, BP)               # forward row block
            rb = pl.multiple_of((T - 1 - i) * BP, BP)     # backward row block
            h = hcat_ref[...]                             # (BP, GIN) f32
            hg = jnp.dot(h.astype(jnp.bfloat16), whh,
                         preferred_element_type=jnp.float32) + bhh  # (BP, 2*H3)
            # ---- forward direction, time i ----
            xg = xgf_ref[pl.ds(rf, BP), :]
            r = jax.nn.sigmoid(xg[:, 0:HP] + hg[:, 0:HP])
            z = jax.nn.sigmoid(xg[:, HP:2 * HP] + hg[:, HP:2 * HP])
            n = jnp.tanh(xg[:, 2 * HP:H3] + r * hg[:, 2 * HP:H3])
            hf_new = (1.0 - z) * n + z * h[:, 0:HP]
            # ---- backward direction, time T-1-i ----
            xg = xgb_ref[pl.ds(rb, BP), :]
            r = jax.nn.sigmoid(xg[:, 0:HP] + hg[:, H3:H3 + HP])
            z = jax.nn.sigmoid(xg[:, HP:2 * HP] + hg[:, H3 + HP:H3 + 2 * HP])
            n = jnp.tanh(xg[:, 2 * HP:H3] + r * hg[:, H3 + 2 * HP:2 * H3])
            hb_new = (1.0 - z) * n + z * h[:, HP:GIN]
            # carry + sequence write-back (8-sublane / 128-lane aligned)
            hcat_ref[:, 0:HP] = hf_new
            hcat_ref[:, HP:GIN] = hb_new
            seq_buf[pl.ds(rf, BP), 0:HP] = hf_new
            seq_buf[pl.ds(rb, BP), HP:GIN] = hb_new
            return carry

        lax.fori_loop(0, T, step, 0, unroll=True)

    # ---- fused epilogue: LayerNorm(2*hidden) + Linear + LogSoftmax -------- #
    xf = seq_buf[...]                                     # (T*BP, GIN) f32
    col = lax.broadcasted_iota(jnp.int32, (1, GIN), 1)
    real = jnp.logical_or(col < hidden,
                          jnp.logical_and(col >= HP, col < HP + hidden))
    mask = real.astype(jnp.float32)
    inv_d = 1.0 / float(2 * hidden)
    mu = jnp.sum(xf, axis=-1, keepdims=True) * inv_d      # padded cols are 0
    xc = (xf - mu) * mask                                 # two-pass, masked
    var = jnp.sum(xc * xc, axis=-1, keepdims=True) * inv_d
    y = xc * lax.rsqrt(var + eps) * g_ref[...] + b_ref[...]
    logits = jnp.dot(y.astype(jnp.bfloat16), ow_ref[...],
                     preferred_element_type=jnp.float32) + ob_ref[...]
    mx = jnp.max(logits, axis=-1, keepdims=True)
    s = logits - mx
    lse = jnp.log(jnp.sum(jnp.exp(s), axis=-1, keepdims=True))
    o_ref[...] = s - lse


# ------------------------------- forward ----------------------------------- #

def crnn_forward(pp, x_nchw, *, hidden, vocab, t_seq):
    B, cin, H, W = x_nchw.shape
    BP = _rup(B, 8)
    FP = pp["map_w"].shape[0]
    L, _, GIN, H3 = pp["gru_wih"].shape
    HP = GIN // 2
    VP = pp["out_w"].shape[1]
    T = t_seq

    # layout glue: NHWC + 1px spatial halo, 3 row taps stacked on channels.
    # TODO(synk): for the real 512-channel backbone, slice the row taps inside
    # the kernel from the padded NHWC tensor instead of materializing 3x here.
    x = jnp.transpose(x_nchw, (0, 2, 3, 1))
    xp = jnp.pad(x, ((0, 0), (1, 1), (1, 1), (0, 0)))
    xr = jnp.concatenate([xp[:, di:di + H, :, :] for di in range(3)], axis=-1)
    xr = xr.reshape(B * H, W + 2, 3 * cin)

    # Kernel 1: conv+BN+ReLU + adaptive pool (+ batch->time-major permute) + mapSeq.
    seq = pl.pallas_call(
        functools.partial(_backbone_kernel, W, cin),
        out_shape=jax.ShapeDtypeStruct((T * BP, GIN), jnp.float32),
        grid=(1,),
        in_specs=[
            pl.BlockSpec((B * H, W + 2, 3 * cin), lambda i: (0, 0, 0)),
            pl.BlockSpec((T * BP, B * H * W), lambda i: (0, 0)),
            pl.BlockSpec((9 * cin, FP), lambda i: (0, 0)),
            pl.BlockSpec((1, FP), lambda i: (0, 0)),
            pl.BlockSpec((FP, FP), lambda i: (0, 0)),
            pl.BlockSpec((1, FP), lambda i: (0, 0)),
        ],
        out_specs=pl.BlockSpec((T * BP, GIN), lambda i: (0, 0)),
        compiler_params=pltpu.CompilerParams(dimension_semantics=("arbitrary",)),
    )(xr, pp["pool"], pp["conv_w"], pp["conv_b"], pp["map_w"], pp["map_b"])

    # Kernel 2: bidirectional GRU stack + LayerNorm + classifier + log-softmax.
    logp = pl.pallas_call(
        functools.partial(_gru_ln_out_kernel, T, BP, L, HP, hidden, 1e-5),
        out_shape=jax.ShapeDtypeStruct((T * BP, VP), jnp.float32),
        grid=(1,),
        in_specs=[
            pl.BlockSpec((T * BP, GIN), lambda i: (0, 0)),
            pl.BlockSpec((L, 2, GIN, H3), lambda i: (0, 0, 0, 0)),
            pl.BlockSpec((L, 2, 1, H3), lambda i: (0, 0, 0, 0)),
            pl.BlockSpec((L, GIN, 2 * H3), lambda i: (0, 0, 0)),
            pl.BlockSpec((L, 1, 2 * H3), lambda i: (0, 0, 0)),
            pl.BlockSpec((1, GIN), lambda i: (0, 0)),
            pl.BlockSpec((1, GIN), lambda i: (0, 0)),
            pl.BlockSpec((GIN, VP), lambda i: (0, 0)),
            pl.BlockSpec((1, VP), lambda i: (0, 0)),
        ],
        out_specs=pl.BlockSpec((T * BP, VP), lambda i: (0, 0)),
        scratch_shapes=[
            pltpu.VMEM((T * BP, GIN), jnp.float32),   # inter-layer sequence buf
            pltpu.VMEM((T * BP, H3), jnp.float32),    # staged fwd input gates
            pltpu.VMEM((T * BP, H3), jnp.float32),    # staged bwd input gates
            pltpu.VMEM((BP, GIN), jnp.float32),       # [h_fwd | h_bwd] carry
        ],
        compiler_params=pltpu.CompilerParams(dimension_semantics=("arbitrary",)),
    )(seq, pp["gru_wih"], pp["gru_bih"], pp["gru_whh"], pp["gru_bhh"],
      pp["ln_g"], pp["ln_b"], pp["out_w"], pp["out_b"])

    # rows are laid out t-major (row = t*BP + b); drop batch / vocab padding.
    return logp.reshape(T, BP, VP)[:, :B, :vocab]            # (T, B, vocab)


# --------------------- parameter init & padded packing --------------------- #

def init_params(key, cin, feat, hidden, n_layers, vocab):
    keys = iter(jax.random.split(key, 64))

    def nrm(shape, scale):
        return scale * jax.random.normal(next(keys), shape, dtype=jnp.float32)

    p = {}
    p["conv_w"] = nrm((feat, cin, 3, 3), 0.3)
    p["conv_b"] = nrm((feat,), 0.05)
    p["bn_gamma"] = 1.0 + nrm((feat,), 0.05)
    p["bn_beta"] = nrm((feat,), 0.05)
    p["bn_mean"] = jnp.zeros((feat,), jnp.float32)
    p["bn_var"] = jnp.ones((feat,), jnp.float32)
    p["map_w"] = nrm((feat, feat), feat ** -0.5)
    p["map_b"] = nrm((feat,), 0.05)
    gru = []
    in_sz = feat
    for _ in range(n_layers):
        layer = []
        for _ in range(2):                                    # fwd / reverse
            layer.append(dict(
                w_ih_t=nrm((in_sz, 3 * hidden), in_sz ** -0.5),
                b_ih=nrm((3 * hidden,), 0.05),
                w_hh_t=nrm((hidden, 3 * hidden), hidden ** -0.5),
                b_hh=nrm((3 * hidden,), 0.05),
            ))
        gru.append(layer)
        in_sz = 2 * hidden
    p["gru"] = gru
    p["ln_gamma"] = jnp.ones((2 * hidden,), jnp.float32)
    p["ln_beta"] = jnp.zeros((2 * hidden,), jnp.float32)
    p["out_w"] = nrm((2 * hidden, vocab), (2 * hidden) ** -0.5)
    p["out_b"] = nrm((vocab,), 0.05)
    return p


def pack_params(p, *, cin, feat, hidden, n_layers, vocab, B, H, W, t_seq):
    """One-time (load-time) repacking into padded, lane-dense kernel operands:
    BN folded into the conv, gates/hidden/feature/vocab padded to 128, batch
    padded to 8 sublanes, matmul operands stored in bf16."""
    FP, HP, VP = _rup(feat), _rup(hidden), _rup(vocab)
    GIN, H3 = 2 * HP, 3 * HP
    BP = _rup(B, 8)
    assert FP <= GIN

    # conv3x3 + folded BatchNorm (inference), packed as a single K=9*cin dot.
    # TODO(synk): the timm pretrained ResNet34 residual stack is not replicated;
    # it is stood in by one conv3x3+BN+ReLU stage with the same (B,C,1,T) interface.
    scale = p["bn_gamma"] / jnp.sqrt(p["bn_var"] + 1e-5)
    w_f = p["conv_w"] * scale[:, None, None, None]            # (feat, cin, 3, 3)
    b_f = (p["conv_b"] - p["bn_mean"]) * scale + p["bn_beta"]
    wk = jnp.transpose(w_f, (3, 2, 1, 0)).reshape(9 * cin, feat)  # K = dj*3cin+di*cin+c
    conv_w = jnp.zeros((9 * cin, FP), jnp.float32).at[:, :feat].set(wk)
    conv_b = jnp.zeros((1, FP), jnp.float32).at[0, :feat].set(b_f)

    # AdaptiveAvgPool2d((1, t_seq)) as an averaging matmul that also performs the
    # batch -> (row = t*BP + b) permute and pads the batch rows to BP.
    # TODO(synk): equal-size bins only (W % t_seq == 0); PyTorch uses uneven bins
    # when the pooled width does not divide W.
    assert W % t_seq == 0
    binw = W // t_seq
    hw = H * W
    wcol = jnp.arange(hw, dtype=jnp.int32) % W
    binmask = (wcol[None, :] // binw ==
               jnp.arange(t_seq, dtype=jnp.int32)[:, None]).astype(jnp.float32)
    binmask = binmask / float(H * binw)                       # (T, H*W)
    pool4 = jnp.zeros((t_seq, BP, B, hw), jnp.float32)
    for b in range(B):
        pool4 = pool4.at[:, b, b, :].set(binmask)
    pool = pool4.reshape(t_seq * BP, B * hw)

    # mapSeq Linear
    map_w = jnp.zeros((FP, FP), jnp.float32).at[:feat, :feat].set(p["map_w"])
    map_b = jnp.zeros((1, FP), jnp.float32).at[0, :feat].set(p["map_b"])

    # GRU stack, padded to 128-wide gate / hidden blocks; W_hh is packed as the
    # block-diagonal fused [fwd | bwd] recurrent weight (one dot per step).
    def gate_cols(w):                     # (..., 3*hidden) -> (..., 3*HP)
        out = jnp.zeros(w.shape[:-1] + (H3,), jnp.float32)
        for g in range(3):
            out = out.at[..., g * HP:g * HP + hidden].set(
                w[..., g * hidden:(g + 1) * hidden])
        return out

    wih_l, bih_l, whh_l, bhh_l = [], [], [], []
    for l, layer in enumerate(p["gru"]):
        wih_d, bih_d = [], []
        whh_cat = jnp.zeros((GIN, 2 * H3), jnp.float32)
        bhh_cat = jnp.zeros((1, 2 * H3), jnp.float32)
        for d in range(2):
            w = layer[d]
            wg = gate_cols(w["w_ih_t"])                       # (in_sz, 3HP)
            wih = jnp.zeros((GIN, H3), jnp.float32)
            if l == 0:
                wih = wih.at[:feat, :].set(wg)
            else:
                wih = wih.at[:hidden, :].set(wg[:hidden])
                wih = wih.at[HP:HP + hidden, :].set(wg[hidden:2 * hidden])
            wih_d.append(wih)
            bih_d.append(gate_cols(w["b_ih"][None, :]))       # (1, 3HP)
            whh_pad = jnp.zeros((HP, H3), jnp.float32).at[:hidden, :].set(
                gate_cols(w["w_hh_t"]))
            whh_cat = whh_cat.at[d * HP:(d + 1) * HP,
                                 d * H3:(d + 1) * H3].set(whh_pad)
            bhh_cat = bhh_cat.at[:, d * H3:(d + 1) * H3].set(
                gate_cols(w["b_hh"][None, :]))
        wih_l.append(jnp.stack(wih_d))
        bih_l.append(jnp.stack(bih_d))
        whh_l.append(whh_cat)
        bhh_l.append(bhh_cat)
    gru_wih = jnp.stack(wih_l).astype(jnp.bfloat16)           # (L, 2, GIN, 3HP)
    gru_bih = jnp.stack(bih_l)                                # (L, 2, 1, 3HP)
    gru_whh = jnp.stack(whh_l).astype(jnp.bfloat16)           # (L, GIN, 2*3HP)
    gru_bhh = jnp.stack(bhh_l)                                # (L, 1, 2*3HP)

    # LayerNorm(2*hidden) params scattered to the padded fwd / bwd column blocks
    def split_cols(v):
        out = jnp.zeros((1, GIN), jnp.float32)
        out = out.at[0, :hidden].set(v[:hidden])
        out = out.at[0, HP:HP + hidden].set(v[hidden:])
        return out

    ln_g = split_cols(p["ln_gamma"])
    ln_b = split_cols(p["ln_beta"])

    # classifier Linear(2*hidden, vocab); padded logit columns biased to -1e30
    ow = jnp.zeros((GIN, VP), jnp.float32)
    ow = ow.at[:hidden, :vocab].set(p["out_w"][:hidden])
    ow = ow.at[HP:HP + hidden, :vocab].set(p["out_w"][hidden:])
    ob = jnp.full((1, VP), -1e30, jnp.float32).at[0, :vocab].set(p["out_b"])

    return dict(conv_w=conv_w.astype(jnp.bfloat16), conv_b=conv_b,
                pool=pool.astype(jnp.bfloat16),
                map_w=map_w.astype(jnp.bfloat16), map_b=map_b,
                gru_wih=gru_wih, gru_bih=gru_bih, gru_whh=gru_whh, gru_bhh=gru_bhh,
                ln_g=ln_g, ln_b=ln_b,
                out_w=ow.astype(jnp.bfloat16), out_b=ob)


if __name__ == "__main__":
    key = jax.random.PRNGKey(0)
    kx, kp = jax.random.split(key)

    B, CIN, H, W = 2, 1, 16, 32          # NCHW input, in_chans=1 like the module
    FEAT, HIDDEN, NLAYERS, VOCAB, TSEQ = 64, 32, 2, 16, 8

    x = jax.random.normal(kx, (B, CIN, H, W), dtype=jnp.float32)
    params = init_params(kp, cin=CIN, feat=FEAT, hidden=HIDDEN,
                         n_layers=NLAYERS, vocab=VOCAB)
    packed = pack_params(params, cin=CIN, feat=FEAT, hidden=HIDDEN,
                         n_layers=NLAYERS, vocab=VOCAB, B=B, H=H, W=W,
                         t_seq=TSEQ)

    out = crnn_forward(packed, x, hidden=HIDDEN, vocab=VOCAB, t_seq=TSEQ)
    out = jax.block_until_ready(out)

    assert out.shape == (TSEQ, B, VOCAB), out.shape
    assert bool(jnp.all(jnp.isfinite(out)))
    # log-softmax rows must sum to ~1 in probability space
    assert bool(jnp.allclose(jnp.sum(jnp.exp(out), axis=-1), 1.0, atol=1e-4))
    print("KERNEL_OK")
</pallas_src>

<mosaic_0001>
module attributes {stable_mosaic.version = 11 : i64} {
  func.func @_backbone_kernel(%arg0: i32, %arg1: memref<32x34x3xf32, #tpu.memory_space<vmem>>, %arg2: memref<64x1024xbf16, #tpu.memory_space<vmem>>, %arg3: memref<9x128xbf16, #tpu.memory_space<vmem>>, %arg4: memref<1x128xf32, #tpu.memory_space<vmem>>, %arg5: memref<128x128xbf16, #tpu.memory_space<vmem>>, %arg6: memref<1x128xf32, #tpu.memory_space<vmem>>, %arg7: memref<64x256xf32, #tpu.memory_space<vmem>>) attributes {dimension_semantics = [#tpu.dimension_semantics<arbitrary>], iteration_bounds = array<i64: 1>, scalar_prefetch = 0 : i64, scratch_operands = 0 : i64, tpu.core_type = #tpu.core_type<tc>, window_params = [{pipeline_mode = #tpu.pipeline_mode<synchronous>, transform_indices = @transform_0, window_bounds = array<i64: 32, 34, 3>}, {pipeline_mode = #tpu.pipeline_mode<synchronous>, transform_indices = @transform_1, window_bounds = array<i64: 64, 1024>}, {pipeline_mode = #tpu.pipeline_mode<synchronous>, transform_indices = @transform_2, window_bounds = array<i64: 9, 128>}, {pipeline_mode = #tpu.pipeline_mode<synchronous>, transform_indices = @transform_3, window_bounds = array<i64: 1, 128>}, {pipeline_mode = #tpu.pipeline_mode<synchronous>, transform_indices = @transform_4, window_bounds = array<i64: 128, 128>}, {pipeline_mode = #tpu.pipeline_mode<synchronous>, transform_indices = @transform_5, window_bounds = array<i64: 1, 128>}, {pipeline_mode = #tpu.pipeline_mode<synchronous>, transform_indices = @transform_6, window_bounds = array<i64: 64, 256>}]} {
    %c0 = arith.constant 0 : index
    %c0_0 = arith.constant 0 : index
    %c0_1 = arith.constant 0 : index
    %0 = vector.load %arg1[%c0, %c0_0, %c0_1] : memref<32x34x3xf32, #tpu.memory_space<vmem>>, vector<32x34x3xf32>
    %1 = vector.extract_strided_slice %0 {offsets = [0, 0, 0], sizes = [32, 32, 3], strides = [1, 1, 1]} : vector<32x34x3xf32> to vector<32x32x3xf32>
    %2 = vector.shape_cast %1 : vector<32x32x3xf32> to vector<1024x3xf32>
    %3 = vector.extract_strided_slice %0 {offsets = [0, 1, 0], sizes = [32, 32, 3], strides = [1, 1, 1]} : vector<32x34x3xf32> to vector<32x32x3xf32>
    %4 = vector.shape_cast %3 : vector<32x32x3xf32> to vector<1024x3xf32>
    %5 = vector.extract_strided_slice %0 {offsets = [0, 2, 0], sizes = [32, 32, 3], strides = [1, 1, 1]} : vector<32x34x3xf32> to vector<32x32x3xf32>
    %6 = vector.shape_cast %5 : vector<32x32x3xf32> to vector<1024x3xf32>
    %7 = tpu.concatenate %2, %4, %6 in 1 : vector<1024x3xf32>, vector<1024x3xf32>, vector<1024x3xf32> -> vector<1024x9xf32>
    %8 = arith.truncf %7 : vector<1024x9xf32> to vector<1024x9xbf16>
    %c0_2 = arith.constant 0 : index
    %c0_3 = arith.constant 0 : index
    %9 = vector.load %arg3[%c0_2, %c0_3] : memref<9x128xbf16, #tpu.memory_space<vmem>>, vector<9x128xbf16>
    %cst = arith.constant dense<0.000000e+00> : vector<1024x128xf32>
    %10 = tpu.matmul %8, %9, %cst {dimension_numbers = #tpu.dot_dimension_numbers<[1], [0], [0], [1], [0, 0, 1, 1], [], []>} : vector<1024x9xbf16>, vector<9x128xbf16>, vector<1024x128xf32> -> vector<1024x128xf32>
    %c0_4 = arith.constant 0 : index
    %c0_5 = arith.constant 0 : index
    %11 = vector.load %arg4[%c0_4, %c0_5] : memref<1x128xf32, #tpu.memory_space<vmem>>, vector<1x128xf32>
    %12 = vector.broadcast %11 : vector<1x128xf32> to vector<1024x128xf32>
    %13 = arith.addf %10, %12 : vector<1024x128xf32>
    %cst_6 = arith.constant 0.000000e+00 : f32
    %14 = vector.broadcast %cst_6 : f32 to vector<1024x128xf32>
    %15 = arith.maximumf %13, %14 : vector<1024x128xf32>
    %16 = arith.truncf %15 : vector<1024x128xf32> to vector<1024x128xbf16>
    %c0_7 = arith.constant 0 : index
    %c0_8 = arith.constant 0 : index
    %17 = vector.load %arg2[%c0_7, %c0_8] : memref<64x1024xbf16, #tpu.memory_space<vmem>>, vector<64x1024xbf16>
    %cst_9 = arith.constant dense<0.000000e+00> : vector<64x128xf32>
    %18 = tpu.matmul %17, %16, %cst_9 {dimension_numbers = #tpu.dot_dimension_numbers<[1], [0], [0], [1], [0, 0, 1, 1], [], []>} : vector<64x1024xbf16>, vector<1024x128xbf16>, vector<64x128xf32> -> vector<64x128xf32>
    %19 = arith.truncf %18 : vector<64x128xf32> to vector<64x128xbf16>
    %c0_10 = arith.constant 0 : index
    %c0_11 = arith.constant 0 : index
    %20 = vector.load %arg5[%c0_10, %c0_11] : memref<128x128xbf16, #tpu.memory_space<vmem>>, vector<128x128xbf16>
    %cst_12 = arith.constant dense<0.000000e+00> : vector<64x128xf32>
    %21 = tpu.matmul %19, %20, %cst_12 {dimension_numbers = #tpu.dot_dimension_numbers<[1], [0], [0], [1], [0, 0, 1, 1], [], []>} : vector<64x128xbf16>, vector<128x128xbf16>, vector<64x128xf32> -> vector<64x128xf32>
    %c0_13 = arith.constant 0 : index
    %c0_14 = arith.constant 0 : index
    %22 = vector.load %arg6[%c0_13, %c0_14] : memref<1x128xf32, #tpu.memory_space<vmem>>, vector<1x128xf32>
    %23 = vector.broadcast %22 : vector<1x128xf32> to vector<64x128xf32>
    %24 = arith.addf %21, %23 : vector<64x128xf32>
    %cst_15 = arith.constant 0.000000e+00 : f32
    %25 = vector.broadcast %cst_15 : f32 to vector<64x128xf32>
    %26 = arith.maximumf %24, %25 : vector<64x128xf32>
    %c0_16 = arith.constant 0 : index
    %c0_17 = arith.constant 0 : index
    %27 = vector.load %arg7[%c0_16, %c0_17] : memref<64x256xf32, #tpu.memory_space<vmem>>, vector<64x128xf32>
    tpu.vector_store %arg7[%c0_16, %c0_17], %26 {strides = array<i32>} : memref<64x256xf32, #tpu.memory_space<vmem>>, vector<64x128xf32>,
    %cst_18 = arith.constant 0.000000e+00 : f32
    %28 = vector.broadcast %cst_18 : f32 to vector<64x128xf32>
    %c0_19 = arith.constant 0 : index
    %c128 = arith.constant 128 : index
    %29 = vector.load %arg7[%c0_19, %c128] : memref<64x256xf32, #tpu.memory_space<vmem>>, vector<64x128xf32>
    tpu.vector_store %arg7[%c0_19, %c128], %28 {strides = array<i32>} : memref<64x256xf32, #tpu.memory_space<vmem>>, vector<64x128xf32>,
    return
  }
  func.func @transform_0(%arg0: i32) -> (i32, i32, i32) {
    %c0_i32 = arith.constant 0 : i32
    %c0_i32_0 = arith.constant 0 : i32
    %c0_i32_1 = arith.constant 0 : i32
    %c0_i32_2 = arith.constant 0 : i32
    return %c0_i32, %c0_i32_0, %c0_i32_1 : i32, i32, i32
  }
  func.func @transform_1(%arg0: i32) -> (i32, i32) {
    %c0_i32 = arith.constant 0 : i32
    %c0_i32_0 = arith.constant 0 : i32
    %c0_i32_1 = arith.constant 0 : i32
    return %c0_i32, %c0_i32_0 : i32, i32
  }
  func.func @transform_2(%arg0: i32) -> (i32, i32) {
    %c0_i32 = arith.constant 0 : i32
    %c0_i32_0 = arith.constant 0 : i32
    %c0_i32_1 = arith.constant 0 : i32
    return %c0_i32, %c0_i32_0 : i32, i32
  }
  func.func @transform_3(%arg0: i32) -> (i32, i32) {
    %c0_i32 = arith.constant 0 : i32
    %c0_i32_0 = arith.constant 0 : i32
    %c0_i32_1 = arith.constant 0 : i32
    return %c0_i32, %c0_i32_0 : i32, i32
  }
  func.func @transform_4(%arg0: i32) -> (i32, i32) {
    %c0_i32 = arith.constant 0 : i32
    %c0_i32_0 = arith.constant 0 : i32
    %c0_i32_1 = arith.constant 0 : i32
    return %c0_i32, %c0_i32_0 : i32, i32
  }
  func.func @transform_5(%arg0: i32) -> (i32, i32) {
    %c0_i32 = arith.constant 0 : i32
    %c0_i32_0 = arith.constant 0 : i32
    %c0_i32_1 = arith.constant 0 : i32
    return %c0_i32, %c0_i32_0 : i32, i32
  }
  func.func @transform_6(%arg0: i32) -> (i32, i32) {
    %c0_i32 = arith.constant 0 : i32
    %c0_i32_0 = arith.constant 0 : i32
    %c0_i32_1 = arith.constant 0 : i32
    return %c0_i32, %c0_i32_0 : i32, i32
  }
}

</mosaic_0001>

<llo_original>
// kernel: tpu_custom_call.1
$region0: #{tpu_custom_call.1}
  #allocation0 [shape = 'u32[]', space=smem, size = 0x4, offset = 0x4, fixed_abs, tag = 'smem constant byte address 0x4 - core index']
  #allocation1 [shape = 'u32[144,128]{1,0:T(1,128)}', space=vmem, size = 0x12000, scoped, tag = 'internal scratch']
  %s0 = inlined_call_operand.vmem [shape: f32[32,34,3], index: 0, kind: input, shape index: {}]
  %s1 = inlined_call_operand.vmem [shape: bf16[64,1024], index: 1, kind: input, shape index: {}]
  %s2 = inlined_call_operand.vmem [shape: bf16[9,128], index: 2, kind: input, shape index: {}]
  %s3 = inlined_call_operand.vmem [shape: f32[1,128], index: 3, kind: input, shape index: {}]
  %s4 = inlined_call_operand.vmem [shape: bf16[128,128], index: 4, kind: input, shape index: {}]
  %s5 = inlined_call_operand.vmem [shape: f32[1,128], index: 5, kind: input, shape index: {}]
  %s6 = inlined_call_operand.hbm [shape: f32[64,256], index: 6, kind: output, shape index: {}]
  %s7 = sld [smem:[#allocation0]]
  $region34: #{tpu_custom_call.1} parent=0
    _
  %s9 = ssub.s32 1, %s7
  %s10 = scalar_select 0, %s9, %s7
  $region1: #{tpu_custom_call.1} parent=0
    #allocation2 [shape = 'u8[65536]{0}', space=vmem, size = 0x10000, scoped, tag = 'output window, operand 0, single buffered']
    #allocation3 [shape = 's32[1]{0}', space=sflag, size = 0x4, scoped, tag = 'scoped memory for tpu_custom_call.1']
    %11 = vsyncpa [#allocation3], 0
    // Predicated region
    $region2: #{tpu_custom_call.1} parent=1 // pred_check
      _
    $region3: #{tpu_custom_call.1} parent=1 // pred_check_branch
      %13 = sbr.rel (0) target = $region5
    $region4: #{tpu_custom_call.1} parent=1 // pred_region
      _
    $region5: #{tpu_custom_call.1} parent=1 // pred_fallthru
      _
    // Predicated region
    $region6: #{tpu_custom_call.1} parent=1 // pred_check
      _
    $region7: #{tpu_custom_call.1} parent=1 // pred_check_branch
      %15 = sbr.rel (0) target = $region9
    $region8: #{tpu_custom_call.1} parent=1 // pred_region
      _
    $region9: #{tpu_custom_call.1} parent=1 // pred_fallthru
      _
    // Predicated region
    $region10: #{tpu_custom_call.1} parent=1 // pred_check
      _
    $region11: #{tpu_custom_call.1} parent=1 // pred_check_branch
      %17 = sbr.rel (0) target = $region13
    $region12: #{tpu_custom_call.1} parent=1 // pred_region
      _
    $region13: #{tpu_custom_call.1} parent=1 // pred_fallthru
      _
    // Predicated region
    $region14: #{tpu_custom_call.1} parent=1 // pred_check
      _
    $region15: #{tpu_custom_call.1} parent=1 // pred_check_branch
      %19 = sbr.rel (0) target = $region17
    $region16: #{tpu_custom_call.1} parent=1 // pred_region
      _
    $region17: #{tpu_custom_call.1} parent=1 // pred_fallthru
      _
    // Predicated region
    $region18: #{tpu_custom_call.1} parent=1 // pred_check
      _
    $region19: #{tpu_custom_call.1} parent=1 // pred_check_branch
      %21 = sbr.rel (0) target = $region21
    $region20: #{tpu_custom_call.1} parent=1 // pred_region
      _
    $region21: #{tpu_custom_call.1} parent=1 // pred_fallthru
      _
    // Predicated region
    $region22: #{tpu_custom_call.1} parent=1 // pred_check
      _
    $region23: #{tpu_custom_call.1} parent=1 // pred_check_branch
      %23 = sbr.rel (0) target = $region25
    $region24: #{tpu_custom_call.1} parent=1 // pred_region
      _
    $region25: #{tpu_custom_call.1} parent=1 // pred_fallthru
      _
    %v25 = vld [vmem:[%s0] sm:$0xff]
    %v26 = vld [vmem:[%s0 + $0x8] sm:$0xff]
    %v27 = vld [vmem:[%s0 + $0x10] sm:$0xff]
    %v28 = vld [vmem:[%s0 + $0x18] sm:$0xff]
    %v29 = vld [vmem:[%s0 + $0x20] sm:$0x3]
    %v30 = vld [vmem:[%s0 + $0x28] sm:$0xff]
    %v31 = vld [vmem:[%s0 + $0x30] sm:$0xff]
    %v32 = vld [vmem:[%s0 + $0x38] sm:$0xff]
    %v33 = vld [vmem:[%s0 + $0x40] sm:$0xff]
    %v34 = vld [vmem:[%s0 + $0x48] sm:$0x3]
    %v35 = vld [vmem:[%s0 + $0x50] sm:$0xff]
    %v36 = vld [vmem:[%s0 + $0x58] sm:$0xff]
    %v37 = vld [vmem:[%s0 + $0x60] sm:$0xff]
    %v38 = vld [vmem:[%s0 + $0x68] sm:$0xff]
    %v39 = vld [vmem:[%s0 + $0x70] sm:$0x3]
    %v40 = vld [vmem:[%s0 + $0x78] sm:$0xff]
    %v41 = vld [vmem:[%s0 + $0x80] sm:$0xff]
    %v42 = vld [vmem:[%s0 + $0x88] sm:$0xff]
    %v43 = vld [vmem:[%s0 + $0x90] sm:$0xff]
    %v44 = vld [vmem:[%s0 + $0x98] sm:$0x3]
    %v45 = vld [vmem:[%s0 + $0xa0] sm:$0xff]
    %v46 = vld [vmem:[%s0 + $0xa8] sm:$0xff]
    %v47 = vld [vmem:[%s0 + $0xb0] sm:$0xff]
    %v48 = vld [vmem:[%s0 + $0xb8] sm:$0xff]
    %v49 = vld [vmem:[%s0 + $0xc0] sm:$0x3]
    %v50 = vld [vmem:[%s0 + $0xc8] sm:$0xff]
    %v51 = vld [vmem:[%s0 + $0xd0] sm:$0xff]
    %v52 = vld [vmem:[%s0 + $0xd8] sm:$0xff]
    %v53 = vld [vmem:[%s0 + $0xe0] sm:$0xff]
    %v54 = vld [vmem:[%s0 + $0xe8] sm:$0x3]
    %v55 = vld [vmem:[%s0 + $0xf0] sm:$0xff]
    %v56 = vld [vmem:[%s0 + $0xf8] sm:$0xff]
    %v57 = vld [vmem:[%s0 + $0x100] sm:$0xff]
    %v58 = vld [vmem:[%s0 + $0x108] sm:$0xff]
    %v59 = vld [vmem:[%s0 + $0x110] sm:$0x3]
    %v60 = vld [vmem:[%s0 + $0x118] sm:$0xff]
    %v61 = vld [vmem:[%s0 + $0x120] sm:$0xff]
    %v62 = vld [vmem:[%s0 + $0x128] sm:$0xff]
    %v63 = vld [vmem:[%s0 + $0x130] sm:$0xff]
    %v64 = vld [vmem:[%s0 + $0x138] sm:$0x3]
    %v65 = vld [vmem:[%s0 + $0x140] sm:$0xff]
    %v66 = vld [vmem:[%s0 + $0x148] sm:$0xff]
    %v67 = vld [vmem:[%s0 + $0x150] sm:$0xff]
    %v68 = vld [vmem:[%s0 + $0x158] sm:$0xff]
    %v69 = vld [vmem:[%s0 + $0x160] sm:$0x3]
    %v70 = vld [vmem:[%s0 + $0x168] sm:$0xff]
    %v71 = vld [vmem:[%s0 + $0x170] sm:$0xff]
    %v72 = vld [vmem:[%s0 + $0x178] sm:$0xff]
    %v73 = vld [vmem:[%s0 + $0x180] sm:$0xff]
    %v74 = vld [vmem:[%s0 + $0x188] sm:$0x3]
    %v75 = vld [vmem:[%s0 + $0x190] sm:$0xff]
    %v76 = vld [vmem:[%s0 + $0x198] sm:$0xff]
    %v77 = vld [vmem:[%s0 + $0x1a0] sm:$0xff]
    %v78 = vld [vmem:[%s0 + $0x1a8] sm:$0xff]
    %v79 = vld [vmem:[%s0 + $0x1b0] sm:$0x3]
    %v80 = vld [vmem:[%s0 + $0x1b8] sm:$0xff]
    %v81 = vld [vmem:[%s0 + $0x1c0] sm:$0xff]
    %v82 = vld [vmem:[%s0 + $0x1c8] sm:$0xff]
    %v83 = vld [vmem:[%s0 + $0x1d0] sm:$0xff]
    %v84 = vld [vmem:[%s0 + $0x1d8] sm:$0x3]
    %v85 = vld [vmem:[%s0 + $0x1e0] sm:$0xff]
    %v86 = vld [vmem:[%s0 + $0x1e8] sm:$0xff]
    %v87 = vld [vmem:[%s0 + $0x1f0] sm:$0xff]
    %v88 = vld [vmem:[%s0 + $0x1f8] sm:$0xff]
    %v89 = vld [vmem:[%s0 + $0x200] sm:$0x3]
    %v90 = vld [vmem:[%s0 + $0x208] sm:$0xff]
    %v91 = vld [vmem:[%s0 + $0x210] sm:$0xff]
    %v92 = vld [vmem:[%s0 + $0x218] sm:$0xff]
    %v93 = vld [vmem:[%s0 + $0x220] sm:$0xff]
    %v94 = vld [vmem:[%s0 + $0x228] sm:$0x3]
    %v95 = vld [vmem:[%s0 + $0x230] sm:$0xff]
    %v96 = vld [vmem:[%s0 + $0x238] sm:$0xff]
    %v97 = vld [vmem:[%s0 + $0x240] sm:$0xff]
    %v98 = vld [vmem:[%s0 + $0x248] sm:$0xff]
    %v99 = vld [vmem:[%s0 + $0x250] sm:$0x3]
    %v100 = vld [vmem:[%s0 + $0x258] sm:$0xff]
    %v101 = vld [vmem:[%s0 + $0x260] sm:$0xff]
    %v102 = vld [vmem:[%s0 + $0x268] sm:$0xff]
    %v103 = vld [vmem:[%s0 + $0x270] sm:$0xff]
    %v104 = vld [vmem:[%s0 + $0x278] sm:$0x3]
    %v105 = vld [vmem:[%s0 + $0x280] sm:$0xff]
    %v106 = vld [vmem:[%s0 + $0x288] sm:$0xff]
    %v107 = vld [vmem:[%s0 + $0x290] sm:$0xff]
    %v108 = vld [vmem:[%s0 + $0x298] sm:$0xff]
    %v109 = vld [vmem:[%s0 + $0x2a0] sm:$0x3]
    %v110 = vld [vmem:[%s0 + $0x2a8] sm:$0xff]
    %v111 = vld [vmem:[%s0 + $0x2b0] sm:$0xff]
    %v112 = vld [vmem:[%s0 + $0x2b8] sm:$0xff]
    %v113 = vld [vmem:[%s0 + $0x2c0] sm:$0xff]
    %v114 = vld [vmem:[%s0 + $0x2c8] sm:$0x3]
    %v115 = vld [vmem:[%s0 + $0x2d0] sm:$0xff]
    %v116 = vld [vmem:[%s0 + $0x2d8] sm:$0xff]
    %v117 = vld [vmem:[%s0 + $0x2e0] sm:$0xff]
    %v118 = vld [vmem:[%s0 + $0x2e8] sm:$0xff]
    %v119 = vld [vmem:[%s0 + $0x2f0] sm:$0x3]
    %v120 = vld [vmem:[%s0 + $0x2f8] sm:$0xff]
    %v121 = vld [vmem:[%s0 + $0x300] sm:$0xff]
    %v122 = vld [vmem:[%s0 + $0x308] sm:$0xff]
    %v123 = vld [vmem:[%s0 + $0x310] sm:$0xff]
    %v124 = vld [vmem:[%s0 + $0x318] sm:$0x3]
    %v125 = vld [vmem:[%s0 + $0x320] sm:$0xff]
    %v126 = vld [vmem:[%s0 + $0x328] sm:$0xff]
    %v127 = vld [vmem:[%s0 + $0x330] sm:$0xff]
    %v128 = vld [vmem:[%s0 + $0x338] sm:$0xff]
    %v129 = vld [vmem:[%s0 + $0x340] sm:$0x3]
    %v130 = vld [vmem:[%s0 + $0x348] sm:$0xff]
    %v131 = vld [vmem:[%s0 + $0x350] sm:$0xff]
    %v132 = vld [vmem:[%s0 + $0x358] sm:$0xff]
    %v133 = vld [vmem:[%s0 + $0x360] sm:$0xff]
    %v134 = vld [vmem:[%s0 + $0x368] sm:$0x3]
    %v135 = vld [vmem:[%s0 + $0x370] sm:$0xff]
    %v136 = vld [vmem:[%s0 + $0x378] sm:$0xff]
    %v137 = vld [vmem:[%s0 + $0x380] sm:$0xff]
    %v138 = vld [vmem:[%s0 + $0x388] sm:$0xff]
    %v139 = vld [vmem:[%s0 + $0x390] sm:$0x3]
    %v140 = vld [vmem:[%s0 + $0x398] sm:$0xff]
    %v141 = vld [vmem:[%s0 + $0x3a0] sm:$0xff]
    %v142 = vld [vmem:[%s0 + $0x3a8] sm:$0xff]
    %v143 = vld [vmem:[%s0 + $0x3b0] sm:$0xff]
    %v144 = vld [vmem:[%s0 + $0x3b8] sm:$0x3]
    %v145 = vld [vmem:[%s0 + $0x3c0] sm:$0xff]
    %v146 = vld [vmem:[%s0 + $0x3c8] sm:$0xff]
    %v147 = vld [vmem:[%s0 + $0x3d0] sm:$0xff]
    %v148 = vld [vmem:[%s0 + $0x3d8] sm:$0xff]
    %v149 = vld [vmem:[%s0 + $0x3e0] sm:$0x3]
    %v150 = vld [vmem:[%s0 + $0x3e8] sm:$0xff]
    %v151 = vld [vmem:[%s0 + $0x3f0] sm:$0xff]
    %v152 = vld [vmem:[%s0 + $0x3f8] sm:$0xff]
    %v153 = vld [vmem:[%s0 + $0x400] sm:$0xff]
    %v154 = vld [vmem:[%s0 + $0x408] sm:$0x3]
    %v155 = vld [vmem:[%s0 + $0x410] sm:$0xff]
    %v156 = vld [vmem:[%s0 + $0x418] sm:$0xff]
    %v157 = vld [vmem:[%s0 + $0x420] sm:$0xff]
    %v158 = vld [vmem:[%s0 + $0x428] sm:$0xff]
    %v159 = vld [vmem:[%s0 + $0x430] sm:$0x3]
    %v160 = vld [vmem:[%s0 + $0x438] sm:$0xff]
    %v161 = vld [vmem:[%s0 + $0x440] sm:$0xff]
    %v162 = vld [vmem:[%s0 + $0x448] sm:$0xff]
    %v163 = vld [vmem:[%s0 + $0x450] sm:$0xff]
    %v164 = vld [vmem:[%s0 + $0x458] sm:$0x3]
    %v165 = vld [vmem:[%s0 + $0x460] sm:$0xff]
    %v166 = vld [vmem:[%s0 + $0x468] sm:$0xff]
    %v167 = vld [vmem:[%s0 + $0x470] sm:$0xff]
    %v168 = vld [vmem:[%s0 + $0x478] sm:$0xff]
    %v169 = vld [vmem:[%s0 + $0x480] sm:$0x3]
    %v170 = vld [vmem:[%s0 + $0x488] sm:$0xff]
    %v171 = vld [vmem:[%s0 + $0x490] sm:$0xff]
    %v172 = vld [vmem:[%s0 + $0x498] sm:$0xff]
    %v173 = vld [vmem:[%s0 + $0x4a0] sm:$0xff]
    %v174 = vld [vmem:[%s0 + $0x4a8] sm:$0x3]
    %v175 = vld [vmem:[%s0 + $0x4b0] sm:$0xff]
    %v176 = vld [vmem:[%s0 + $0x4b8] sm:$0xff]
    %v177 = vld [vmem:[%s0 + $0x4c0] sm:$0xff]
    %v178 = vld [vmem:[%s0 + $0x4c8] sm:$0xff]
    %v179 = vld [vmem:[%s0 + $0x4d0] sm:$0x3]
    %v180 = vld [vmem:[%s0 + $0x4d8] sm:$0xff]
    %v181 = vld [vmem:[%s0 + $0x4e0] sm:$0xff]
    %v182 = vld [vmem:[%s0 + $0x4e8] sm:$0xff]
    %v183 = vld [vmem:[%s0 + $0x4f0] sm:$0xff]
    %v184 = vld [vmem:[%s0 + $0x4f8] sm:$0x3]
    %vm345 = vcmask 1046528
    %v346 = vrot.slane %v25, 1
    %v347 = vrot.slane %v26, 1
    %v348 = vsel %vm345, %v346, %v347
    %v349 = vrot.slane %v27, 1
    %v350 = vsel %vm345, %v347, %v349
    %v351 = vrot.slane %v28, 1
    %v352 = vsel %vm345, %v349, %v351
    %v353 = vrot.slane %v29, 1
    %v354 = vsel %vm345, %v351, %v353
    %v355 = vrot.slane %v30, 1
    %v356 = vrot.slane %v31, 1
    %v357 = vsel %vm345, %v355, %v356
    %v358 = vrot.slane %v32, 1
    %v359 = vsel %vm345, %v356, %v358
    %v360 = vrot.slane %v33, 1
    %v361 = vsel %vm345, %v358, %v360
    %v362 = vrot.slane %v34, 1
    %v363 = vsel %vm345, %v360, %v362
    %v364 = vrot.slane %v35, 1
    %v365 = vrot.slane %v36, 1
    %v366 = vsel %vm345, %v364, %v365
    %v367 = vrot.slane %v37, 1
    %v368 = vsel %vm345, %v365, %v367
    %v369 = vrot.slane %v38, 1
    %v370 = vsel %vm345, %v367, %v369
    %v371 = vrot.slane %v39, 1
    %v372 = vsel %vm345, %v369, %v371
    %v373 = vrot.slane %v40, 1
    %v374 = vrot.slane %v41, 1
    %v375 = vsel %vm345, %v373, %v374
    %v376 = vrot.slane %v42, 1
    %v377 = vsel %vm345, %v374, %v376
    %v378 = vrot.slane %v43, 1
    %v379 = vsel %vm345, %v376, %v378
    %v380 = vrot.slane %v44, 1
    %v381 = vsel %vm345, %v378, %v380
    %v382 = vrot.slane %v45, 1
    %v383 = vrot.slane %v46, 1
    %v384 = vsel %vm345, %v382, %v383
    %v385 = vrot.slane %v47, 1
    %v386 = vsel %vm345, %v383, %v385
    %v387 = vrot.slane %v48, 1
    %v388 = vsel %vm345, %v385, %v387
    %v389 = vrot.slane %v49, 1
    %v390 = vsel %vm345, %v387, %v389
    %v391 = vrot.slane %v50, 1
    %v392 = vrot.slane %v51, 1
    %v393 = vsel %vm345, %v391, %v392
    %v394 = vrot.slane %v52, 1
    %v395 = vsel %vm345, %v392, %v394
    %v396 = vrot.slane %v53, 1
    %v397 = vsel %vm345, %v394, %v396
    %v398 = vrot.slane %v54, 1
    %v399 = vsel %vm345, %v396, %v398
    %v400 = vrot.slane %v55, 1
    %v401 = vrot.slane %v56, 1
    %v402 = vsel %vm345, %v400, %v401
    %v403 = vrot.slane %v57, 1
    %v404 = vsel %vm345, %v401, %v403
    %v405 = vrot.slane %v58, 1
    %v406 = vsel %vm345, %v403, %v405
    %v407 = vrot.slane %v59, 1
    %v408 = vsel %vm345, %v405, %v407
    %v409 = vrot.slane %v60, 1
    %v410 = vrot.slane %v61, 1
    %v411 = vsel %vm345, %v409, %v410
    %v412 = vrot.slane %v62, 1
    %v413 = vsel %vm345, %v410, %v412
    %v414 = vrot.slane %v63, 1
    %v415 = vsel %vm345, %v412, %v414
    %v416 = vrot.slane %v64, 1
    %v417 = vsel %vm345, %v414, %v416
    %v418 = vrot.slane %v65, 1
    %v419 = vrot.slane %v66, 1
    %v420 = vsel %vm345, %v418, %v419
    %v421 = vrot.slane %v67, 1
    %v422 = vsel %vm345, %v419, %v421
    %v423 = vrot.slane %v68, 1
    %v424 = vsel %vm345, %v421, %v423
    %v425 = vrot.slane %v69, 1
    %v426 = vsel %vm345, %v423, %v425
    %v427 = vrot.slane %v70, 1
    %v428 = vrot.slane %v71, 1
    %v429 = vsel %vm345, %v427, %v428
    %v430 = vrot.slane %v72, 1
    %v431 = vsel %vm345, %v428, %v430
    %v432 = vrot.slane %v73, 1
    %v433 = vsel %vm345, %v430, %v432
    %v434 = vrot.slane %v74, 1
    %v435 = vsel %vm345, %v432, %v434
    %v436 = vrot.slane %v75, 1
    %v437 = vrot.slane %v76, 1
    %v438 = vsel %vm345, %v436, %v437
    %v439 = vrot.slane %v77, 1
    %v440 = vsel %vm345, %v437, %v439
    %v441 = vrot.slane %v78, 1
    %v442 = vsel %vm345, %v439, %v441
    %v443 = vrot.slane %v79, 1
    %v444 = vsel %vm345, %v441, %v443
    %v445 = vrot.slane %v80, 1
    %v446 = vrot.slane %v81, 1
    %v447 = vsel %vm345, %v445, %v446
    %v448 = vrot.slane %v82, 1
    %v449 = vsel %vm345, %v446, %v448
    %v450 = vrot.slane %v83, 1
    %v451 = vsel %vm345, %v448, %v450
    %v452 = vrot.slane %v84, 1
    %v453 = vsel %vm345, %v450, %v452
    %v454 = vrot.slane %v85, 1
    %v455 = vrot.slane %v86, 1
    %v456 = vsel %vm345, %v454, %v455
    %v457 = vrot.slane %v87, 1
    %v458 = vsel %vm345, %v455, %v457
    %v459 = vrot.slane %v88, 1
    %v460 = vsel %vm345, %v457, %v459
    %v461 = vrot.slane %v89, 1
    %v462 = vsel %vm345, %v459, %v461
    %v463 = vrot.slane %v90, 1
    %v464 = vrot.slane %v91, 1
    %v465 = vsel %vm345, %v463, %v464
    %v466 = vrot.slane %v92, 1
    %v467 = vsel %vm345, %v464, %v466
    %v468 = vrot.slane %v93, 1
    %v469 = vsel %vm345, %v466, %v468
    %v470 = vrot.slane %v94, 1
    %v471 = vsel %vm345, %v468, %v470
    %v472 = vrot.slane %v95, 1
    %v473 = vrot.slane %v96, 1
    %v474 = vsel %vm345, %v472, %v473
    %v475 = vrot.slane %v97, 1
    %v476 = vsel %vm345, %v473, %v475
    %v477 = vrot.slane %v98, 1
    %v478 = vsel %vm345, %v475, %v477
    %v479 = vrot.slane %v99, 1
    %v480 = vsel %vm345, %v477, %v479
    %v481 = vrot.slane %v100, 1
    %v482 = vrot.slane %v101, 1
    %v483 = vsel %vm345, %v481, %v482
    %v484 = vrot.slane %v102, 1
    %v485 = vsel %vm345, %v482, %v484
    %v486 = vrot.slane %v103, 1
    %v487 = vsel %vm345, %v484, %v486
    %v488 = vrot.slane %v104, 1
    %v489 = vsel %vm345, %v486, %v488
    %v490 = vrot.slane %v105, 1
    %v491 = vrot.slane %v106, 1
    %v492 = vsel %vm345, %v490, %v491
    %v493 = vrot.slane %v107, 1
    %v494 = vsel %vm345, %v491, %v493
    %v495 = vrot.slane %v108, 1
    %v496 = vsel %vm345, %v493, %v495
    %v497 = vrot.slane %v109, 1
    %v498 = vsel %vm345, %v495, %v497
    %v499 = vrot.slane %v110, 1
    %v500 = vrot.slane %v111, 1
    %v501 = vsel %vm345, %v499, %v500
    %v502 = vrot.slane %v112, 1
    %v503 = vsel %vm345, %v500, %v502
    %v504 = vrot.slane %v113, 1
    %v505 = vsel %vm345, %v502, %v504
    %v506 = vrot.slane %v114, 1
    %v507 = vsel %vm345, %v504, %v506
    %v508 = vrot.slane %v115, 1
    %v509 = vrot.slane %v116, 1
    %v510 = vsel %vm345, %v508, %v509
    %v511 = vrot.slane %v117, 1
    %v512 = vsel %vm345, %v509, %v511
    %v513 = vrot.slane %v118, 1
    %v514 = vsel %vm345, %v511, %v513
    %v515 = vrot.slane %v119, 1
    %v516 = vsel %vm345, %v513, %v515
    %v517 = vrot.slane %v120, 1
    %v518 = vrot.slane %v121, 1
    %v519 = vsel %vm345, %v517, %v518
    %v520 = vrot.slane %v122, 1
    %v521 = vsel %vm345, %v518, %v520
    %v522 = vrot.slane %v123, 1
    %v523 = vsel %vm345, %v520, %v522
    %v524 = vrot.slane %v124, 1
    %v525 = vsel %vm345, %v522, %v524
    %v526 = vrot.slane %v125, 1
    %v527 = vrot.slane %v126, 1
    %v528 = vsel %vm345, %v526, %v527
    %v529 = vrot.slane %v127, 1
    %v530 = vsel %vm345, %v527, %v529
    %v531 = vrot.slane %v128, 1
    %v532 = vsel %vm345, %v529, %v531
    %v533 = vrot.slane %v129, 1
    %v534 = vsel %vm345, %v531, %v533
    %v535 = vrot.slane %v130, 1
    %v536 = vrot.slane %v131, 1
    %v537 = vsel %vm345, %v535, %v536
    %v538 = vrot.slane %v132, 1
    %v539 = vsel %vm345, %v536, %v538
    %v540 = vrot.slane %v133, 1
    %v541 = vsel %vm345, %v538, %v540
    %v542 = vrot.slane %v134, 1
    %v543 = vsel %vm345, %v540, %v542
    %v544 = vrot.slane %v135, 1
    %v545 = vrot.slane %v136, 1
    %v546 = vsel %vm345, %v544, %v545
    %v547 = vrot.slane %v137, 1
    %v548 = vsel %vm345, %v545, %v547
    %v549 = vrot.slane %v138, 1
    %v550 = vsel %vm345, %v547, %v549
    %v551 = vrot.slane %v139, 1
    %v552 = vsel %vm345, %v549, %v551
    %v553 = vrot.slane %v140, 1
    %v554 = vrot.slane %v141, 1
    %v555 = vsel %vm345, %v553, %v554
    %v556 = vrot.slane %v142, 1
    %v557 = vsel %vm345, %v554, %v556
    %v558 = vrot.slane %v143, 1
    %v559 = vsel %vm345, %v556, %v558
    %v560 = vrot.slane %v144, 1
    %v561 = vsel %vm345, %v558, %v560
    %v562 = vrot.slane %v145, 1
    %v563 = vrot.slane %v146, 1
    %v564 = vsel %vm345, %v562, %v563
    %v565 = vrot.slane %v147, 1
    %v566 = vsel %vm345, %v563, %v565
    %v567 = vrot.slane %v148, 1
    %v568 = vsel %vm345, %v565, %v567
    %v569 = vrot.slane %v149, 1
    %v570 = vsel %vm345, %v567, %v569
    %v571 = vrot.slane %v150, 1
    %v572 = vrot.slane %v151, 1
    %v573 = vsel %vm345, %v571, %v572
    %v574 = vrot.slane %v152, 1
    %v575 = vsel %vm345, %v572, %v574
    %v576 = vrot.slane %v153, 1
    %v577 = vsel %vm345, %v574, %v576
    %v578 = vrot.slane %v154, 1
    %v579 = vsel %vm345, %v576, %v578
    %v580 = vrot.slane %v155, 1
    %v581 = vrot.slane %v156, 1
    %v582 = vsel %vm345, %v580, %v581
    %v583 = vrot.slane %v157, 1
    %v584 = vsel %vm345, %v581, %v583
    %v585 = vrot.slane %v158, 1
    %v586 = vsel %vm345, %v583, %v585
    %v587 = vrot.slane %v159, 1
    %v588 = vsel %vm345, %v585, %v587
    %v589 = vrot.slane %v160, 1
    %v590 = vrot.slane %v161, 1
    %v591 = vsel %vm345, %v589, %v590
    %v592 = vrot.slane %v162, 1
    %v593 = vsel %vm345, %v590, %v592
    %v594 = vrot.slane %v163, 1
    %v595 = vsel %vm345, %v592, %v594
    %v596 = vrot.slane %v164, 1
    %v597 = vsel %vm345, %v594, %v596
    %v598 = vrot.slane %v165, 1
    %v599 = vrot.slane %v166, 1
    %v600 = vsel %vm345, %v598, %v599
    %v601 = vrot.slane %v167, 1
    %v602 = vsel %vm345, %v599, %v601
    %v603 = vrot.slane %v168, 1
    %v604 = vsel %vm345, %v601, %v603
    %v605 = vrot.slane %v169, 1
    %v606 = vsel %vm345, %v603, %v605
    %v607 = vrot.slane %v170, 1
    %v608 = vrot.slane %v171, 1
    %v609 = vsel %vm345, %v607, %v608
    %v610 = vrot.slane %v172, 1
    %v611 = vsel %vm345, %v608, %v610
    %v612 = vrot.slane %v173, 1
    %v613 = vsel %vm345, %v610, %v612
    %v614 = vrot.slane %v174, 1
    %v615 = vsel %vm345, %v612, %v614
    %v616 = vrot.slane %v175, 1
    %v617 = vrot.slane %v176, 1
    %v618 = vsel %vm345, %v616, %v617
    %v619 = vrot.slane %v177, 1
    %v620 = vsel %vm345, %v617, %v619
    %v621 = vrot.slane %v178, 1
    %v622 = vsel %vm345, %v619, %v621
    %v623 = vrot.slane %v179, 1
    %v624 = vsel %vm345, %v621, %v623
    %v625 = vrot.slane %v180, 1
    %v626 = vrot.slane %v181, 1
    %v627 = vsel %vm345, %v625, %v626
    %v628 = vrot.slane %v182, 1
    %v629 = vsel %vm345, %v626, %v628
    %v630 = vrot.slane %v183, 1
    %v631 = vsel %vm345, %v628, %v630
    %v632 = vrot.slane %v184, 1
    %v633 = vsel %vm345, %v630, %v632
    %vm634 = vcmask 1045504
    %v635 = vrot.slane %v25, 2
    %v636 = vrot.slane %v26, 2
    %v637 = vsel %vm634, %v635, %v636
    %v638 = vrot.slane %v27, 2
    %v639 = vsel %vm634, %v636, %v638
    %v640 = vrot.slane %v28, 2
    %v641 = vsel %vm634, %v638, %v640
    %v642 = vrot.slane %v29, 2
    %v643 = vsel %vm634, %v640, %v642
    %v644 = vrot.slane %v30, 2
    %v645 = vrot.slane %v31, 2
    %v646 = vsel %vm634, %v644, %v645
    %v647 = vrot.slane %v32, 2
    %v648 = vsel %vm634, %v645, %v647
    %v649 = vrot.slane %v33, 2
    %v650 = vsel %vm634, %v647, %v649
    %v651 = vrot.slane %v34, 2
    %v652 = vsel %vm634, %v649, %v651
    %v653 = vrot.slane %v35, 2
    %v654 = vrot.slane %v36, 2
    %v655 = vsel %vm634, %v653, %v654
    %v656 = vrot.slane %v37, 2
    %v657 = vsel %vm634, %v654, %v656
    %v658 = vrot.slane %v38, 2
    %v659 = vsel %vm634, %v656, %v658
    %v660 = vrot.slane %v39, 2
    %v661 = vsel %vm634, %v658, %v660
    %v662 = vrot.slane %v40, 2
    %v663 = vrot.slane %v41, 2
    %v664 = vsel %vm634, %v662, %v663
    %v665 = vrot.slane %v42, 2
    %v666 = vsel %vm634, %v663, %v665
    %v667 = vrot.slane %v43, 2
    %v668 = vsel %vm634, %v665, %v667
    %v669 = vrot.slane %v44, 2
    %v670 = vsel %vm634, %v667, %v669
    %v671 = vrot.slane %v45, 2
    %v672 = vrot.slane %v46, 2
    %v673 = vsel %vm634, %v671, %v672
    %v674 = vrot.slane %v47, 2
    %v675 = vsel %vm634, %v672, %v674
    %v676 = vrot.slane %v48, 2
    %v677 = vsel %vm634, %v674, %v676
    %v678 = vrot.slane %v49, 2
    %v679 = vsel %vm634, %v676, %v678
    %v680 = vrot.slane %v50, 2
    %v681 = vrot.slane %v51, 2
    %v682 = vsel %vm634, %v680, %v681
    %v683 = vrot.slane %v52, 2
    %v684 = vsel %vm634, %v681, %v683
    %v685 = vrot.slane %v53, 2
    %v686 = vsel %vm634, %v683, %v685
    %v687 = vrot.slane %v54, 2
    %v688 = vsel %vm634, %v685, %v687
    %v689 = vrot.slane %v55, 2
    %v690 = vrot.slane %v56, 2
    %v691 = vsel %vm634, %v689, %v690
    %v692 = vrot.slane %v57, 2
    %v693 = vsel %vm634, %v690, %v692
    %v694 = vrot.slane %v58, 2
    %v695 = vsel %vm634, %v692, %v694
    %v696 = vrot.slane %v59, 2
    %v697 = vsel %vm634, %v694, %v696
    %v698 = vrot.slane %v60, 2
    %v699 = vrot.slane %v61, 2
    %v700 = vsel %vm634, %v698, %v699
    %v701 = vrot.slane %v62, 2
    %v702 = vsel %vm634, %v699, %v701
    %v703 = vrot.slane %v63, 2
    %v704 = vsel %vm634, %v701, %v703
    %v705 = vrot.slane %v64, 2
    %v706 = vsel %vm634, %v703, %v705
    %v707 = vrot.slane %v65, 2
    %v708 = vrot.slane %v66, 2
    %v709 = vsel %vm634, %v707, %v708
    %v710 = vrot.slane %v67, 2
    %v711 = vsel %vm634, %v708, %v710
    %v712 = vrot.slane %v68, 2
    %v713 = vsel %vm634, %v710, %v712
    %v714 = vrot.slane %v69, 2
    %v715 = vsel %vm634, %v712, %v714
    %v716 = vrot.slane %v70, 2
    %v717 = vrot.slane %v71, 2
    %v718 = vsel %vm634, %v716, %v717
    %v719 = vrot.slane %v72, 2
    %v720 = vsel %vm634, %v717, %v719
    %v721 = vrot.slane %v73, 2
    %v722 = vsel %vm634, %v719, %v721
    %v723 = vrot.slane %v74, 2
    %v724 = vsel %vm634, %v721, %v723
    %v725 = vrot.slane %v75, 2
    %v726 = vrot.slane %v76, 2
    %v727 = vsel %vm634, %v725, %v726
    %v728 = vrot.slane %v77, 2
    %v729 = vsel %vm634, %v726, %v728
    %v730 = vrot.slane %v78, 2
    %v731 = vsel %vm634, %v728, %v730
    %v732 = vrot.slane %v79, 2
    %v733 = vsel %vm634, %v730, %v732
    %v734 = vrot.slane %v80, 2
    %v735 = vrot.slane %v81, 2
    %v736 = vsel %vm634, %v734, %v735
    %v737 = vrot.slane %v82, 2
    %v738 = vsel %vm634, %v735, %v737
    %v739 = vrot.slane %v83, 2
    %v740 = vsel %vm634, %v737, %v739
    %v741 = vrot.slane %v84, 2
    %v742 = vsel %vm634, %v739, %v741
    %v743 = vrot.slane %v85, 2
    %v744 = vrot.slane %v86, 2
    %v745 = vsel %vm634, %v743, %v744
    %v746 = vrot.slane %v87, 2
    %v747 = vsel %vm634, %v744, %v746
    %v748 = vrot.slane %v88, 2
    %v749 = vsel %vm634, %v746, %v748
    %v750 = vrot.slane %v89, 2
    %v751 = vsel %vm634, %v748, %v750
    %v752 = vrot.slane %v90, 2
    %v753 = vrot.slane %v91, 2
    %v754 = vsel %vm634, %v752, %v753
    %v755 = vrot.slane %v92, 2
    %v756 = vsel %vm634, %v753, %v755
    %v757 = vrot.slane %v93, 2
    %v758 = vsel %vm634, %v755, %v757
    %v759 = vrot.slane %v94, 2
    %v760 = vsel %vm634, %v757, %v759
    %v761 = vrot.slane %v95, 2
    %v762 = vrot.slane %v96, 2
    %v763 = vsel %vm634, %v761, %v762
    %v764 = vrot.slane %v97, 2
    %v765 = vsel %vm634, %v762, %v764
    %v766 = vrot.slane %v98, 2
    %v767 = vsel %vm634, %v764, %v766
    %v768 = vrot.slane %v99, 2
    %v769 = vsel %vm634, %v766, %v768
    %v770 = vrot.slane %v100, 2
    %v771 = vrot.slane %v101, 2
    %v772 = vsel %vm634, %v770, %v771
    %v773 = vrot.slane %v102, 2
    %v774 = vsel %vm634, %v771, %v773
    %v775 = vrot.slane %v103, 2
    %v776 = vsel %vm634, %v773, %v775
    %v777 = vrot.slane %v104, 2
    %v778 = vsel %vm634, %v775, %v777
    %v779 = vrot.slane %v105, 2
    %v780 = vrot.slane %v106, 2
    %v781 = vsel %vm634, %v779, %v780
    %v782 = vrot.slane %v107, 2
    %v783 = vsel %vm634, %v780, %v782
    %v784 = vrot.slane %v108, 2
    %v785 = vsel %vm634, %v782, %v784
    %v786 = vrot.slane %v109, 2
    %v787 = vsel %vm634, %v784, %v786
    %v788 = vrot.slane %v110, 2
    %v789 = vrot.slane %v111, 2
    %v790 = vsel %vm634, %v788, %v789
    %v791 = vrot.slane %v112, 2
    %v792 = vsel %vm634, %v789, %v791
    %v793 = vrot.slane %v113, 2
    %v794 = vsel %vm634, %v791, %v793
    %v795 = vrot.slane %v114, 2
    %v796 = vsel %vm634, %v793, %v795
    %v797 = vrot.slane %v115, 2
    %v798 = vrot.slane %v116, 2
    %v799 = vsel %vm634, %v797, %v798
    %v800 = vrot.slane %v117, 2
    %v801 = vsel %vm634, %v798, %v800
    %v802 = vrot.slane %v118, 2
    %v803 = vsel %vm634, %v800, %v802
    %v804 = vrot.slane %v119, 2
    %v805 = vsel %vm634, %v802, %v804
    %v806 = vrot.slane %v120, 2
    %v807 = vrot.slane %v121, 2
    %v808 = vsel %vm634, %v806, %v807
    %v809 = vrot.slane %v122, 2
    %v810 = vsel %vm634, %v807, %v809
    %v811 = vrot.slane %v123, 2
    %v812 = vsel %vm634, %v809, %v811
    %v813 = vrot.slane %v124, 2
    %v814 = vsel %vm634, %v811, %v813
    %v815 = vrot.slane %v125, 2
    %v816 = vrot.slane %v126, 2
    %v817 = vsel %vm634, %v815, %v816
    %v818 = vrot.slane %v127, 2
    %v819 = vsel %vm634, %v816, %v818
    %v820 = vrot.slane %v128, 2
    %v821 = vsel %vm634, %v818, %v820
    %v822 = vrot.slane %v129, 2
    %v823 = vsel %vm634, %v820, %v822
    %v824 = vrot.slane %v130, 2
    %v825 = vrot.slane %v131, 2
    %v826 = vsel %vm634, %v824, %v825
    %v827 = vrot.slane %v132, 2
    %v828 = vsel %vm634, %v825, %v827
    %v829 = vrot.slane %v133, 2
    %v830 = vsel %vm634, %v827, %v829
    %v831 = vrot.slane %v134, 2
    %v832 = vsel %vm634, %v829, %v831
    %v833 = vrot.slane %v135, 2
    %v834 = vrot.slane %v136, 2
    %v835 = vsel %vm634, %v833, %v834
    %v836 = vrot.slane %v137, 2
    %v837 = vsel %vm634, %v834, %v836
    %v838 = vrot.slane %v138, 2
    %v839 = vsel %vm634, %v836, %v838
    %v840 = vrot.slane %v139, 2
    %v841 = vsel %vm634, %v838, %v840
    %v842 = vrot.slane %v140, 2
    %v843 = vrot.slane %v141, 2
    %v844 = vsel %vm634, %v842, %v843
    %v845 = vrot.slane %v142, 2
    %v846 = vsel %vm634, %v843, %v845
    %v847 = vrot.slane %v143, 2
    %v848 = vsel %vm634, %v845, %v847
    %v849 = vrot.slane %v144, 2
    %v850 = vsel %vm634, %v847, %v849
    %v851 = vrot.slane %v145, 2
    %v852 = vrot.slane %v146, 2
    %v853 = vsel %vm634, %v851, %v852
    %v854 = vrot.slane %v147, 2
    %v855 = vsel %vm634, %v852, %v854
    %v856 = vrot.slane %v148, 2
    %v857 = vsel %vm634, %v854, %v856
    %v858 = vrot.slane %v149, 2
    %v859 = vsel %vm634, %v856, %v858
    %v860 = vrot.slane %v150, 2
    %v861 = vrot.slane %v151, 2
    %v862 = vsel %vm634, %v860, %v861
    %v863 = vrot.slane %v152, 2
    %v864 = vsel %vm634, %v861, %v863
    %v865 = vrot.slane %v153, 2
    %v866 = vsel %vm634, %v863, %v865
    %v867 = vrot.slane %v154, 2
    %v868 = vsel %vm634, %v865, %v867
    %v869 = vrot.slane %v155, 2
    %v870 = vrot.slane %v156, 2
    %v871 = vsel %vm634, %v869, %v870
    %v872 = vrot.slane %v157, 2
    %v873 = vsel %vm634, %v870, %v872
    %v874 = vrot.slane %v158, 2
    %v875 = vsel %vm634, %v872, %v874
    %v876 = vrot.slane %v159, 2
    %v877 = vsel %vm634, %v874, %v876
    %v878 = vrot.slane %v160, 2
    %v879 = vrot.slane %v161, 2
    %v880 = vsel %vm634, %v878, %v879
    %v881 = vrot.slane %v162, 2
    %v882 = vsel %vm634, %v879, %v881
    %v883 = vrot.slane %v163, 2
    %v884 = vsel %vm634, %v881, %v883
    %v885 = vrot.slane %v164, 2
    %v886 = vsel %vm634, %v883, %v885
    %v887 = vrot.slane %v165, 2
    %v888 = vrot.slane %v166, 2
    %v889 = vsel %vm634, %v887, %v888
    %v890 = vrot.slane %v167, 2
    %v891 = vsel %vm634, %v888, %v890
    %v892 = vrot.slane %v168, 2
    %v893 = vsel %vm634, %v890, %v892
    %v894 = vrot.slane %v169, 2
    %v895 = vsel %vm634, %v892, %v894
    %v896 = vrot.slane %v170, 2
    %v897 = vrot.slane %v171, 2
    %v898 = vsel %vm634, %v896, %v897
    %v899 = vrot.slane %v172, 2
    %v900 = vsel %vm634, %v897, %v899
    %v901 = vrot.slane %v173, 2
    %v902 = vsel %vm634, %v899, %v901
    %v903 = vrot.slane %v174, 2
    %v904 = vsel %vm634, %v901, %v903
    %v905 = vrot.slane %v175, 2
    %v906 = vrot.slane %v176, 2
    %v907 = vsel %vm634, %v905, %v906
    %v908 = vrot.slane %v177, 2
    %v909 = vsel %vm634, %v906, %v908
    %v910 = vrot.slane %v178, 2
    %v911 = vsel %vm634, %v908, %v910
    %v912 = vrot.slane %v179, 2
    %v913 = vsel %vm634, %v910, %v912
    %v914 = vrot.slane %v180, 2
    %v915 = vrot.slane %v181, 2
    %v916 = vsel %vm634, %v914, %v915
    %v917 = vrot.slane %v182, 2
    %v918 = vsel %vm634, %v915, %v917
    %v919 = vrot.slane %v183, 2
    %v920 = vsel %vm634, %v917, %v919
    %v921 = vrot.slane %v184, 2
    %v922 = vsel %vm634, %v919, %v921
    %923 = vrot.lane.b32.xlu0 %v348, 3
    %v924 = vpop.permute.xlu0 %923
    %925 = vrot.lane.b32.xlu0 %v350, 3
    %v926 = vpop.permute.xlu0 %925
    %927 = vrot.lane.b32.xlu0 %v352, 3
    %v928 = vpop.permute.xlu0 %927
    %929 = vrot.lane.b32.xlu0 %v354, 3
    %v930 = vpop.permute.xlu0 %929
    %931 = vrot.lane.b32.xlu0 %v357, 3
    %v932 = vpop.permute.xlu0 %931
    %933 = vrot.lane.b32.xlu0 %v359, 3
    %v934 = vpop.permute.xlu0 %933
    %935 = vrot.lane.b32.xlu0 %v361, 3
    %v936 = vpop.permute.xlu0 %935
    %937 = vrot.lane.b32.xlu0 %v363, 3
    %v938 = vpop.permute.xlu0 %937
    %939 = vrot.lane.b32.xlu0 %v366, 3
    %v940 = vpop.permute.xlu0 %939
    %941 = vrot.lane.b32.xlu0 %v368, 3
    %v942 = vpop.permute.xlu0 %941
    %943 = vrot.lane.b32.xlu0 %v370, 3
    %v944 = vpop.permute.xlu0 %943
    %945 = vrot.lane.b32.xlu0 %v372, 3
    %v946 = vpop.permute.xlu0 %945
    %947 = vrot.lane.b32.xlu0 %v375, 3
    %v948 = vpop.permute.xlu0 %947
    %949 = vrot.lane.b32.xlu0 %v377, 3
    %v950 = vpop.permute.xlu0 %949
    %951 = vrot.lane.b32.xlu0 %v379, 3
    %v952 = vpop.permute.xlu0 %951
    %953 = vrot.lane.b32.xlu0 %v381, 3
    %v954 = vpop.permute.xlu0 %953
    %955 = vrot.lane.b32.xlu0 %v384, 3
    %v956 = vpop.permute.xlu0 %955
    %957 = vrot.lane.b32.xlu0 %v386, 3
    %v958 = vpop.permute.xlu0 %957
    %959 = vrot.lane.b32.xlu0 %v388, 3
    %v960 = vpop.permute.xlu0 %959
    %961 = vrot.lane.b32.xlu0 %v390, 3
    %v962 = vpop.permute.xlu0 %961
    %963 = vrot.lane.b32.xlu0 %v393, 3
    %v964 = vpop.permute.xlu0 %963
    %965 = vrot.lane.b32.xlu0 %v395, 3
    %v966 = vpop.permute.xlu0 %965
    %967 = vrot.lane.b32.xlu0 %v397, 3
    %v968 = vpop.permute.xlu0 %967
    %969 = vrot.lane.b32.xlu0 %v399, 3
    %v970 = vpop.permute.xlu0 %969
    %971 = vrot.lane.b32.xlu0 %v402, 3
    %v972 = vpop.permute.xlu0 %971
    %973 = vrot.lane.b32.xlu0 %v404, 3
    %v974 = vpop.permute.xlu0 %973
    %975 = vrot.lane.b32.xlu0 %v406, 3
    %v976 = vpop.permute.xlu0 %975
    %977 = vrot.lane.b32.xlu0 %v408, 3
    %v978 = vpop.permute.xlu0 %977
    %979 = vrot.lane.b32.xlu0 %v411, 3
    %v980 = vpop.permute.xlu0 %979
    %981 = vrot.lane.b32.xlu0 %v413, 3
    %v982 = vpop.permute.xlu0 %981
    %983 = vrot.lane.b32.xlu0 %v415, 3
    %v984 = vpop.permute.xlu0 %983
    %985 = vrot.lane.b32.xlu0 %v417, 3
    %v986 = vpop.permute.xlu0 %985
    %987 = vrot.lane.b32.xlu0 %v420, 3
    %v988 = vpop.permute.xlu0 %987
    %989 = vrot.lane.b32.xlu0 %v422, 3
    %v990 = vpop.permute.xlu0 %989
    %991 = vrot.lane.b32.xlu0 %v424, 3
    %v992 = vpop.permute.xlu0 %991
    %993 = vrot.lane.b32.xlu0 %v426, 3
    %v994 = vpop.permute.xlu0 %993
    %995 = vrot.lane.b32.xlu0 %v429, 3
    %v996 = vpop.permute.xlu0 %995
    %997 = vrot.lane.b32.xlu0 %v431, 3
    %v998 = vpop.permute.xlu0 %997
    %999 = vrot.lane.b32.xlu0 %v433, 3
    %v1000 = vpop.permute.xlu0 %999
    %1001 = vrot.lane.b32.xlu0 %v435, 3
    %v1002 = vpop.permute.xlu0 %1001
    %1003 = vrot.lane.b32.xlu0 %v438, 3
    %v1004 = vpop.permute.xlu0 %1003
    %1005 = vrot.lane.b32.xlu0 %v440, 3
    %v1006 = vpop.permute.xlu0 %1005
    %1007 = vrot.lane.b32.xlu0 %v442, 3
    %v1008 = vpop.permute.xlu0 %1007
    %1009 = vrot.lane.b32.xlu0 %v444, 3
    %v1010 = vpop.permute.xlu0 %1009
    %1011 = vrot.lane.b32.xlu0 %v447, 3
    %v1012 = vpop.permute.xlu0 %1011
    %1013 = vrot.lane.b32.xlu0 %v449, 3
    %v1014 = vpop.permute.xlu0 %1013
    %1015 = vrot.lane.b32.xlu0 %v451, 3
    %v1016 = vpop.permute.xlu0 %1015
    %1017 = vrot.lane.b32.xlu0 %v453, 3
    %v1018 = vpop.permute.xlu0 %1017
    %1019 = vrot.lane.b32.xlu0 %v456, 3
    %v1020 = vpop.permute.xlu0 %1019
    %1021 = vrot.lane.b32.xlu0 %v458, 3
    %v1022 = vpop.permute.xlu0 %1021
    %1023 = vrot.lane.b32.xlu0 %v460, 3
    %v1024 = vpop.permute.xlu0 %1023
    %1025 = vrot.lane.b32.xlu0 %v462, 3
    %v1026 = vpop.permute.xlu0 %1025
    %1027 = vrot.lane.b32.xlu0 %v465, 3
    %v1028 = vpop.permute.xlu0 %1027
    %1029 = vrot.lane.b32.xlu0 %v467, 3
    %v1030 = vpop.permute.xlu0 %1029
    %1031 = vrot.lane.b32.xlu0 %v469, 3
    %v1032 = vpop.permute.xlu0 %1031
    %1033 = vrot.lane.b32.xlu0 %v471, 3
    %v1034 = vpop.permute.xlu0 %1033
    %1035 = vrot.lane.b32.xlu0 %v474, 3
    %v1036 = vpop.permute.xlu0 %1035
    %1037 = vrot.lane.b32.xlu0 %v476, 3
    %v1038 = vpop.permute.xlu0 %1037
    %1039 = vrot.lane.b32.xlu0 %v478, 3
    %v1040 = vpop.permute.xlu0 %1039
    %1041 = vrot.lane.b32.xlu0 %v480, 3
    %v1042 = vpop.permute.xlu0 %1041
    %1043 = vrot.lane.b32.xlu0 %v483, 3
    %v1044 = vpop.permute.xlu0 %1043
    %1045 = vrot.lane.b32.xlu0 %v485, 3
    %v1046 = vpop.permute.xlu0 %1045
    %1047 = vrot.lane.b32.xlu0 %v487, 3
    %v1048 = vpop.permute.xlu0 %1047
    %1049 = vrot.lane.b32.xlu0 %v489, 3
    %v1050 = vpop.permute.xlu0 %1049
    %1051 = vrot.lane.b32.xlu0 %v492, 3
    %v1052 = vpop.permute.xlu0 %1051
    %1053 = vrot.lane.b32.xlu0 %v494, 3
    %v1054 = vpop.permute.xlu0 %1053
    %1055 = vrot.lane.b32.xlu0 %v496, 3
    %v1056 = vpop.permute.xlu0 %1055
    %1057 = vrot.lane.b32.xlu0 %v498, 3
    %v1058 = vpop.permute.xlu0 %1057
    %1059 = vrot.lane.b32.xlu0 %v501, 3
    %v1060 = vpop.permute.xlu0 %1059
    %1061 = vrot.lane.b32.xlu0 %v503, 3
    %v1062 = vpop.permute.xlu0 %1061
    %1063 = vrot.lane.b32.xlu0 %v505, 3
    %v1064 = vpop.permute.xlu0 %1063
    %1065 = vrot.lane.b32.xlu0 %v507, 3
    %v1066 = vpop.permute.xlu0 %1065
    %1067 = vrot.lane.b32.xlu0 %v510, 3
    %v1068 = vpop.permute.xlu0 %1067
    %1069 = vrot.lane.b32.xlu0 %v512, 3
    %v1070 = vpop.permute.xlu0 %1069
    %1071 = vrot.lane.b32.xlu0 %v514, 3
    %v1072 = vpop.permute.xlu0 %1071
    %1073 = vrot.lane.b32.xlu0 %v516, 3
    %v1074 = vpop.permute.xlu0 %1073
    %1075 = vrot.lane.b32.xlu0 %v519, 3
    %v1076 = vpop.permute.xlu0 %1075
    %1077 = vrot.lane.b32.xlu0 %v521, 3
    %v1078 = vpop.permute.xlu0 %1077
    %1079 = vrot.lane.b32.xlu0 %v523, 3
    %v1080 = vpop.permute.xlu0 %1079
    %1081 = vrot.lane.b32.xlu0 %v525, 3
    %v1082 = vpop.permute.xlu0 %1081
    %1083 = vrot.lane.b32.xlu0 %v528, 3
    %v1084 = vpop.permute.xlu0 %1083
    %1085 = vrot.lane.b32.xlu0 %v530, 3
    %v1086 = vpop.permute.xlu0 %1085
    %1087 = vrot.lane.b32.xlu0 %v532, 3
    %v1088 = vpop.permute.xlu0 %1087
    %1089 = vrot.lane.b32.xlu0 %v534, 3
    %v1090 = vpop.permute.xlu0 %1089
    %1091 = vrot.lane.b32.xlu0 %v537, 3
    %v1092 = vpop.permute.xlu0 %1091
    %1093 = vrot.lane.b32.xlu0 %v539, 3
    %v1094 = vpop.permute.xlu0 %1093
    %1095 = vrot.lane.b32.xlu0 %v541, 3
    %v1096 = vpop.permute.xlu0 %1095
    %1097 = vrot.lane.b32.xlu0 %v543, 3
    %v1098 = vpop.permute.xlu0 %1097
    %1099 = vrot.lane.b32.xlu0 %v546, 3
    %v1100 = vpop.permute.xlu0 %1099
    %1101 = vrot.lane.b32.xlu0 %v548, 3
    %v1102 = vpop.permute.xlu0 %1101
    %1103 = vrot.lane.b32.xlu0 %v550, 3
    %v1104 = vpop.permute.xlu0 %1103
    %1105 = vrot.lane.b32.xlu0 %v552, 3
    %v1106 = vpop.permute.xlu0 %1105
    %1107 = vrot.lane.b32.xlu0 %v555, 3
    %v1108 = vpop.permute.xlu0 %1107
    %1109 = vrot.lane.b32.xlu0 %v557, 3
    %v1110 = vpop.permute.xlu0 %1109
    %1111 = vrot.lane.b32.xlu0 %v559, 3
    %v1112 = vpop.permute.xlu0 %1111
    %1113 = vrot.lane.b32.xlu0 %v561, 3
    %v1114 = vpop.permute.xlu0 %1113
    %1115 = vrot.lane.b32.xlu0 %v564, 3
    %v1116 = vpop.permute.xlu0 %1115
    %1117 = vrot.lane.b32.xlu0 %v566, 3
    %v1118 = vpop.permute.xlu0 %1117
    %1119 = vrot.lane.b32.xlu0 %v568, 3
    %v1120 = vpop.permute.xlu0 %1119
    %1121 = vrot.lane.b32.xlu0 %v570, 3
    %v1122 = vpop.permute.xlu0 %1121
    %1123 = vrot.lane.b32.xlu0 %v573, 3
    %v1124 = vpop.permute.xlu0 %1123
    %1125 = vrot.lane.b32.xlu0 %v575, 3
    %v1126 = vpop.permute.xlu0 %1125
    %1127 = vrot.lane.b32.xlu0 %v577, 3
    %v1128 = vpop.permute.xlu0 %1127
    %1129 = vrot.lane.b32.xlu0 %v579, 3
    %v1130 = vpop.permute.xlu0 %1129
    %1131 = vrot.lane.b32.xlu0 %v582, 3
    %v1132 = vpop.permute.xlu0 %1131
    %1133 = vrot.lane.b32.xlu0 %v584, 3
    %v1134 = vpop.permute.xlu0 %1133
    %1135 = vrot.lane.b32.xlu0 %v586, 3
    %v1136 = vpop.permute.xlu0 %1135
    %1137 = vrot.lane.b32.xlu0 %v588, 3
    %v1138 = vpop.permute.xlu0 %1137
    %1139 = vrot.lane.b32.xlu0 %v591, 3
    %v1140 = vpop.permute.xlu0 %1139
    %1141 = vrot.lane.b32.xlu0 %v593, 3
    %v1142 = vpop.permute.xlu0 %1141
    %1143 = vrot.lane.b32.xlu0 %v595, 3
    %v1144 = vpop.permute.xlu0 %1143
    %1145 = vrot.lane.b32.xlu0 %v597, 3
    %v1146 = vpop.permute.xlu0 %1145
    %1147 = vrot.lane.b32.xlu0 %v600, 3
    %v1148 = vpop.permute.xlu0 %1147
    %1149 = vrot.lane.b32.xlu0 %v602, 3
    %v1150 = vpop.permute.xlu0 %1149
    %1151 = vrot.lane.b32.xlu0 %v604, 3
    %v1152 = vpop.permute.xlu0 %1151
    %1153 = vrot.lane.b32.xlu0 %v606, 3
    %v1154 = vpop.permute.xlu0 %1153
    %1155 = vrot.lane.b32.xlu0 %v609, 3
    %v1156 = vpop.permute.xlu0 %1155
    %1157 = vrot.lane.b32.xlu0 %v611, 3
    %v1158 = vpop.permute.xlu0 %1157
    %1159 = vrot.lane.b32.xlu0 %v613, 3
    %v1160 = vpop.permute.xlu0 %1159
    %1161 = vrot.lane.b32.xlu0 %v615, 3
    %v1162 = vpop.permute.xlu0 %1161
    %1163 = vrot.lane.b32.xlu0 %v618, 3
    %v1164 = vpop.permute.xlu0 %1163
    %1165 = vrot.lane.b32.xlu0 %v620, 3
    %v1166 = vpop.permute.xlu0 %1165
    %1167 = vrot.lane.b32.xlu0 %v622, 3
    %v1168 = vpop.permute.xlu0 %1167
    %1169 = vrot.lane.b32.xlu0 %v624, 3
    %v1170 = vpop.permute.xlu0 %1169
    %1171 = vrot.lane.b32.xlu0 %v627, 3
    %v1172 = vpop.permute.xlu0 %1171
    %1173 = vrot.lane.b32.xlu0 %v629, 3
    %v1174 = vpop.permute.xlu0 %1173
    %1175 = vrot.lane.b32.xlu0 %v631, 3
    %v1176 = vpop.permute.xlu0 %1175
    %1177 = vrot.lane.b32.xlu0 %v633, 3
    %v1178 = vpop.permute.xlu0 %1177
    %1307 = vrot.lane.b32.xlu0 %v637, 6
    %v1308 = vpop.permute.xlu0 %1307
    %1309 = vrot.lane.b32.xlu0 %v639, 6
    %v1310 = vpop.permute.xlu0 %1309
    %1311 = vrot.lane.b32.xlu0 %v641, 6
    %v1312 = vpop.permute.xlu0 %1311
    %1313 = vrot.lane.b32.xlu0 %v643, 6
    %v1314 = vpop.permute.xlu0 %1313
    %1315 = vrot.lane.b32.xlu0 %v646, 6
    %v1316 = vpop.permute.xlu0 %1315
    %1317 = vrot.lane.b32.xlu0 %v648, 6
    %v1318 = vpop.permute.xlu0 %1317
    %1319 = vrot.lane.b32.xlu0 %v650, 6
    %v1320 = vpop.permute.xlu0 %1319
    %1321 = vrot.lane.b32.xlu0 %v652, 6
    %v1322 = vpop.permute.xlu0 %1321
    %1323 = vrot.lane.b32.xlu0 %v655, 6
    %v1324 = vpop.permute.xlu0 %1323
    %1325 = vrot.lane.b32.xlu0 %v657, 6
    %v1326 = vpop.permute.xlu0 %1325
    %1327 = vrot.lane.b32.xlu0 %v659, 6
    %v1328 = vpop.permute.xlu0 %1327
    %1329 = vrot.lane.b32.xlu0 %v661, 6
    %v1330 = vpop.permute.xlu0 %1329
    %1331 = vrot.lane.b32.xlu0 %v664, 6
    %v1332 = vpop.permute.xlu0 %1331
    %1333 = vrot.lane.b32.xlu0 %v666, 6
    %v1334 = vpop.permute.xlu0 %1333
    %1335 = vrot.lane.b32.xlu0 %v668, 6
    %v1336 = vpop.permute.xlu0 %1335
    %1337 = vrot.lane.b32.xlu0 %v670, 6
    %v1338 = vpop.permute.xlu0 %1337
    %1339 = vrot.lane.b32.xlu0 %v673, 6
    %v1340 = vpop.permute.xlu0 %1339
    %1341 = vrot.lane.b32.xlu0 %v675, 6
    %v1342 = vpop.permute.xlu0 %1341
    %1343 = vrot.lane.b32.xlu0 %v677, 6
    %v1344 = vpop.permute.xlu0 %1343
    %1345 = vrot.lane.b32.xlu0 %v679, 6
    %v1346 = vpop.permute.xlu0 %1345
    %1347 = vrot.lane.b32.xlu0 %v682, 6
    %v1348 = vpop.permute.xlu0 %1347
    %1349 = vrot.lane.b32.xlu0 %v684, 6
    %v1350 = vpop.permute.xlu0 %1349
    %1351 = vrot.lane.b32.xlu0 %v686, 6
    %v1352 = vpop.permute.xlu0 %1351
    %1353 = vrot.lane.b32.xlu0 %v688, 6
    %v1354 = vpop.permute.xlu0 %1353
    %1355 = vrot.lane.b32.xlu0 %v691, 6
    %v1356 = vpop.permute.xlu0 %1355
    %1357 = vrot.lane.b32.xlu0 %v693, 6
    %v1358 = vpop.permute.xlu0 %1357
    %1359 = vrot.lane.b32.xlu0 %v695, 6
    %v1360 = vpop.permute.xlu0 %1359
    %1361 = vrot.lane.b32.xlu0 %v697, 6
    %v1362 = vpop.permute.xlu0 %1361
    %1363 = vrot.lane.b32.xlu0 %v700, 6
    %v1364 = vpop.permute.xlu0 %1363
    %1365 = vrot.lane.b32.xlu0 %v702, 6
    %v1366 = vpop.permute.xlu0 %1365
    %1367 = vrot.lane.b32.xlu0 %v704, 6
    %v1368 = vpop.permute.xlu0 %1367
    %1369 = vrot.lane.b32.xlu0 %v706, 6
    %v1370 = vpop.permute.xlu0 %1369
    %1371 = vrot.lane.b32.xlu0 %v709, 6
    %v1372 = vpop.permute.xlu0 %1371
    %1373 = vrot.lane.b32.xlu0 %v711, 6
    %v1374 = vpop.permute.xlu0 %1373
    %1375 = vrot.lane.b32.xlu0 %v713, 6
    %v1376 = vpop.permute.xlu0 %1375
    %1377 = vrot.lane.b32.xlu0 %v715, 6
    %v1378 = vpop.permute.xlu0 %1377
    %1379 = vrot.lane.b32.xlu0 %v718, 6
    %v1380 = vpop.permute.xlu0 %1379
    %1381 = vrot.lane.b32.xlu0 %v720, 6
    %v1382 = vpop.permute.xlu0 %1381
    %1383 = vrot.lane.b32.xlu0 %v722, 6
    %v1384 = vpop.permute.xlu0 %1383
    %1385 = vrot.lane.b32.xlu0 %v724, 6
    %v1386 = vpop.permute.xlu0 %1385
    %1387 = vrot.lane.b32.xlu0 %v727, 6
    %v1388 = vpop.permute.xlu0 %1387
    %1389 = vrot.lane.b32.xlu0 %v729, 6
    %v1390 = vpop.permute.xlu0 %1389
    %1391 = vrot.lane.b32.xlu0 %v731, 6
    %v1392 = vpop.permute.xlu0 %1391
    %1393 = vrot.lane.b32.xlu0 %v733, 6
    %v1394 = vpop.permute.xlu0 %1393
    %1395 = vrot.lane.b32.xlu0 %v736, 6
    %v1396 = vpop.permute.xlu0 %1395
    %1397 = vrot.lane.b32.xlu0 %v738, 6
    %v1398 = vpop.permute.xlu0 %1397
    %1399 = vrot.lane.b32.xlu0 %v740, 6
    %v1400 = vpop.permute.xlu0 %1399
    %1401 = vrot.lane.b32.xlu0 %v742, 6
    %v1402 = vpop.permute.xlu0 %1401
    %1403 = vrot.lane.b32.xlu0 %v745, 6
    %v1404 = vpop.permute.xlu0 %1403
    %1405 = vrot.lane.b32.xlu0 %v747, 6
    %v1406 = vpop.permute.xlu0 %1405
    %1407 = vrot.lane.b32.xlu0 %v749, 6
    %v1408 = vpop.permute.xlu0 %1407
    %1409 = vrot.lane.b32.xlu0 %v751, 6
    %v1410 = vpop.permute.xlu0 %1409
    %1411 = vrot.lane.b32.xlu0 %v754, 6
    %v1412 = vpop.permute.xlu0 %1411
    %1413 = vrot.lane.b32.xlu0 %v756, 6
    %v1414 = vpop.permute.xlu0 %1413
    %1415 = vrot.lane.b32.xlu0 %v758, 6
    %v1416 = vpop.permute.xlu0 %1415
    %1417 = vrot.lane.b32.xlu0 %v760, 6
    %v1418 = vpop.permute.xlu0 %1417
    %1419 = vrot.lane.b32.xlu0 %v763, 6
    %v1420 = vpop.permute.xlu0 %1419
    %1421 = vrot.lane.b32.xlu0 %v765, 6
    %v1422 = vpop.permute.xlu0 %1421
    %1423 = vrot.lane.b32.xlu0 %v767, 6
    %v1424 = vpop.permute.xlu0 %1423
    %1425 = vrot.lane.b32.xlu0 %v769, 6
    %v1426 = vpop.permute.xlu0 %1425
    %1427 = vrot.lane.b32.xlu0 %v772, 6
    %v1428 = vpop.permute.xlu0 %1427
    %1429 = vrot.lane.b32.xlu0 %v774, 6
    %v1430 = vpop.permute.xlu0 %1429
    %1431 = vrot.lane.b32.xlu0 %v776, 6
    %v1432 = vpop.permute.xlu0 %1431
    %1433 = vrot.lane.b32.xlu0 %v778, 6
    %v1434 = vpop.permute.xlu0 %1433
    %1435 = vrot.lane.b32.xlu0 %v781, 6
    %v1436 = vpop.permute.xlu0 %1435
    %1437 = vrot.lane.b32.xlu0 %v783, 6
    %v1438 = vpop.permute.xlu0 %1437
    %1439 = vrot.lane.b32.xlu0 %v785, 6
    %v1440 = vpop.permute.xlu0 %1439
    %1441 = vrot.lane.b32.xlu0 %v787, 6
    %v1442 = vpop.permute.xlu0 %1441
    %1443 = vrot.lane.b32.xlu0 %v790, 6
    %v1444 = vpop.permute.xlu0 %1443
    %1445 = vrot.lane.b32.xlu0 %v792, 6
    %v1446 = vpop.permute.xlu0 %1445
    %1447 = vrot.lane.b32.xlu0 %v794, 6
    %v1448 = vpop.permute.xlu0 %1447
    %1449 = vrot.lane.b32.xlu0 %v796, 6
    %v1450 = vpop.permute.xlu0 %1449
    %1451 = vrot.lane.b32.xlu0 %v799, 6
    %v1452 = vpop.permute.xlu0 %1451
    %1453 = vrot.lane.b32.xlu0 %v801, 6
    %v1454 = vpop.permute.xlu0 %1453
    %1455 = vrot.lane.b32.xlu0 %v803, 6
    %v1456 = vpop.permute.xlu0 %1455
    %1457 = vrot.lane.b32.xlu0 %v805, 6
    %v1458 = vpop.permute.xlu0 %1457
    %1459 = vrot.lane.b32.xlu0 %v808, 6
    %v1460 = vpop.permute.xlu0 %1459
    %1461 = vrot.lane.b32.xlu0 %v810, 6
    %v1462 = vpop.permute.xlu0 %1461
    %1463 = vrot.lane.b32.xlu0 %v812, 6
    %v1464 = vpop.permute.xlu0 %1463
    %1465 = vrot.lane.b32.xlu0 %v814, 6
    %v1466 = vpop.permute.xlu0 %1465
    %1467 = vrot.lane.b32.xlu0 %v817, 6
    %v1468 = vpop.permute.xlu0 %1467
    %1469 = vrot.lane.b32.xlu0 %v819, 6
    %v1470 = vpop.permute.xlu0 %1469
    %1471 = vrot.lane.b32.xlu0 %v821, 6
    %v1472 = vpop.permute.xlu0 %1471
    %1473 = vrot.lane.b32.xlu0 %v823, 6
    %v1474 = vpop.permute.xlu0 %1473
    %1475 = vrot.lane.b32.xlu0 %v826, 6
    %v1476 = vpop.permute.xlu0 %1475
    %1477 = vrot.lane.b32.xlu0 %v828, 6
    %v1478 = vpop.permute.xlu0 %1477
    %1479 = vrot.lane.b32.xlu0 %v830, 6
    %v1480 = vpop.permute.xlu0 %1479
    %1481 = vrot.lane.b32.xlu0 %v832, 6
    %v1482 = vpop.permute.xlu0 %1481
    %1483 = vrot.lane.b32.xlu0 %v835, 6
    %v1484 = vpop.permute.xlu0 %1483
    %1485 = vrot.lane.b32.xlu0 %v837, 6
    %v1486 = vpop.permute.xlu0 %1485
    %1487 = vrot.lane.b32.xlu0 %v839, 6
    %v1488 = vpop.permute.xlu0 %1487
    %1489 = vrot.lane.b32.xlu0 %v841, 6
    %v1490 = vpop.permute.xlu0 %1489
    %1491 = vrot.lane.b32.xlu0 %v844, 6
    %v1492 = vpop.permute.xlu0 %1491
    %1493 = vrot.lane.b32.xlu0 %v846, 6
    %v1494 = vpop.permute.xlu0 %1493
    %1495 = vrot.lane.b32.xlu0 %v848, 6
    %v1496 = vpop.permute.xlu0 %1495
    %1497 = vrot.lane.b32.xlu0 %v850, 6
    %v1498 = vpop.permute.xlu0 %1497
    %1499 = vrot.lane.b32.xlu0 %v853, 6
    %v1500 = vpop.permute.xlu0 %1499
    %1501 = vrot.lane.b32.xlu0 %v855, 6
    %v1502 = vpop.permute.xlu0 %1501
    %1503 = vrot.lane.b32.xlu0 %v857, 6
    %v1504 = vpop.permute.xlu0 %1503
    %1505 = vrot.lane.b32.xlu0 %v859, 6
    %v1506 = vpop.permute.xlu0 %1505
    %1507 = vrot.lane.b32.xlu0 %v862, 6
    %v1508 = vpop.permute.xlu0 %1507
    %1509 = vrot.lane.b32.xlu0 %v864, 6
    %v1510 = vpop.permute.xlu0 %1509
    %1511 = vrot.lane.b32.xlu0 %v866, 6
    %v1512 = vpop.permute.xlu0 %1511
    %1513 = vrot.lane.b32.xlu0 %v868, 6
    %v1514 = vpop.permute.xlu0 %1513
    %1515 = vrot.lane.b32.xlu0 %v871, 6
    %v1516 = vpop.permute.xlu0 %1515
    %1517 = vrot.lane.b32.xlu0 %v873, 6
    %v1518 = vpop.permute.xlu0 %1517
    %1519 = vrot.lane.b32.xlu0 %v875, 6
    %v1520 = vpop.permute.xlu0 %1519
    %1521 = vrot.lane.b32.xlu0 %v877, 6
    %v1522 = vpop.permute.xlu0 %1521
    %1523 = vrot.lane.b32.xlu0 %v880, 6
    %v1524 = vpop.permute.xlu0 %1523
    %1525 = vrot.lane.b32.xlu0 %v882, 6
    %v1526 = vpop.permute.xlu0 %1525
    %1527 = vrot.lane.b32.xlu0 %v884, 6
    %v1528 = vpop.permute.xlu0 %1527
    %1529 = vrot.lane.b32.xlu0 %v886, 6
    %v1530 = vpop.permute.xlu0 %1529
    %1531 = vrot.lane.b32.xlu0 %v889, 6
    %v1532 = vpop.permute.xlu0 %1531
    %1533 = vrot.lane.b32.xlu0 %v891, 6
    %v1534 = vpop.permute.xlu0 %1533
    %1535 = vrot.lane.b32.xlu0 %v893, 6
    %v1536 = vpop.permute.xlu0 %1535
    %1537 = vrot.lane.b32.xlu0 %v895, 6
    %v1538 = vpop.permute.xlu0 %1537
    %1539 = vrot.lane.b32.xlu0 %v898, 6
    %v1540 = vpop.permute.xlu0 %1539
    %1541 = vrot.lane.b32.xlu0 %v900, 6
    %v1542 = vpop.permute.xlu0 %1541
    %1543 = vrot.lane.b32.xlu0 %v902, 6
    %v1544 = vpop.permute.xlu0 %1543
    %1545 = vrot.lane.b32.xlu0 %v904, 6
    %v1546 = vpop.permute.xlu0 %1545
    %1547 = vrot.lane.b32.xlu0 %v907, 6
    %v1548 = vpop.permute.xlu0 %1547
    %1549 = vrot.lane.b32.xlu0 %v909, 6
    %v1550 = vpop.permute.xlu0 %1549
    %1551 = vrot.lane.b32.xlu0 %v911, 6
    %v1552 = vpop.permute.xlu0 %1551
    %1553 = vrot.lane.b32.xlu0 %v913, 6
    %v1554 = vpop.permute.xlu0 %1553
    %1555 = vrot.lane.b32.xlu0 %v916, 6
    %v1556 = vpop.permute.xlu0 %1555
    %1557 = vrot.lane.b32.xlu0 %v918, 6
    %v1558 = vpop.permute.xlu0 %1557
    %1559 = vrot.lane.b32.xlu0 %v920, 6
    %v1560 = vpop.permute.xlu0 %1559
    %1561 = vrot.lane.b32.xlu0 %v922, 6
    %v1562 = vpop.permute.xlu0 %1561
    %vm1691 = vcmask 23552
    %v1692 = vsel %vm1691, %v25, %v924
    %v1693 = vsel %vm1691, %v26, %v926
    %v1694 = vsel %vm1691, %v27, %v928
    %v1695 = vsel %vm1691, %v28, %v930
    %v1696 = vsel %vm1691, %v30, %v932
    %v1697 = vsel %vm1691, %v31, %v934
    %v1698 = vsel %vm1691, %v32, %v936
    %v1699 = vsel %vm1691, %v33, %v938
    %v1700 = vsel %vm1691, %v35, %v940
    %v1701 = vsel %vm1691, %v36, %v942
    %v1702 = vsel %vm1691, %v37, %v944
    %v1703 = vsel %vm1691, %v38, %v946
    %v1704 = vsel %vm1691, %v40, %v948
    %v1705 = vsel %vm1691, %v41, %v950
    %v1706 = vsel %vm1691, %v42, %v952
    %v1707 = vsel %vm1691, %v43, %v954
    %v1708 = vsel %vm1691, %v45, %v956
    %v1709 = vsel %vm1691, %v46, %v958
    %v1710 = vsel %vm1691, %v47, %v960
    %v1711 = vsel %vm1691, %v48, %v962
    %v1712 = vsel %vm1691, %v50, %v964
    %v1713 = vsel %vm1691, %v51, %v966
    %v1714 = vsel %vm1691, %v52, %v968
    %v1715 = vsel %vm1691, %v53, %v970
    %v1716 = vsel %vm1691, %v55, %v972
    %v1717 = vsel %vm1691, %v56, %v974
    %v1718 = vsel %vm1691, %v57, %v976
    %v1719 = vsel %vm1691, %v58, %v978
    %v1720 = vsel %vm1691, %v60, %v980
    %v1721 = vsel %vm1691, %v61, %v982
    %v1722 = vsel %vm1691, %v62, %v984
    %v1723 = vsel %vm1691, %v63, %v986
    %v1724 = vsel %vm1691, %v65, %v988
    %v1725 = vsel %vm1691, %v66, %v990
    %v1726 = vsel %vm1691, %v67, %v992
    %v1727 = vsel %vm1691, %v68, %v994
    %v1728 = vsel %vm1691, %v70, %v996
    %v1729 = vsel %vm1691, %v71, %v998
    %v1730 = vsel %vm1691, %v72, %v1000
    %v1731 = vsel %vm1691, %v73, %v1002
    %v1732 = vsel %vm1691, %v75, %v1004
    %v1733 = vsel %vm1691, %v76, %v1006
    %v1734 = vsel %vm1691, %v77, %v1008
    %v1735 = vsel %vm1691, %v78, %v1010
    %v1736 = vsel %vm1691, %v80, %v1012
    %v1737 = vsel %vm1691, %v81, %v1014
    %v1738 = vsel %vm1691, %v82, %v1016
    %v1739 = vsel %vm1691, %v83, %v1018
    %v1740 = vsel %vm1691, %v85, %v1020
    %v1741 = vsel %vm1691, %v86, %v1022
    %v1742 = vsel %vm1691, %v87, %v1024
    %v1743 = vsel %vm1691, %v88, %v1026
    %v1744 = vsel %vm1691, %v90, %v1028
    %v1745 = vsel %vm1691, %v91, %v1030
    %v1746 = vsel %vm1691, %v92, %v1032
    %v1747 = vsel %vm1691, %v93, %v1034
    %v1748 = vsel %vm1691, %v95, %v1036
    %v1749 = vsel %vm1691, %v96, %v1038
    %v1750 = vsel %vm1691, %v97, %v1040
    %v1751 = vsel %vm1691, %v98, %v1042
    %v1752 = vsel %vm1691, %v100, %v1044
    %v1753 = vsel %vm1691, %v101, %v1046
    %v1754 = vsel %vm1691, %v102, %v1048
    %v1755 = vsel %vm1691, %v103, %v1050
    %v1756 = vsel %vm1691, %v105, %v1052
    %v1757 = vsel %vm1691, %v106, %v1054
    %v1758 = vsel %vm1691, %v107, %v1056
    %v1759 = vsel %vm1691, %v108, %v1058
    %v1760 = vsel %vm1691, %v110, %v1060
    %v1761 = vsel %vm1691, %v111, %v1062
    %v1762 = vsel %vm1691, %v112, %v1064
    %v1763 = vsel %vm1691, %v113, %v1066
    %v1764 = vsel %vm1691, %v115, %v1068
    %v1765 = vsel %vm1691, %v116, %v1070
    %v1766 = vsel %vm1691, %v117, %v1072
    %v1767 = vsel %vm1691, %v118, %v1074
    %v1768 = vsel %vm1691, %v120, %v1076
    %v1769 = vsel %vm1691, %v121, %v1078
    %v1770 = vsel %vm1691, %v122, %v1080
    %v1771 = vsel %vm1691, %v123, %v1082
    %v1772 = vsel %vm1691, %v125, %v1084
    %v1773 = vsel %vm1691, %v126, %v1086
    %v1774 = vsel %vm1691, %v127, %v1088
    %v1775 = vsel %vm1691, %v128, %v1090
    %v1776 = vsel %vm1691, %v130, %v1092
    %v1777 = vsel %vm1691, %v131, %v1094
    %v1778 = vsel %vm1691, %v132, %v1096
    %v1779 = vsel %vm1691, %v133, %v1098
    %v1780 = vsel %vm1691, %v135, %v1100
    %v1781 = vsel %vm1691, %v136, %v1102
    %v1782 = vsel %vm1691, %v137, %v1104
    %v1783 = vsel %vm1691, %v138, %v1106
    %v1784 = vsel %vm1691, %v140, %v1108
    %v1785 = vsel %vm1691, %v141, %v1110
    %v1786 = vsel %vm1691, %v142, %v1112
    %v1787 = vsel %vm1691, %v143, %v1114
    %v1788 = vsel %vm1691, %v145, %v1116
    %v1789 = vsel %vm1691, %v146, %v1118
    %v1790 = vsel %vm1691, %v147, %v1120
    %v1791 = vsel %vm1691, %v148, %v1122
    %v1792 = vsel %vm1691, %v150, %v1124
    %v1793 = vsel %vm1691, %v151, %v1126
    %v1794 = vsel %vm1691, %v152, %v1128
    %v1795 = vsel %vm1691, %v153, %v1130
    %v1796 = vsel %vm1691, %v155, %v1132
    %v1797 = vsel %vm1691, %v156, %v1134
    %v1798 = vsel %vm1691, %v157, %v1136
    %v1799 = vsel %vm1691, %v158, %v1138
    %v1800 = vsel %vm1691, %v160, %v1140
    %v1801 = vsel %vm1691, %v161, %v1142
    %v1802 = vsel %vm1691, %v162, %v1144
    %v1803 = vsel %vm1691, %v163, %v1146
    %v1804 = vsel %vm1691, %v165, %v1148
    %v1805 = vsel %vm1691, %v166, %v1150
    %v1806 = vsel %vm1691, %v167, %v1152
    %v1807 = vsel %vm1691, %v168, %v1154
    %v1808 = vsel %vm1691, %v170, %v1156
    %v1809 = vsel %vm1691, %v171, %v1158
    %v1810 = vsel %vm1691, %v172, %v1160
    %v1811 = vsel %vm1691, %v173, %v1162
    %v1812 = vsel %vm1691, %v175, %v1164
    %v1813 = vsel %vm1691, %v176, %v1166
    %v1814 = vsel %vm1691, %v177, %v1168
    %v1815 = vsel %vm1691, %v178, %v1170
    %v1816 = vsel %vm1691, %v180, %v1172
    %v1817 = vsel %vm1691, %v181, %v1174
    %v1818 = vsel %vm1691, %v182, %v1176
    %v1819 = vsel %vm1691, %v183, %v1178
    %vm1820 = vcmask 48128
    %v1821 = vsel %vm1820, %v1692, %v1308
    %v1822 = vsel %vm1820, %v1693, %v1310
    %v1823 = vsel %vm1820, %v1694, %v1312
    %v1824 = vsel %vm1820, %v1695, %v1314
    %v1825 = vsel %vm1820, %v1696, %v1316
    %v1826 = vsel %vm1820, %v1697, %v1318
    %v1827 = vsel %vm1820, %v1698, %v1320
    %v1828 = vsel %vm1820, %v1699, %v1322
    %v1829 = vsel %vm1820, %v1700, %v1324
    %v1830 = vsel %vm1820, %v1701, %v1326
    %v1831 = vsel %vm1820, %v1702, %v1328
    %v1832 = vsel %vm1820, %v1703, %v1330
    %v1833 = vsel %vm1820, %v1704, %v1332
    %v1834 = vsel %vm1820, %v1705, %v1334
    %v1835 = vsel %vm1820, %v1706, %v1336
    %v1836 = vsel %vm1820, %v1707, %v1338
    %v1837 = vsel %vm1820, %v1708, %v1340
    %v1838 = vsel %vm1820, %v1709, %v1342
    %v1839 = vsel %vm1820, %v1710, %v1344
    %v1840 = vsel %vm1820, %v1711, %v1346
    %v1841 = vsel %vm1820, %v1712, %v1348
    %v1842 = vsel %vm1820, %v1713, %v1350
    %v1843 = vsel %vm1820, %v1714, %v1352
    %v1844 = vsel %vm1820, %v1715, %v1354
    %v1845 = vsel %vm1820, %v1716, %v1356
    %v1846 = vsel %vm1820, %v1717, %v1358
    %v1847 = vsel %vm1820, %v1718, %v1360
    %v1848 = vsel %vm1820, %v1719, %v1362
    %v1849 = vsel %vm1820, %v1720, %v1364
    %v1850 = vsel %vm1820, %v1721, %v1366
    %v1851 = vsel %vm1820, %v1722, %v1368
    %v1852 = vsel %vm1820, %v1723, %v1370
    %v1853 = vsel %vm1820, %v1724, %v1372
    %v1854 = vsel %vm1820, %v1725, %v1374
    %v1855 = vsel %vm1820, %v1726, %v1376
    %v1856 = vsel %vm1820, %v1727, %v1378
    %v1857 = vsel %vm1820, %v1728, %v1380
    %v1858 = vsel %vm1820, %v1729, %v1382
    %v1859 = vsel %vm1820, %v1730, %v1384
    %v1860 = vsel %vm1820, %v1731, %v1386
    %v1861 = vsel %vm1820, %v1732, %v1388
    %v1862 = vsel %vm1820, %v1733, %v1390
    %v1863 = vsel %vm1820, %v1734, %v1392
    %v1864 = vsel %vm1820, %v1735, %v1394
    %v1865 = vsel %vm1820, %v1736, %v1396
    %v1866 = vsel %vm1820, %v1737, %v1398
    %v1867 = vsel %vm1820, %v1738, %v1400
    %v1868 = vsel %vm1820, %v1739, %v1402
    %v1869 = vsel %vm1820, %v1740, %v1404
    %v1870 = vsel %vm1820, %v1741, %v1406
    %v1871 = vsel %vm1820, %v1742, %v1408
    %v1872 = vsel %vm1820, %v1743, %v1410
    %v1873 = vsel %vm1820, %v1744, %v1412
    %v1874 = vsel %vm1820, %v1745, %v1414
    %v1875 = vsel %vm1820, %v1746, %v1416
    %v1876 = vsel %vm1820, %v1747, %v1418
    %v1877 = vsel %vm1820, %v1748, %v1420
    %v1878 = vsel %vm1820, %v1749, %v1422
    %v1879 = vsel %vm1820, %v1750, %v1424
    %v1880 = vsel %vm1820, %v1751, %v1426
    %v1881 = vsel %vm1820, %v1752, %v1428
    %v1882 = vsel %vm1820, %v1753, %v1430
    %v1883 = vsel %vm1820, %v1754, %v1432
    %v1884 = vsel %vm1820, %v1755, %v1434
    %v1885 = vsel %vm1820, %v1756, %v1436
    %v1886 = vsel %vm1820, %v1757, %v1438
    %v1887 = vsel %vm1820, %v1758, %v1440
    %v1888 = vsel %vm1820, %v1759, %v1442
    %v1889 = vsel %vm1820, %v1760, %v1444
    %v1890 = vsel %vm1820, %v1761, %v1446
    %v1891 = vsel %vm1820, %v1762, %v1448
    %v1892 = vsel %vm1820, %v1763, %v1450
    %v1893 = vsel %vm1820, %v1764, %v1452
    %v1894 = vsel %vm1820, %v1765, %v1454
    %v1895 = vsel %vm1820, %v1766, %v1456
    %v1896 = vsel %vm1820, %v1767, %v1458
    %v1897 = vsel %vm1820, %v1768, %v1460
    %v1898 = vsel %vm1820, %v1769, %v1462
    %v1899 = vsel %vm1820, %v1770, %v1464
    %v1900 = vsel %vm1820, %v1771, %v1466
    %v1901 = vsel %vm1820, %v1772, %v1468
    %v1902 = vsel %vm1820, %v1773, %v1470
    %v1903 = vsel %vm1820, %v1774, %v1472
    %v1904 = vsel %vm1820, %v1775, %v1474
    %v1905 = vsel %vm1820, %v1776, %v1476
    %v1906 = vsel %vm1820, %v1777, %v1478
    %v1907 = vsel %vm1820, %v1778, %v1480
    %v1908 = vsel %vm1820, %v1779, %v1482
    %v1909 = vsel %vm1820, %v1780, %v1484
    %v1910 = vsel %vm1820, %v1781, %v1486
    %v1911 = vsel %vm1820, %v1782, %v1488
    %v1912 = vsel %vm1820, %v1783, %v1490
    %v1913 = vsel %vm1820, %v1784, %v1492
    %v1914 = vsel %vm1820, %v1785, %v1494
    %v1915 = vsel %vm1820, %v1786, %v1496
    %v1916 = vsel %vm1820, %v1787, %v1498
    %v1917 = vsel %vm1820, %v1788, %v1500
    %v1918 = vsel %vm1820, %v1789, %v1502
    %v1919 = vsel %vm1820, %v1790, %v1504
    %v1920 = vsel %vm1820, %v1791, %v1506
    %v1921 = vsel %vm1820, %v1792, %v1508
    %v1922 = vsel %vm1820, %v1793, %v1510
    %v1923 = vsel %vm1820, %v1794, %v1512
    %v1924 = vsel %vm1820, %v1795, %v1514
    %v1925 = vsel %vm1820, %v1796, %v1516
    %v1926 = vsel %vm1820, %v1797, %v1518
    %v1927 = vsel %vm1820, %v1798, %v1520
    %v1928 = vsel %vm1820, %v1799, %v1522
    %v1929 = vsel %vm1820, %v1800, %v1524
    %v1930 = vsel %vm1820, %v1801, %v1526
    %v1931 = vsel %vm1820, %v1802, %v1528
    %v1932 = vsel %vm1820, %v1803, %v1530
    %v1933 = vsel %vm1820, %v1804, %v1532
    %v1934 = vsel %vm1820, %v1805, %v1534
    %v1935 = vsel %vm1820, %v1806, %v1536
    %v1936 = vsel %vm1820, %v1807, %v1538
    %v1937 = vsel %vm1820, %v1808, %v1540
    %v1938 = vsel %vm1820, %v1809, %v1542
    %v1939 = vsel %vm1820, %v1810, %v1544
    %v1940 = vsel %vm1820, %v1811, %v1546
    %v1941 = vsel %vm1820, %v1812, %v1548
    %v1942 = vsel %vm1820, %v1813, %v1550
    %v1943 = vsel %vm1820, %v1814, %v1552
    %v1944 = vsel %vm1820, %v1815, %v1554
    %v1945 = vsel %vm1820, %v1816, %v1556
    %v1946 = vsel %vm1820, %v1817, %v1558
    %v1947 = vsel %vm1820, %v1818, %v1560
    %v1948 = vsel %vm1820, %v1819, %v1562
    %v1949 = vpack.c.bf16 %v1822, %v1821
    %v1950 = vpack.c.bf16 %v1824, %v1823
    %v1951 = vpack.c.bf16 %v1826, %v1825
    %v1952 = vpack.c.bf16 %v1828, %v1827
    %v1953 = vpack.c.bf16 %v1830, %v1829
    %v1954 = vpack.c.bf16 %v1832, %v1831
    %v1955 = vpack.c.bf16 %v1834, %v1833
    %v1956 = vpack.c.bf16 %v1836, %v1835
    %v1957 = vpack.c.bf16 %v1838, %v1837
    %v1958 = vpack.c.bf16 %v1840, %v1839
    %v1959 = vpack.c.bf16 %v1842, %v1841
    %v1960 = vpack.c.bf16 %v1844, %v1843
    %v1961 = vpack.c.bf16 %v1846, %v1845
    %v1962 = vpack.c.bf16 %v1848, %v1847
    %v1963 = vpack.c.bf16 %v1850, %v1849
    %v1964 = vpack.c.bf16 %v1852, %v1851
    %v1965 = vpack.c.bf16 %v1854, %v1853
    %v1966 = vpack.c.bf16 %v1856, %v1855
    %v1967 = vpack.c.bf16 %v1858, %v1857
    %v1968 = vpack.c.bf16 %v1860, %v1859
    %v1969 = vpack.c.bf16 %v1862, %v1861
    %v1970 = vpack.c.bf16 %v1864, %v1863
    %v1971 = vpack.c.bf16 %v1866, %v1865
    %v1972 = vpack.c.bf16 %v1868, %v1867
    %v1973 = vpack.c.bf16 %v1870, %v1869
    %v1974 = vpack.c.bf16 %v1872, %v1871
    %v1975 = vpack.c.bf16 %v1874, %v1873
    %v1976 = vpack.c.bf16 %v1876, %v1875
    %v1977 = vpack.c.bf16 %v1878, %v1877
    %v1978 = vpack.c.bf16 %v1880, %v1879
    %v1979 = vpack.c.bf16 %v1882, %v1881
    %v1980 = vpack.c.bf16 %v1884, %v1883
    %v1981 = vpack.c.bf16 %v1886, %v1885
    %v1982 = vpack.c.bf16 %v1888, %v1887
    %v1983 = vpack.c.bf16 %v1890, %v1889
    %v1984 = vpack.c.bf16 %v1892, %v1891
    %v1985 = vpack.c.bf16 %v1894, %v1893
    %v1986 = vpack.c.bf16 %v1896, %v1895
    %v1987 = vpack.c.bf16 %v1898, %v1897
    %v1988 = vpack.c.bf16 %v1900, %v1899
    %v1989 = vpack.c.bf16 %v1902, %v1901
    %v1990 = vpack.c.bf16 %v1904, %v1903
    %v1991 = vpack.c.bf16 %v1906, %v1905
    %v1992 = vpack.c.bf16 %v1908, %v1907
    %v1993 = vpack.c.bf16 %v1910, %v1909
    %v1994 = vpack.c.bf16 %v1912, %v1911
    %v1995 = vpack.c.bf16 %v1914, %v1913
    %v1996 = vpack.c.bf16 %v1916, %v1915
    %v1997 = vpack.c.bf16 %v1918, %v1917
    %v1998 = vpack.c.bf16 %v1920, %v1919
    %v1999 = vpack.c.bf16 %v1922, %v1921
    %v2000 = vpack.c.bf16 %v1924, %v1923
    %v2001 = vpack.c.bf16 %v1926, %v1925
    %v2002 = vpack.c.bf16 %v1928, %v1927
    %v2003 = vpack.c.bf16 %v1930, %v1929
    %v2004 = vpack.c.bf16 %v1932, %v1931
    %v2005 = vpack.c.bf16 %v1934, %v1933
    %v2006 = vpack.c.bf16 %v1936, %v1935
    %v2007 = vpack.c.bf16 %v1938, %v1937
    %v2008 = vpack.c.bf16 %v1940, %v1939
    %v2009 = vpack.c.bf16 %v1942, %v1941
    %v2010 = vpack.c.bf16 %v1944, %v1943
    %v2011 = vpack.c.bf16 %v1946, %v1945
    %v2012 = vpack.c.bf16 %v1948, %v1947
    %v2013 = vld [vmem:[%s2] sm:$0xf]
    %v2014 = vld [vmem:[%s2 + $0x4] sm:$0x1]
    %v2015 = vld [vmem:[%s3] sm:$0x1]
    %v2017 = vlaneseq
    %v2018 = vshrl.u32 %v2017, 7
    %v2019 = vsub.s32 0, %v2018
    %v2020 = vrot.slane %v2015, %v2019
    %v2024 = vunpack.c.l.b16 %v2013
    %v2025 = vunpack.c.l.b16 %v2014
    %v2026 = vpack.c.b16 %v2025, %v2024
    %vm2027 = vcmask 72704
    %v2029 = vsel %vm2027, %v1949, 0
    %v2032 = vsel %vm2027, %v1950, 0
    %v2035 = vsel %vm2027, %v1951, 0
    %v2038 = vsel %vm2027, %v1952, 0
    %v2041 = vsel %vm2027, %v1953, 0
    %v2044 = vsel %vm2027, %v1954, 0
    %v2047 = vsel %vm2027, %v1955, 0
    %v2050 = vsel %vm2027, %v1956, 0
    %v2053 = vsel %vm2027, %v1957, 0
    %v2056 = vsel %vm2027, %v1958, 0
    %v2059 = vsel %vm2027, %v1959, 0
    %v2062 = vsel %vm2027, %v1960, 0
    %v2065 = vsel %vm2027, %v1961, 0
    %v2068 = vsel %vm2027, %v1962, 0
    %v2071 = vsel %vm2027, %v1963, 0
    %v2074 = vsel %vm2027, %v1964, 0
    %v2077 = vsel %vm2027, %v1965, 0
    %v2080 = vsel %vm2027, %v1966, 0
    %v2083 = vsel %vm2027, %v1967, 0
    %v2086 = vsel %vm2027, %v1968, 0
    %v2089 = vsel %vm2027, %v1969, 0
    %v2092 = vsel %vm2027, %v1970, 0
    %v2095 = vsel %vm2027, %v1971, 0
    %v2098 = vsel %vm2027, %v1972, 0
    %v2101 = vsel %vm2027, %v1973, 0
    %v2104 = vsel %vm2027, %v1974, 0
    %v2107 = vsel %vm2027, %v1975, 0
    %v2110 = vsel %vm2027, %v1976, 0
    %v2113 = vsel %vm2027, %v1977, 0
    %v2116 = vsel %vm2027, %v1978, 0
    %v2119 = vsel %vm2027, %v1979, 0
    %v2122 = vsel %vm2027, %v1980, 0
    %v2125 = vsel %vm2027, %v1981, 0
    %v2128 = vsel %vm2027, %v1982, 0
    %v2131 = vsel %vm2027, %v1983, 0
    %v2134 = vsel %vm2027, %v1984, 0
    %v2137 = vsel %vm2027, %v1985, 0
    %v2140 = vsel %vm2027, %v1986, 0
    %v2143 = vsel %vm2027, %v1987, 0
    %v2146 = vsel %vm2027, %v1988, 0
    %v2149 = vsel %vm2027, %v1989, 0
    %v2152 = vsel %vm2027, %v1990, 0
    %v2155 = vsel %vm2027, %v1991, 0
    %v2158 = vsel %vm2027, %v1992, 0
    %v2161 = vsel %vm2027, %v1993, 0
    %v2164 = vsel %vm2027, %v1994, 0
    %v2167 = vsel %vm2027, %v1995, 0
    %v2170 = vsel %vm2027, %v1996, 0
    %v2173 = vsel %vm2027, %v1997, 0
    %v2176 = vsel %vm2027, %v1998, 0
    %v2179 = vsel %vm2027, %v1999, 0
    %v2182 = vsel %vm2027, %v2000, 0
    %v2185 = vsel %vm2027, %v2001, 0
    %v2188 = vsel %vm2027, %v2002, 0
    %v2191 = vsel %vm2027, %v2003, 0
    %v2194 = vsel %vm2027, %v2004, 0
    %v2197 = vsel %vm2027, %v2005, 0
    %v2200 = vsel %vm2027, %v2006, 0
    %v2203 = vsel %vm2027, %v2007, 0
    %v2206 = vsel %vm2027, %v2008, 0
    %v2209 = vsel %vm2027, %v2009, 0
    %v2212 = vsel %vm2027, %v2010, 0
    %v2215 = vsel %vm2027, %v2011, 0
    %v2218 = vsel %vm2027, %v2012, 0
    %vm2220 = vcmask 1043456
    %vm2221 = vcmask 1044480
    %v2222 = vsel %vm2220, 4294967295, 65535
    %v2223 = vsel %vm2221, %v2222, 0
    %v2225 = vand.u32 %v2026, %v2223
    %2227 = vmatprep.subr.bf16.mxu0 0
    %2228 = vmatpush1.bf16.msra.mxu0 %v2225
    %2229 = vmatprep.subr.bf16.mxu0 0
    %2230 = vmatpush1.bf16.msra.mxu0 0
    %2231 = vmatprep.subr.bf16.mxu0 0
    %2232 = vmatpush1.bf16.msra.mxu0 0
    %2233 = vmatprep.subr.bf16.mxu0 0
    %2234 = vmatpush1.bf16.msra.mxu0 0
    %2235 = vmatprep.subr.bf16.mxu0 0
    %2236 = vmatpush1.bf16.msra.mxu0 0
    %2237 = vmatprep.subr.bf16.mxu0 0
    %2238 = vmatpush1.bf16.msra.mxu0 0
    %2239 = vmatprep.subr.bf16.mxu0 0
    %2240 = vmatpush1.bf16.msra.mxu0 0
    %2241 = vmatprep.subr.bf16.mxu0 0
    %2242 = vmatpush1.bf16.msra.mxu0 0
    %2243 = vmatprep.subr.bf16.mxu0 0
    %2244 = vmatpush1.bf16.msra.mxu0 0
    %2245 = vmatprep.subr.bf16.mxu0 0
    %2246 = vmatpush1.bf16.msra.mxu0 0
    %2247 = vmatprep.subr.bf16.mxu0 0
    %2248 = vmatpush1.bf16.msra.mxu0 0
    %2249 = vmatprep.subr.bf16.mxu0 0
    %2250 = vmatpush1.bf16.msra.mxu0 0
    %2251 = vmatprep.subr.bf16.mxu0 0
    %2252 = vmatpush1.bf16.msra.mxu0 0
    %2253 = vmatprep.subr.bf16.mxu0 0
    %2254 = vmatpush1.bf16.msra.mxu0 0
    %2255 = vmatprep.subr.bf16.mxu0 0
    %2256 = vmatpush1.bf16.msra.mxu0 0
    %2257 = vmatprep.subr.bf16.mxu0 0
    %2258 = vmatpush1.bf16.msra.mxu0 0
    %2259 = vmatprep.mubr.bf16.mxu0 0
    %2260 = vmatmul.mubr.bf16.gmra.mrb[0].mxu0 %v2029
    %v2261 = vpop.f32.mrb[0].mxu0
    %v2262 = vadd.f32 %v2020, %v2261
    %v2263 = vpop.f32.mrb[0].mxu0
    %v2264 = vpop.f32.mrb[0].mxu0
    %v2265 = vadd.f32 %v2020, %v2264
    %v2266 = vpop.f32.mrb[0].mxu0
    %2267 = vmatprep.mubr.bf16.mxu0 0
    %2268 = vmatmul.mubr.bf16.gmra.mrb[0].mxu0 %v2032
    %v2269 = vpop.f32.mrb[0].mxu0
    %v2270 = vadd.f32 %v2020, %v2269
    %v2271 = vpop.f32.mrb[0].mxu0
    %v2272 = vpop.f32.mrb[0].mxu0
    %v2273 = vadd.f32 %v2020, %v2272
    %v2274 = vpop.f32.mrb[0].mxu0
    %2275 = vmatprep.mubr.bf16.mxu0 0
    %2276 = vmatmul.mubr.bf16.gmra.mrb[0].mxu0 %v2035
    %v2277 = vpop.f32.mrb[0].mxu0
    %v2278 = vadd.f32 %v2020, %v2277
    %v2279 = vpop.f32.mrb[0].mxu0
    %v2280 = vpop.f32.mrb[0].mxu0
    %v2281 = vadd.f32 %v2020, %v2280
    %v2282 = vpop.f32.mrb[0].mxu0
    %2283 = vmatprep.mubr.bf16.mxu0 0
    %2284 = vmatmul.mubr.bf16.gmra.mrb[0].mxu0 %v2038
    %v2285 = vpop.f32.mrb[0].mxu0
    %v2286 = vadd.f32 %v2020, %v2285
    %v2287 = vpop.f32.mrb[0].mxu0
    %v2288 = vpop.f32.mrb[0].mxu0
    %v2289 = vadd.f32 %v2020, %v2288
    %v2290 = vpop.f32.mrb[0].mxu0
    %2291 = vmatprep.mubr.bf16.mxu0 0
    %2292 = vmatmul.mubr.bf16.gmra.mrb[0].mxu0 %v2041
    %v2293 = vpop.f32.mrb[0].mxu0
    %v2294 = vadd.f32 %v2020, %v2293
    %v2295 = vpop.f32.mrb[0].mxu0
    %v2296 = vpop.f32.mrb[0].mxu0
    %v2297 = vadd.f32 %v2020, %v2296
    %v2298 = vpop.f32.mrb[0].mxu0
    %2299 = vmatprep.mubr.bf16.mxu0 0
    %2300 = vmatmul.mubr.bf16.gmra.mrb[0].mxu0 %v2044
    %v2301 = vpop.f32.mrb[0].mxu0
    %v2302 = vadd.f32 %v2020, %v2301
    %v2303 = vpop.f32.mrb[0].mxu0
    %v2304 = vpop.f32.mrb[0].mxu0
    %v2305 = vadd.f32 %v2020, %v2304
    %v2306 = vpop.f32.mrb[0].mxu0
    %2307 = vmatprep.mubr.bf16.mxu0 0
    %2308 = vmatmul.mubr.bf16.gmra.mrb[0].mxu0 %v2047
    %v2309 = vpop.f32.mrb[0].mxu0
    %v2310 = vadd.f32 %v2020, %v2309
    %v2311 = vpop.f32.mrb[0].mxu0
    %v2312 = vpop.f32.mrb[0].mxu0
    %v2313 = vadd.f32 %v2020, %v2312
    %v2314 = vpop.f32.mrb[0].mxu0
    %2315 = vmatprep.mubr.bf16.mxu0 0
    %2316 = vmatmul.mubr.bf16.gmra.mrb[0].mxu0 %v2050
    %v2317 = vpop.f32.mrb[0].mxu0
    %v2318 = vadd.f32 %v2020, %v2317
    %v2319 = vpop.f32.mrb[0].mxu0
    %v2320 = vpop.f32.mrb[0].mxu0
    %v2321 = vadd.f32 %v2020, %v2320
    %v2322 = vpop.f32.mrb[0].mxu0
    %2323 = vmatprep.mubr.bf16.mxu0 0
    %2324 = vmatmul.mubr.bf16.gmra.mrb[0].mxu0 %v2053
    %v2325 = vpop.f32.mrb[0].mxu0
    %v2326 = vadd.f32 %v2020, %v2325
    %v2327 = vpop.f32.mrb[0].mxu0
    %v2328 = vpop.f32.mrb[0].mxu0
    %v2329 = vadd.f32 %v2020, %v2328
    %v2330 = vpop.f32.mrb[0].mxu0
    %2331 = vmatprep.mubr.bf16.mxu0 0
    %2332 = vmatmul.mubr.bf16.gmra.mrb[0].mxu0 %v2056
    %v2333 = vpop.f32.mrb[0].mxu0
    %v2334 = vadd.f32 %v2020, %v2333
    %v2335 = vpop.f32.mrb[0].mxu0
    %v2336 = vpop.f32.mrb[0].mxu0
    %v2337 = vadd.f32 %v2020, %v2336
    %v2338 = vpop.f32.mrb[0].mxu0
    %2339 = vmatprep.mubr.bf16.mxu0 0
    %2340 = vmatmul.mubr.bf16.gmra.mrb[0].mxu0 %v2059
    %v2341 = vpop.f32.mrb[0].mxu0
    %v2342 = vadd.f32 %v2020, %v2341
    %v2343 = vpop.f32.mrb[0].mxu0
    %v2344 = vpop.f32.mrb[0].mxu0
    %v2345 = vadd.f32 %v2020, %v2344
    %v2346 = vpop.f32.mrb[0].mxu0
    %2347 = vmatprep.mubr.bf16.mxu0 0
    %2348 = vmatmul.mubr.bf16.gmra.mrb[0].mxu0 %v2062
    %v2349 = vpop.f32.mrb[0].mxu0
    %v2350 = vadd.f32 %v2020, %v2349
    %v2351 = vpop.f32.mrb[0].mxu0
    %v2352 = vpop.f32.mrb[0].mxu0
    %v2353 = vadd.f32 %v2020, %v2352
    %v2354 = vpop.f32.mrb[0].mxu0
    %2355 = vmatprep.mubr.bf16.mxu0 0
    %2356 = vmatmul.mubr.bf16.gmra.mrb[0].mxu0 %v2065
    %v2357 = vpop.f32.mrb[0].mxu0
    %v2358 = vadd.f32 %v2020, %v2357
    %v2359 = vpop.f32.mrb[0].mxu0
    %v2360 = vpop.f32.mrb[0].mxu0
    %v2361 = vadd.f32 %v2020, %v2360
    %v2362 = vpop.f32.mrb[0].mxu0
    %2363 = vmatprep.mubr.bf16.mxu0 0
    %2364 = vmatmul.mubr.bf16.gmra.mrb[0].mxu0 %v2068
    %v2365 = vpop.f32.mrb[0].mxu0
    %v2366 = vadd.f32 %v2020, %v2365
    %v2367 = vpop.f32.mrb[0].mxu0
    %v2368 = vpop.f32.mrb[0].mxu0
    %v2369 = vadd.f32 %v2020, %v2368
    %v2370 = vpop.f32.mrb[0].mxu0
    %2371 = vmatprep.mubr.bf16.mxu0 0
    %2372 = vmatmul.mubr.bf16.gmra.mrb[0].mxu0 %v2071
    %v2373 = vpop.f32.mrb[0].mxu0
    %v2374 = vadd.f32 %v2020, %v2373
    %v2375 = vpop.f32.mrb[0].mxu0
    %v2376 = vpop.f32.mrb[0].mxu0
    %v2377 = vadd.f32 %v2020, %v2376
    %v2378 = vpop.f32.mrb[0].mxu0
    %2379 = vmatprep.mubr.bf16.mxu0 0
    %2380 = vmatmul.mubr.bf16.gmra.mrb[0].mxu0 %v2074
    %v2381 = vpop.f32.mrb[0].mxu0
    %v2382 = vadd.f32 %v2020, %v2381
    %v2383 = vpop.f32.mrb[0].mxu0
    %v2384 = vpop.f32.mrb[0].mxu0
    %v2385 = vadd.f32 %v2020, %v2384
    %v2386 = vpop.f32.mrb[0].mxu0
    %2387 = vmatprep.mubr.bf16.mxu0 0
    %2388 = vmatmul.mubr.bf16.gmra.mrb[0].mxu0 %v2077
    %v2389 = vpop.f32.mrb[0].mxu0
    %v2390 = vadd.f32 %v2020, %v2389
    %v2391 = vpop.f32.mrb[0].mxu0
    %v2392 = vpop.f32.mrb[0].mxu0
    %v2393 = vadd.f32 %v2020, %v2392
    %v2394 = vpop.f32.mrb[0].mxu0
    %2395 = vmatprep.mubr.bf16.mxu0 0
    %2396 = vmatmul.mubr.bf16.gmra.mrb[0].mxu0 %v2080
    %v2397 = vpop.f32.mrb[0].mxu0
    %v2398 = vadd.f32 %v2020, %v2397
    %v2399 = vpop.f32.mrb[0].mxu0
    %v2400 = vpop.f32.mrb[0].mxu0
    %v2401 = vadd.f32 %v2020, %v2400
    %v2402 = vpop.f32.mrb[0].mxu0
    %2403 = vmatprep.mubr.bf16.mxu0 0
    %2404 = vmatmul.mubr.bf16.gmra.mrb[0].mxu0 %v2083
    %v2405 = vpop.f32.mrb[0].mxu0
    %v2406 = vadd.f32 %v2020, %v2405
    %v2407 = vpop.f32.mrb[0].mxu0
    %v2408 = vpop.f32.mrb[0].mxu0
    %v2409 = vadd.f32 %v2020, %v2408
    %v2410 = vpop.f32.mrb[0].mxu0
    %2411 = vmatprep.mubr.bf16.mxu0 0
    %2412 = vmatmul.mubr.bf16.gmra.mrb[0].mxu0 %v2086
    %v2413 = vpop.f32.mrb[0].mxu0
    %v2414 = vadd.f32 %v2020, %v2413
    %v2415 = vpop.f32.mrb[0].mxu0
    %v2416 = vpop.f32.mrb[0].mxu0
    %v2417 = vadd.f32 %v2020, %v2416
    %v2418 = vpop.f32.mrb[0].mxu0
    %2419 = vmatprep.mubr.bf16.mxu0 0
    %2420 = vmatmul.mubr.bf16.gmra.mrb[0].mxu0 %v2089
    %v2421 = vpop.f32.mrb[0].mxu0
    %v2422 = vadd.f32 %v2020, %v2421
    %v2423 = vpop.f32.mrb[0].mxu0
    %v2424 = vpop.f32.mrb[0].mxu0
    %v2425 = vadd.f32 %v2020, %v2424
    %v2426 = vpop.f32.mrb[0].mxu0
    %2427 = vmatprep.mubr.bf16.mxu0 0
    %2428 = vmatmul.mubr.bf16.gmra.mrb[0].mxu0 %v2092
    %v2429 = vpop.f32.mrb[0].mxu0
    %v2430 = vadd.f32 %v2020, %v2429
    %v2431 = vpop.f32.mrb[0].mxu0
    %v2432 = vpop.f32.mrb[0].mxu0
    %v2433 = vadd.f32 %v2020, %v2432
    %v2434 = vpop.f32.mrb[0].mxu0
    %2435 = vmatprep.mubr.bf16.mxu0 0
    %2436 = vmatmul.mubr.bf16.gmra.mrb[0].mxu0 %v2095
    %v2437 = vpop.f32.mrb[0].mxu0
    %v2438 = vadd.f32 %v2020, %v2437
    %v2439 = vpop.f32.mrb[0].mxu0
    %v2440 = vpop.f32.mrb[0].mxu0
    %v2441 = vadd.f32 %v2020, %v2440
    %v2442 = vpop.f32.mrb[0].mxu0
    %2443 = vmatprep.mubr.bf16.mxu0 0
    %2444 = vmatmul.mubr.bf16.gmra.mrb[0].mxu0 %v2098
    %v2445 = vpop.f32.mrb[0].mxu0
    %v2446 = vadd.f32 %v2020, %v2445
    %v2447 = vpop.f32.mrb[0].mxu0
    %v2448 = vpop.f32.mrb[0].mxu0
    %v2449 = vadd.f32 %v2020, %v2448
    %v2450 = vpop.f32.mrb[0].mxu0
    %2451 = vmatprep.mubr.bf16.mxu0 0
    %2452 = vmatmul.mubr.bf16.gmra.mrb[0].mxu0 %v2101
    %v2453 = vpop.f32.mrb[0].mxu0
    %v2454 = vadd.f32 %v2020, %v2453
    %v2455 = vpop.f32.mrb[0].mxu0
    %v2456 = vpop.f32.mrb[0].mxu0
    %v2457 = vadd.f32 %v2020, %v2456
    %v2458 = vpop.f32.mrb[0].mxu0
    %2459 = vmatprep.mubr.bf16.mxu0 0
    %2460 = vmatmul.mubr.bf16.gmra.mrb[0].mxu0 %v2104
    %v2461 = vpop.f32.mrb[0].mxu0
    %v2462 = vadd.f32 %v2020, %v2461
    %v2463 = vpop.f32.mrb[0].mxu0
    %v2464 = vpop.f32.mrb[0].mxu0
    %v2465 = vadd.f32 %v2020, %v2464
    %v2466 = vpop.f32.mrb[0].mxu0
    %2467 = vmatprep.mubr.bf16.mxu0 0
    %2468 = vmatmul.mubr.bf16.gmra.mrb[0].mxu0 %v2107
    %v2469 = vpop.f32.mrb[0].mxu0
    %v2470 = vadd.f32 %v2020, %v2469
    %v2471 = vpop.f32.mrb[0].mxu0
    %v2472 = vpop.f32.mrb[0].mxu0
    %v2473 = vadd.f32 %v2020, %v2472
    %v2474 = vpop.f32.mrb[0].mxu0
    %2475 = vmatprep.mubr.bf16.mxu0 0
    %2476 = vmatmul.mubr.bf16.gmra.mrb[0].mxu0 %v2110
    %v2477 = vpop.f32.mrb[0].mxu0
    %v2478 = vadd.f32 %v2020, %v2477
    %v2479 = vpop.f32.mrb[0].mxu0
    %v2480 = vpop.f32.mrb[0].mxu0
    %v2481 = vadd.f32 %v2020, %v2480
    %v2482 = vpop.f32.mrb[0].mxu0
    %2483 = vmatprep.mubr.bf16.mxu0 0
    %2484 = vmatmul.mubr.bf16.gmra.mrb[0].mxu0 %v2113
    %v2485 = vpop.f32.mrb[0].mxu0
    %v2486 = vadd.f32 %v2020, %v2485
    %v2487 = vpop.f32.mrb[0].mxu0
    %v2488 = vpop.f32.mrb[0].mxu0
    %v2489 = vadd.f32 %v2020, %v2488
    %v2490 = vpop.f32.mrb[0].mxu0
    %2491 = vmatprep.mubr.bf16.mxu0 0
    %2492 = vmatmul.mubr.bf16.gmra.mrb[0].mxu0 %v2116
    %v2493 = vpop.f32.mrb[0].mxu0
    %v2494 = vadd.f32 %v2020, %v2493
    %v2495 = vpop.f32.mrb[0].mxu0
    %v2496 = vpop.f32.mrb[0].mxu0
    %v2497 = vadd.f32 %v2020, %v2496
    %v2498 = vpop.f32.mrb[0].mxu0
    %2499 = vmatprep.mubr.bf16.mxu0 0
    %2500 = vmatmul.mubr.bf16.gmra.mrb[0].mxu0 %v2119
    %v2501 = vpop.f32.mrb[0].mxu0
    %v2502 = vadd.f32 %v2020, %v2501
    %v2503 = vpop.f32.mrb[0].mxu0
    %v2504 = vpop.f32.mrb[0].mxu0
    %v2505 = vadd.f32 %v2020, %v2504
    %v2506 = vpop.f32.mrb[0].mxu0
    %2507 = vmatprep.mubr.bf16.mxu0 0
    %2508 = vmatmul.mubr.bf16.gmra.mrb[0].mxu0 %v2122
    %v2509 = vpop.f32.mrb[0].mxu0
    %v2510 = vadd.f32 %v2020, %v2509
    %v2511 = vpop.f32.mrb[0].mxu0
    %v2512 = vpop.f32.mrb[0].mxu0
    %v2513 = vadd.f32 %v2020, %v2512
    %v2514 = vpop.f32.mrb[0].mxu0
    %2515 = vmatprep.mubr.bf16.mxu0 0
    %2516 = vmatmul.mubr.bf16.gmra.mrb[0].mxu0 %v2125
    %v2517 = vpop.f32.mrb[0].mxu0
    %v2518 = vadd.f32 %v2020, %v2517
    %v2519 = vpop.f32.mrb[0].mxu0
    %v2520 = vpop.f32.mrb[0].mxu0
    %v2521 = vadd.f32 %v2020, %v2520
    %v2522 = vpop.f32.mrb[0].mxu0
    %2523 = vmatprep.mubr.bf16.mxu0 0
    %2524 = vmatmul.mubr.bf16.gmra.mrb[0].mxu0 %v2128
    %v2525 = vpop.f32.mrb[0].mxu0
    %v2526 = vadd.f32 %v2020, %v2525
    %v2527 = vpop.f32.mrb[0].mxu0
    %v2528 = vpop.f32.mrb[0].mxu0
    %v2529 = vadd.f32 %v2020, %v2528
    %v2530 = vpop.f32.mrb[0].mxu0
    %2531 = vmatprep.mubr.bf16.mxu0 0
    %2532 = vmatmul.mubr.bf16.gmra.mrb[0].mxu0 %v2131
    %v2533 = vpop.f32.mrb[0].mxu0
    %v2534 = vadd.f32 %v2020, %v2533
    %v2535 = vpop.f32.mrb[0].mxu0
    %v2536 = vpop.f32.mrb[0].mxu0
    %v2537 = vadd.f32 %v2020, %v2536
    %v2538 = vpop.f32.mrb[0].mxu0
    %2539 = vmatprep.mubr.bf16.mxu0 0
    %2540 = vmatmul.mubr.bf16.gmra.mrb[0].mxu0 %v2134
    %v2541 = vpop.f32.mrb[0].mxu0
    %v2542 = vadd.f32 %v2020, %v2541
    %v2543 = vpop.f32.mrb[0].mxu0
    %v2544 = vpop.f32.mrb[0].mxu0
    %v2545 = vadd.f32 %v2020, %v2544
    %v2546 = vpop.f32.mrb[0].mxu0
    %2547 = vmatprep.mubr.bf16.mxu0 0
    %2548 = vmatmul.mubr.bf16.gmra.mrb[0].mxu0 %v2137
    %v2549 = vpop.f32.mrb[0].mxu0
    %v2550 = vadd.f32 %v2020, %v2549
    %v2551 = vpop.f32.mrb[0].mxu0
    %v2552 = vpop.f32.mrb[0].mxu0
    %v2553 = vadd.f32 %v2020, %v2552
    %v2554 = vpop.f32.mrb[0].mxu0
    %2555 = vmatprep.mubr.bf16.mxu0 0
    %2556 = vmatmul.mubr.bf16.gmra.mrb[0].mxu0 %v2140
    %v2557 = vpop.f32.mrb[0].mxu0
    %v2558 = vadd.f32 %v2020, %v2557
    %v2559 = vpop.f32.mrb[0].mxu0
    %v2560 = vpop.f32.mrb[0].mxu0
    %v2561 = vadd.f32 %v2020, %v2560
    %v2562 = vpop.f32.mrb[0].mxu0
    %2563 = vmatprep.mubr.bf16.mxu0 0
    %2564 = vmatmul.mubr.bf16.gmra.mrb[0].mxu0 %v2143
    %v2565 = vpop.f32.mrb[0].mxu0
    %v2566 = vadd.f32 %v2020, %v2565
    %v2567 = vpop.f32.mrb[0].mxu0
    %v2568 = vpop.f32.mrb[0].mxu0
    %v2569 = vadd.f32 %v2020, %v2568
    %v2570 = vpop.f32.mrb[0].mxu0
    %2571 = vmatprep.mubr.bf16.mxu0 0
    %2572 = vmatmul.mubr.bf16.gmra.mrb[0].mxu0 %v2146
    %v2573 = vpop.f32.mrb[0].mxu0
    %v2574 = vadd.f32 %v2020, %v2573
    %v2575 = vpop.f32.mrb[0].mxu0
    %v2576 = vpop.f32.mrb[0].mxu0
    %v2577 = vadd.f32 %v2020, %v2576
    %v2578 = vpop.f32.mrb[0].mxu0
    %2579 = vmatprep.mubr.bf16.mxu0 0
    %2580 = vmatmul.mubr.bf16.gmra.mrb[0].mxu0 %v2149
    %v2581 = vpop.f32.mrb[0].mxu0
    %v2582 = vadd.f32 %v2020, %v2581
    %v2583 = vpop.f32.mrb[0].mxu0
    %v2584 = vpop.f32.mrb[0].mxu0
    %v2585 = vadd.f32 %v2020, %v2584
    %v2586 = vpop.f32.mrb[0].mxu0
    %2587 = vmatprep.mubr.bf16.mxu0 0
    %2588 = vmatmul.mubr.bf16.gmra.mrb[0].mxu0 %v2152
    %v2589 = vpop.f32.mrb[0].mxu0
    %v2590 = vadd.f32 %v2020, %v2589
    %v2591 = vpop.f32.mrb[0].mxu0
    %v2592 = vpop.f32.mrb[0].mxu0
    %v2593 = vadd.f32 %v2020, %v2592
    %v2594 = vpop.f32.mrb[0].mxu0
    %2595 = vmatprep.mubr.bf16.mxu0 0
    %2596 = vmatmul.mubr.bf16.gmra.mrb[0].mxu0 %v2155
    %v2597 = vpop.f32.mrb[0].mxu0
    %v2598 = vadd.f32 %v2020, %v2597
    %v2599 = vpop.f32.mrb[0].mxu0
    %v2600 = vpop.f32.mrb[0].mxu0
    %v2601 = vadd.f32 %v2020, %v2600
    %v2602 = vpop.f32.mrb[0].mxu0
    %2603 = vmatprep.mubr.bf16.mxu0 0
    %2604 = vmatmul.mubr.bf16.gmra.mrb[0].mxu0 %v2158
    %v2605 = vpop.f32.mrb[0].mxu0
    %v2606 = vadd.f32 %v2020, %v2605
    %v2607 = vpop.f32.mrb[0].mxu0
    %v2608 = vpop.f32.mrb[0].mxu0
    %v2609 = vadd.f32 %v2020, %v2608
    %v2610 = vpop.f32.mrb[0].mxu0
    %2611 = vmatprep.mubr.bf16.mxu0 0
    %2612 = vmatmul.mubr.bf16.gmra.mrb[0].mxu0 %v2161
    %v2613 = vpop.f32.mrb[0].mxu0
    %v2614 = vadd.f32 %v2020, %v2613
    %v2615 = vpop.f32.mrb[0].mxu0
    %v2616 = vpop.f32.mrb[0].mxu0
    %v2617 = vadd.f32 %v2020, %v2616
    %v2618 = vpop.f32.mrb[0].mxu0
    %2619 = vmatprep.mubr.bf16.mxu0 0
    %2620 = vmatmul.mubr.bf16.gmra.mrb[0].mxu0 %v2164
    %v2621 = vpop.f32.mrb[0].mxu0
    %v2622 = vadd.f32 %v2020, %v2621
    %v2623 = vpop.f32.mrb[0].mxu0
    %v2624 = vpop.f32.mrb[0].mxu0
    %v2625 = vadd.f32 %v2020, %v2624
    %v2626 = vpop.f32.mrb[0].mxu0
    %2627 = vmatprep.mubr.bf16.mxu0 0
    %2628 = vmatmul.mubr.bf16.gmra.mrb[0].mxu0 %v2167
    %v2629 = vpop.f32.mrb[0].mxu0
    %v2630 = vadd.f32 %v2020, %v2629
    %v2631 = vpop.f32.mrb[0].mxu0
    %v2632 = vpop.f32.mrb[0].mxu0
    %v2633 = vadd.f32 %v2020, %v2632
    %v2634 = vpop.f32.mrb[0].mxu0
    %2635 = vmatprep.mubr.bf16.mxu0 0
    %2636 = vmatmul.mubr.bf16.gmra.mrb[0].mxu0 %v2170
    %v2637 = vpop.f32.mrb[0].mxu0
    %v2638 = vadd.f32 %v2020, %v2637
    %v2639 = vpop.f32.mrb[0].mxu0
    %v2640 = vpop.f32.mrb[0].mxu0
    %v2641 = vadd.f32 %v2020, %v2640
    %v2642 = vpop.f32.mrb[0].mxu0
    %2643 = vmatprep.mubr.bf16.mxu0 0
    %2644 = vmatmul.mubr.bf16.gmra.mrb[0].mxu0 %v2173
    %v2645 = vpop.f32.mrb[0].mxu0
    %v2646 = vadd.f32 %v2020, %v2645
    %v2647 = vpop.f32.mrb[0].mxu0
    %v2648 = vpop.f32.mrb[0].mxu0
    %v2649 = vadd.f32 %v2020, %v2648
    %v2650 = vpop.f32.mrb[0].mxu0
    %2651 = vmatprep.mubr.bf16.mxu0 0
    %2652 = vmatmul.mubr.bf16.gmra.mrb[0].mxu0 %v2176
    %v2653 = vpop.f32.mrb[0].mxu0
    %v2654 = vadd.f32 %v2020, %v2653
    %v2655 = vpop.f32.mrb[0].mxu0
    %v2656 = vpop.f32.mrb[0].mxu0
    %v2657 = vadd.f32 %v2020, %v2656
    %v2658 = vpop.f32.mrb[0].mxu0
    %2659 = vmatprep.mubr.bf16.mxu0 0
    %2660 = vmatmul.mubr.bf16.gmra.mrb[0].mxu0 %v2179
    %v2661 = vpop.f32.mrb[0].mxu0
    %v2662 = vadd.f32 %v2020, %v2661
    %v2663 = vpop.f32.mrb[0].mxu0
    %v2664 = vpop.f32.mrb[0].mxu0
    %v2665 = vadd.f32 %v2020, %v2664
    %v2666 = vpop.f32.mrb[0].mxu0
    %2667 = vmatprep.mubr.bf16.mxu0 0
    %2668 = vmatmul.mubr.bf16.gmra.mrb[0].mxu0 %v2182
    %v2669 = vpop.f32.mrb[0].mxu0
    %v2670 = vadd.f32 %v2020, %v2669
    %v2671 = vpop.f32.mrb[0].mxu0
    %v2672 = vpop.f32.mrb[0].mxu0
    %v2673 = vadd.f32 %v2020, %v2672
    %v2674 = vpop.f32.mrb[0].mxu0
    %2675 = vmatprep.mubr.bf16.mxu0 0
    %2676 = vmatmul.mubr.bf16.gmra.mrb[0].mxu0 %v2185
    %v2677 = vpop.f32.mrb[0].mxu0
    %v2678 = vadd.f32 %v2020, %v2677
    %v2679 = vpop.f32.mrb[0].mxu0
    %v2680 = vpop.f32.mrb[0].mxu0
    %v2681 = vadd.f32 %v2020, %v2680
    %v2682 = vpop.f32.mrb[0].mxu0
    %2683 = vmatprep.mubr.bf16.mxu0 0
    %2684 = vmatmul.mubr.bf16.gmra.mrb[0].mxu0 %v2188
    %v2685 = vpop.f32.mrb[0].mxu0
    %v2686 = vadd.f32 %v2020, %v2685
    %v2687 = vpop.f32.mrb[0].mxu0
    %v2688 = vpop.f32.mrb[0].mxu0
    %v2689 = vadd.f32 %v2020, %v2688
    %v2690 = vpop.f32.mrb[0].mxu0
    %2691 = vmatprep.mubr.bf16.mxu0 0
    %2692 = vmatmul.mubr.bf16.gmra.mrb[0].mxu0 %v2191
    %v2693 = vpop.f32.mrb[0].mxu0
    %v2694 = vadd.f32 %v2020, %v2693
    %v2695 = vpop.f32.mrb[0].mxu0
    %v2696 = vpop.f32.mrb[0].mxu0
    %v2697 = vadd.f32 %v2020, %v2696
    %v2698 = vpop.f32.mrb[0].mxu0
    %2699 = vmatprep.mubr.bf16.mxu0 0
    %2700 = vmatmul.mubr.bf16.gmra.mrb[0].mxu0 %v2194
    %v2701 = vpop.f32.mrb[0].mxu0
    %v2702 = vadd.f32 %v2020, %v2701
    %v2703 = vpop.f32.mrb[0].mxu0
    %v2704 = vpop.f32.mrb[0].mxu0
    %v2705 = vadd.f32 %v2020, %v2704
    %v2706 = vpop.f32.mrb[0].mxu0
    %2707 = vmatprep.mubr.bf16.mxu0 0
    %2708 = vmatmul.mubr.bf16.gmra.mrb[0].mxu0 %v2197
    %v2709 = vpop.f32.mrb[0].mxu0
    %v2710 = vadd.f32 %v2020, %v2709
    %v2711 = vpop.f32.mrb[0].mxu0
    %v2712 = vpop.f32.mrb[0].mxu0
    %v2713 = vadd.f32 %v2020, %v2712
    %v2714 = vpop.f32.mrb[0].mxu0
    %2715 = vmatprep.mubr.bf16.mxu0 0
    %2716 = vmatmul.mubr.bf16.gmra.mrb[0].mxu0 %v2200
    %v2717 = vpop.f32.mrb[0].mxu0
    %v2718 = vadd.f32 %v2020, %v2717
    %v2719 = vpop.f32.mrb[0].mxu0
    %v2720 = vpop.f32.mrb[0].mxu0
    %v2721 = vadd.f32 %v2020, %v2720
    %v2722 = vpop.f32.mrb[0].mxu0
    %2723 = vmatprep.mubr.bf16.mxu0 0
    %2724 = vmatmul.mubr.bf16.gmra.mrb[0].mxu0 %v2203
    %v2725 = vpop.f32.mrb[0].mxu0
    %v2726 = vadd.f32 %v2020, %v2725
    %v2727 = vpop.f32.mrb[0].mxu0
    %v2728 = vpop.f32.mrb[0].mxu0
    %v2729 = vadd.f32 %v2020, %v2728
    %v2730 = vpop.f32.mrb[0].mxu0
    %2731 = vmatprep.mubr.bf16.mxu0 0
    %2732 = vmatmul.mubr.bf16.gmra.mrb[0].mxu0 %v2206
    %v2733 = vpop.f32.mrb[0].mxu0
    %v2734 = vadd.f32 %v2020, %v2733
    %v2735 = vpop.f32.mrb[0].mxu0
    %v2736 = vpop.f32.mrb[0].mxu0
    %v2737 = vadd.f32 %v2020, %v2736
    %v2738 = vpop.f32.mrb[0].mxu0
    %2739 = vmatprep.mubr.bf16.mxu0 0
    %2740 = vmatmul.mubr.bf16.gmra.mrb[0].mxu0 %v2209
    %v2741 = vpop.f32.mrb[0].mxu0
    %v2742 = vadd.f32 %v2020, %v2741
    %v2743 = vpop.f32.mrb[0].mxu0
    %v2744 = vpop.f32.mrb[0].mxu0
    %v2745 = vadd.f32 %v2020, %v2744
    %v2746 = vpop.f32.mrb[0].mxu0
    %2747 = vmatprep.mubr.bf16.mxu0 0
    %2748 = vmatmul.mubr.bf16.gmra.mrb[0].mxu0 %v2212
    %v2749 = vpop.f32.mrb[0].mxu0
    %v2750 = vadd.f32 %v2020, %v2749
    %v2751 = vpop.f32.mrb[0].mxu0
    %v2752 = vpop.f32.mrb[0].mxu0
    %v2753 = vadd.f32 %v2020, %v2752
    %v2754 = vpop.f32.mrb[0].mxu0
    %2755 = vmatprep.mubr.bf16.mxu0 0
    %2756 = vmatmul.mubr.bf16.gmra.mrb[0].mxu0 %v2215
    %v2757 = vpop.f32.mrb[0].mxu0
    %v2758 = vadd.f32 %v2020, %v2757
    %v2759 = vpop.f32.mrb[0].mxu0
    %v2760 = vpop.f32.mrb[0].mxu0
    %v2761 = vadd.f32 %v2020, %v2760
    %v2762 = vpop.f32.mrb[0].mxu0
    %2763 = vmatprep.mubr.bf16.mxu0 0
    %2764 = vmatmul.mubr.bf16.gmra.mrb[0].mxu0 %v2218
    %v2765 = vpop.f32.mrb[0].mxu0
    %v2766 = vadd.f32 %v2020, %v2765
    %v2767 = vpop.f32.mrb[0].mxu0
    %v2768 = vpop.f32.mrb[0].mxu0
    %v2769 = vadd.f32 %v2020, %v2768
    %v2770 = vpop.f32.mrb[0].mxu0
    %2771 = vdwg.mxu0
    %v2772 = vmax.f32 %v2262, 0.0
    %v2773 = vmax.f32 %v2265, 0.0
    %v2774 = vmax.f32 %v2270, 0.0
    %v2775 = vmax.f32 %v2273, 0.0
    %v2776 = vmax.f32 %v2278, 0.0
    %v2777 = vmax.f32 %v2281, 0.0
    %v2778 = vmax.f32 %v2286, 0.0
    %v2779 = vmax.f32 %v2289, 0.0
    %v2780 = vmax.f32 %v2294, 0.0
    %v2781 = vmax.f32 %v2297, 0.0
    %v2782 = vmax.f32 %v2302, 0.0
    %v2783 = vmax.f32 %v2305, 0.0
    %v2784 = vmax.f32 %v2310, 0.0
    %v2785 = vmax.f32 %v2313, 0.0
    %v2786 = vmax.f32 %v2318, 0.0
    %v2787 = vmax.f32 %v2321, 0.0
    %v2788 = vmax.f32 %v2326, 0.0
    %v2789 = vmax.f32 %v2329, 0.0
    %v2790 = vmax.f32 %v2334, 0.0
    %v2791 = vmax.f32 %v2337, 0.0
    %v2792 = vmax.f32 %v2342, 0.0
    %v2793 = vmax.f32 %v2345, 0.0
    %v2794 = vmax.f32 %v2350, 0.0
    %v2795 = vmax.f32 %v2353, 0.0
    %v2796 = vmax.f32 %v2358, 0.0
    %v2797 = vmax.f32 %v2361, 0.0
    %v2798 = vmax.f32 %v2366, 0.0
    %v2799 = vmax.f32 %v2369, 0.0
    %v2800 = vmax.f32 %v2374, 0.0
    %v2801 = vmax.f32 %v2377, 0.0
    %v2802 = vmax.f32 %v2382, 0.0
    %v2803 = vmax.f32 %v2385, 0.0
    %v2804 = vmax.f32 %v2390, 0.0
    %v2805 = vmax.f32 %v2393, 0.0
    %v2806 = vmax.f32 %v2398, 0.0
    %v2807 = vmax.f32 %v2401, 0.0
    %v2808 = vmax.f32 %v2406, 0.0
    %v2809 = vmax.f32 %v2409, 0.0
    %v2810 = vmax.f32 %v2414, 0.0
    %v2811 = vmax.f32 %v2417, 0.0
    %v2812 = vmax.f32 %v2422, 0.0
    %v2813 = vmax.f32 %v2425, 0.0
    %v2814 = vmax.f32 %v2430, 0.0
    %v2815 = vmax.f32 %v2433, 0.0
    %v2816 = vmax.f32 %v2438, 0.0
    %v2817 = vmax.f32 %v2441, 0.0
    %v2818 = vmax.f32 %v2446, 0.0
    %v2819 = vmax.f32 %v2449, 0.0
    %v2820 = vmax.f32 %v2454, 0.0
    %v2821 = vmax.f32 %v2457, 0.0
    %v2822 = vmax.f32 %v2462, 0.0
    %v2823 = vmax.f32 %v2465, 0.0
    %v2824 = vmax.f32 %v2470, 0.0
    %v2825 = vmax.f32 %v2473, 0.0
    %v2826 = vmax.f32 %v2478, 0.0
    %v2827 = vmax.f32 %v2481, 0.0
    %v2828 = vmax.f32 %v2486, 0.0
    %v2829 = vmax.f32 %v2489, 0.0
    %v2830 = vmax.f32 %v2494, 0.0
    %v2831 = vmax.f32 %v2497, 0.0
    %v2832 = vmax.f32 %v2502, 0.0
    %v2833 = vmax.f32 %v2505, 0.0
    %v2834 = vmax.f32 %v2510, 0.0
    %v2835 = vmax.f32 %v2513, 0.0
    %v2836 = vmax.f32 %v2518, 0.0
    %v2837 = vmax.f32 %v2521, 0.0
    %v2838 = vmax.f32 %v2526, 0.0
    %v2839 = vmax.f32 %v2529, 0.0
    %v2840 = vmax.f32 %v2534, 0.0
    %v2841 = vmax.f32 %v2537, 0.0
    %v2842 = vmax.f32 %v2542, 0.0
    %v2843 = vmax.f32 %v2545, 0.0
    %v2844 = vmax.f32 %v2550, 0.0
    %v2845 = vmax.f32 %v2553, 0.0
    %v2846 = vmax.f32 %v2558, 0.0
    %v2847 = vmax.f32 %v2561, 0.0
    %v2848 = vmax.f32 %v2566, 0.0
    %v2849 = vmax.f32 %v2569, 0.0
    %v2850 = vmax.f32 %v2574, 0.0
    %v2851 = vmax.f32 %v2577, 0.0
    %v2852 = vmax.f32 %v2582, 0.0
    %v2853 = vmax.f32 %v2585, 0.0
    %v2854 = vmax.f32 %v2590, 0.0
    %v2855 = vmax.f32 %v2593, 0.0
    %v2856 = vmax.f32 %v2598, 0.0
    %v2857 = vmax.f32 %v2601, 0.0
    %v2858 = vmax.f32 %v2606, 0.0
    %v2859 = vmax.f32 %v2609, 0.0
    %v2860 = vmax.f32 %v2614, 0.0
    %v2861 = vmax.f32 %v2617, 0.0
    %v2862 = vmax.f32 %v2622, 0.0
    %v2863 = vmax.f32 %v2625, 0.0
    %v2864 = vmax.f32 %v2630, 0.0
    %v2865 = vmax.f32 %v2633, 0.0
    %v2866 = vmax.f32 %v2638, 0.0
    %v2867 = vmax.f32 %v2641, 0.0
    %v2868 = vmax.f32 %v2646, 0.0
    %v2869 = vmax.f32 %v2649, 0.0
    %v2870 = vmax.f32 %v2654, 0.0
    %v2871 = vmax.f32 %v2657, 0.0
    %v2872 = vmax.f32 %v2662, 0.0
    %v2873 = vmax.f32 %v2665, 0.0
    %v2874 = vmax.f32 %v2670, 0.0
    %v2875 = vmax.f32 %v2673, 0.0
    %v2876 = vmax.f32 %v2678, 0.0
    %v2877 = vmax.f32 %v2681, 0.0
    %v2878 = vmax.f32 %v2686, 0.0
    %v2879 = vmax.f32 %v2689, 0.0
    %v2880 = vmax.f32 %v2694, 0.0
    %v2881 = vmax.f32 %v2697, 0.0
    %v2882 = vmax.f32 %v2702, 0.0
    %v2883 = vmax.f32 %v2705, 0.0
    %v2884 = vmax.f32 %v2710, 0.0
    %v2885 = vmax.f32 %v2713, 0.0
    %v2886 = vmax.f32 %v2718, 0.0
    %v2887 = vmax.f32 %v2721, 0.0
    %v2888 = vmax.f32 %v2726, 0.0
    %v2889 = vmax.f32 %v2729, 0.0
    %v2890 = vmax.f32 %v2734, 0.0
    %v2891 = vmax.f32 %v2737, 0.0
    %v2892 = vmax.f32 %v2742, 0.0
    %v2893 = vmax.f32 %v2745, 0.0
    %v2894 = vmax.f32 %v2750, 0.0
    %v2895 = vmax.f32 %v2753, 0.0
    %v2896 = vmax.f32 %v2758, 0.0
    %v2897 = vmax.f32 %v2761, 0.0
    %v2898 = vmax.f32 %v2766, 0.0
    %v2899 = vmax.f32 %v2769, 0.0
    %v2900 = vpack.c.bf16 %v2773, %v2772
    %v2901 = vpack.c.bf16 %v2775, %v2774
    %v2902 = vpack.c.bf16 %v2777, %v2776
    %v2903 = vpack.c.bf16 %v2779, %v2778
    %v2904 = vpack.c.bf16 %v2781, %v2780
    %v2905 = vpack.c.bf16 %v2783, %v2782
    %v2906 = vpack.c.bf16 %v2785, %v2784
    %v2907 = vpack.c.bf16 %v2787, %v2786
    %v2908 = vpack.c.bf16 %v2789, %v2788
    %v2909 = vpack.c.bf16 %v2791, %v2790
    %v2910 = vpack.c.bf16 %v2793, %v2792
    %v2911 = vpack.c.bf16 %v2795, %v2794
    %v2912 = vpack.c.bf16 %v2797, %v2796
    %v2913 = vpack.c.bf16 %v2799, %v2798
    %v2914 = vpack.c.bf16 %v2801, %v2800
    %v2915 = vpack.c.bf16 %v2803, %v2802
    %v2916 = vpack.c.bf16 %v2805, %v2804
    %v2917 = vpack.c.bf16 %v2807, %v2806
    %v2918 = vpack.c.bf16 %v2809, %v2808
    %v2919 = vpack.c.bf16 %v2811, %v2810
    %v2920 = vpack.c.bf16 %v2813, %v2812
    %v2921 = vpack.c.bf16 %v2815, %v2814
    %v2922 = vpack.c.bf16 %v2817, %v2816
    %v2923 = vpack.c.bf16 %v2819, %v2818
    %v2924 = vpack.c.bf16 %v2821, %v2820
    %v2925 = vpack.c.bf16 %v2823, %v2822
    %v2926 = vpack.c.bf16 %v2825, %v2824
    %v2927 = vpack.c.bf16 %v2827, %v2826
    %v2928 = vpack.c.bf16 %v2829, %v2828
    %v2929 = vpack.c.bf16 %v2831, %v2830
    %v2930 = vpack.c.bf16 %v2833, %v2832
    %v2931 = vpack.c.bf16 %v2835, %v2834
    %v2932 = vpack.c.bf16 %v2837, %v2836
    %v2933 = vpack.c.bf16 %v2839, %v2838
    %v2934 = vpack.c.bf16 %v2841, %v2840
    %v2935 = vpack.c.bf16 %v2843, %v2842
    %v2936 = vpack.c.bf16 %v2845, %v2844
    %v2937 = vpack.c.bf16 %v2847, %v2846
    %v2938 = vpack.c.bf16 %v2849, %v2848
    %v2939 = vpack.c.bf16 %v2851, %v2850
    %v2940 = vpack.c.bf16 %v2853, %v2852
    %v2941 = vpack.c.bf16 %v2855, %v2854
    %v2942 = vpack.c.bf16 %v2857, %v2856
    %v2943 = vpack.c.bf16 %v2859, %v2858
    %v2944 = vpack.c.bf16 %v2861, %v2860
    %v2945 = vpack.c.bf16 %v2863, %v2862
    %v2946 = vpack.c.bf16 %v2865, %v2864
    %v2947 = vpack.c.bf16 %v2867, %v2866
    %v2948 = vpack.c.bf16 %v2869, %v2868
    %v2949 = vpack.c.bf16 %v2871, %v2870
    %v2950 = vpack.c.bf16 %v2873, %v2872
    %v2951 = vpack.c.bf16 %v2875, %v2874
    %v2952 = vpack.c.bf16 %v2877, %v2876
    %v2953 = vpack.c.bf16 %v2879, %v2878
    %v2954 = vpack.c.bf16 %v2881, %v2880
    %v2955 = vpack.c.bf16 %v2883, %v2882
    %v2956 = vpack.c.bf16 %v2885, %v2884
    %v2957 = vpack.c.bf16 %v2887, %v2886
    %v2958 = vpack.c.bf16 %v2889, %v2888
    %v2959 = vpack.c.bf16 %v2891, %v2890
    %v2960 = vpack.c.bf16 %v2893, %v2892
    %v2961 = vpack.c.bf16 %v2895, %v2894
    %v2962 = vpack.c.bf16 %v2897, %v2896
    %v2963 = vpack.c.bf16 %v2899, %v2898
    %v2964 = vld [vmem:[%s1] sm:$0xff]
    %v2965 = vld [vmem:[%s1 + $0x8] sm:$0xff]
    %v2966 = vld [vmem:[%s1 + $0x10] sm:$0xff]
    %v2967 = vld [vmem:[%s1 + $0x18] sm:$0xff]
    %v2968 = vld [vmem:[%s1 + $0x20] sm:$0xff]
    %v2969 = vld [vmem:[%s1 + $0x28] sm:$0xff]
    %v2970 = vld [vmem:[%s1 + $0x30] sm:$0xff]
    %v2971 = vld [vmem:[%s1 + $0x38] sm:$0xff]
    %v2972 = vld [vmem:[%s1 + $0x40] sm:$0xff]
    %v2973 = vld [vmem:[%s1 + $0x48] sm:$0xff]
    %v2974 = vld [vmem:[%s1 + $0x50] sm:$0xff]
    %v2975 = vld [vmem:[%s1 + $0x58] sm:$0xff]
    %v2976 = vld [vmem:[%s1 + $0x60] sm:$0xff]
    %v2977 = vld [vmem:[%s1 + $0x68] sm:$0xff]
    %v2978 = vld [vmem:[%s1 + $0x70] sm:$0xff]
    %v2979 = vld [vmem:[%s1 + $0x78] sm:$0xff]
    %v2980 = vld [vmem:[%s1 + $0x80] sm:$0xff]
    %v2981 = vld [vmem:[%s1 + $0x88] sm:$0xff]
    %v2982 = vld [vmem:[%s1 + $0x90] sm:$0xff]
    %v2983 = vld [vmem:[%s1 + $0x98] sm:$0xff]
    %v2984 = vld [vmem:[%s1 + $0xa0] sm:$0xff]
    %v2985 = vld [vmem:[%s1 + $0xa8] sm:$0xff]
    %v2986 = vld [vmem:[%s1 + $0xb0] sm:$0xff]
    %v2987 = vld [vmem:[%s1 + $0xb8] sm:$0xff]
    %v2988 = vld [vmem:[%s1 + $0xc0] sm:$0xff]
    %v2989 = vld [vmem:[%s1 + $0xc8] sm:$0xff]
    %v2990 = vld [vmem:[%s1 + $0xd0] sm:$0xff]
    %v2991 = vld [vmem:[%s1 + $0xd8] sm:$0xff]
    %v2992 = vld [vmem:[%s1 + $0xe0] sm:$0xff]
    %v2993 = vld [vmem:[%s1 + $0xe8] sm:$0xff]
    %v2994 = vld [vmem:[%s1 + $0xf0] sm:$0xff]
    %v2995 = vld [vmem:[%s1 + $0xf8] sm:$0xff]
    %v3028 = vunpack.c.l.b16 %v2964
    %v3029 = vunpack.c.h.b16 %v2964
    %v3030 = vunpack.c.l.b16 %v2965
    %v3031 = vunpack.c.h.b16 %v2965
    %v3032 = vunpack.c.l.b16 %v2966
    %v3033 = vunpack.c.h.b16 %v2966
    %v3034 = vunpack.c.l.b16 %v2967
    %v3035 = vunpack.c.h.b16 %v2967
    %v3036 = vunpack.c.l.b16 %v2968
    %v3037 = vunpack.c.h.b16 %v2968
    %v3038 = vunpack.c.l.b16 %v2969
    %v3039 = vunpack.c.h.b16 %v2969
    %v3040 = vunpack.c.l.b16 %v2970
    %v3041 = vunpack.c.h.b16 %v2970
    %v3042 = vunpack.c.l.b16 %v2971
    %v3043 = vunpack.c.h.b16 %v2971
    %v3044 = vunpack.c.l.b16 %v2972
    %v3045 = vunpack.c.h.b16 %v2972
    %v3046 = vunpack.c.l.b16 %v2973
    %v3047 = vunpack.c.h.b16 %v2973
    %v3048 = vunpack.c.l.b16 %v2974
    %v3049 = vunpack.c.h.b16 %v2974
    %v3050 = vunpack.c.l.b16 %v2975
    %v3051 = vunpack.c.h.b16 %v2975
    %v3052 = vunpack.c.l.b16 %v2976
    %v3053 = vunpack.c.h.b16 %v2976
    %v3054 = vunpack.c.l.b16 %v2977
    %v3055 = vunpack.c.h.b16 %v2977
    %v3056 = vunpack.c.l.b16 %v2978
    %v3057 = vunpack.c.h.b16 %v2978
    %v3058 = vunpack.c.l.b16 %v2979
    %v3059 = vunpack.c.h.b16 %v2979
    %v3060 = vunpack.c.l.b16 %v2980
    %v3061 = vunpack.c.h.b16 %v2980
    %v3062 = vunpack.c.l.b16 %v2981
    %v3063 = vunpack.c.h.b16 %v2981
    %v3064 = vunpack.c.l.b16 %v2982
    %v3065 = vunpack.c.h.b16 %v2982
    %v3066 = vunpack.c.l.b16 %v2983
    %v3067 = vunpack.c.h.b16 %v2983
    %v3068 = vunpack.c.l.b16 %v2984
    %v3069 = vunpack.c.h.b16 %v2984
    %v3070 = vunpack.c.l.b16 %v2985
    %v3071 = vunpack.c.h.b16 %v2985
    %v3072 = vunpack.c.l.b16 %v2986
    %v3073 = vunpack.c.h.b16 %v2986
    %v3074 = vunpack.c.l.b16 %v2987
    %v3075 = vunpack.c.h.b16 %v2987
    %v3076 = vunpack.c.l.b16 %v2988
    %v3077 = vunpack.c.h.b16 %v2988
    %v3078 = vunpack.c.l.b16 %v2989
    %v3079 = vunpack.c.h.b16 %v2989
    %v3080 = vunpack.c.l.b16 %v2990
    %v3081 = vunpack.c.h.b16 %v2990
    %v3082 = vunpack.c.l.b16 %v2991
    %v3083 = vunpack.c.h.b16 %v2991
    %v3084 = vunpack.c.l.b16 %v2992
    %v3085 = vunpack.c.h.b16 %v2992
    %v3086 = vunpack.c.l.b16 %v2993
    %v3087 = vunpack.c.h.b16 %v2993
    %v3088 = vunpack.c.l.b16 %v2994
    %v3089 = vunpack.c.h.b16 %v2994
    %v3090 = vunpack.c.l.b16 %v2995
    %v3091 = vunpack.c.h.b16 %v2995
    %v3092 = vpack.c.b16 %v3036, %v3028
    %v3093 = vpack.c.b16 %v3037, %v3029
    %v3094 = vpack.c.b16 %v3038, %v3030
    %v3095 = vpack.c.b16 %v3039, %v3031
    %v3096 = vpack.c.b16 %v3040, %v3032
    %v3097 = vpack.c.b16 %v3041, %v3033
    %v3098 = vpack.c.b16 %v3042, %v3034
    %v3099 = vpack.c.b16 %v3043, %v3035
    %v3100 = vpack.c.b16 %v3052, %v3044
    %v3101 = vpack.c.b16 %v3053, %v3045
    %v3102 = vpack.c.b16 %v3054, %v3046
    %v3103 = vpack.c.b16 %v3055, %v3047
    %v3104 = vpack.c.b16 %v3056, %v3048
    %v3105 = vpack.c.b16 %v3057, %v3049
    %v3106 = vpack.c.b16 %v3058, %v3050
    %v3107 = vpack.c.b16 %v3059, %v3051
    %v3108 = vpack.c.b16 %v3068, %v3060
    %v3109 = vpack.c.b16 %v3069, %v3061
    %v3110 = vpack.c.b16 %v3070, %v3062
    %v3111 = vpack.c.b16 %v3071, %v3063
    %v3112 = vpack.c.b16 %v3072, %v3064
    %v3113 = vpack.c.b16 %v3073, %v3065
    %v3114 = vpack.c.b16 %v3074, %v3066
    %v3115 = vpack.c.b16 %v3075, %v3067
    %v3116 = vpack.c.b16 %v3084, %v3076
    %v3117 = vpack.c.b16 %v3085, %v3077
    %v3118 = vpack.c.b16 %v3086, %v3078
    %v3119 = vpack.c.b16 %v3087, %v3079
    %v3120 = vpack.c.b16 %v3088, %v3080
    %v3121 = vpack.c.b16 %v3089, %v3081
    %v3122 = vpack.c.b16 %v3090, %v3082
    %v3123 = vpack.c.b16 %v3091, %v3083
    %3156 = vmatprep.subr.bf16.mxu0 0
    %3157 = vmatpush1.bf16.msra.mxu0 %v2900
    %3158 = vmatprep.subr.bf16.mxu0 0
    %3159 = vmatpush1.bf16.msra.mxu0 %v2901
    %3160 = vmatprep.subr.bf16.mxu0 0
    %3161 = vmatpush1.bf16.msra.mxu0 %v2902
    %3162 = vmatprep.subr.bf16.mxu0 0
    %3163 = vmatpush1.bf16.msra.mxu0 %v2903
    %3164 = vmatprep.subr.bf16.mxu0 0
    %3165 = vmatpush1.bf16.msra.mxu0 %v2904
    %3166 = vmatprep.subr.bf16.mxu0 0
    %3167 = vmatpush1.bf16.msra.mxu0 %v2905
    %3168 = vmatprep.subr.bf16.mxu0 0
    %3169 = vmatpush1.bf16.msra.mxu0 %v2906
    %3170 = vmatprep.subr.bf16.mxu0 0
    %3171 = vmatpush1.bf16.msra.mxu0 %v2907
    %3172 = vmatprep.subr.bf16.mxu0 0
    %3173 = vmatpush1.bf16.msra.mxu0 %v2908
    %3174 = vmatprep.subr.bf16.mxu0 0
    %3175 = vmatpush1.bf16.msra.mxu0 %v2909
    %3176 = vmatprep.subr.bf16.mxu0 0
    %3177 = vmatpush1.bf16.msra.mxu0 %v2910
    %3178 = vmatprep.subr.bf16.mxu0 0
    %3179 = vmatpush1.bf16.msra.mxu0 %v2911
    %3180 = vmatprep.subr.bf16.mxu0 0
    %3181 = vmatpush1.bf16.msra.mxu0 %v2912
    %3182 = vmatprep.subr.bf16.mxu0 0
    %3183 = vmatpush1.bf16.msra.mxu0 %v2913
    %3184 = vmatprep.subr.bf16.mxu0 0
    %3185 = vmatpush1.bf16.msra.mxu0 %v2914
    %3186 = vmatprep.subr.bf16.mxu0 0
    %3187 = vmatpush1.bf16.msra.mxu0 %v2915
    %3188 = vmatprep.mubr.bf16.mxu0 %v3093
    %3189 = vmatmul.mubr.bf16.gmra.mrb[0].mxu0 %v3092
    %v3190 = vpop.f32.mrb[0].mxu0
    %v3191 = vadd.f32 0.0, %v3190
    %v3192 = vpop.f32.mrb[0].mxu0
    %v3193 = vpop.f32.mrb[0].mxu0
    %v3194 = vadd.f32 0.0, %v3193
    %v3195 = vpop.f32.mrb[0].mxu0
    %3196 = vmatprep.mubr.bf16.mxu0 %v3101
    %3197 = vmatmul.mubr.bf16.gmra.mrb[0].mxu0 %v3100
    %v3198 = vpop.f32.mrb[0].mxu0
    %v3199 = vadd.f32 0.0, %v3198
    %v3200 = vpop.f32.mrb[0].mxu0
    %v3201 = vpop.f32.mrb[0].mxu0
    %v3202 = vadd.f32 0.0, %v3201
    %v3203 = vpop.f32.mrb[0].mxu0
    %3204 = vmatprep.mubr.bf16.mxu0 %v3109
    %3205 = vmatmul.mubr.bf16.gmra.mrb[0].mxu0 %v3108
    %v3206 = vpop.f32.mrb[0].mxu0
    %v3207 = vadd.f32 0.0, %v3206
    %v3208 = vpop.f32.mrb[0].mxu0
    %v3209 = vpop.f32.mrb[0].mxu0
    %v3210 = vadd.f32 0.0, %v3209
    %v3211 = vpop.f32.mrb[0].mxu0
    %3212 = vmatprep.mubr.bf16.mxu0 %v3117
    %3213 = vmatmul.mubr.bf16.gmra.mrb[0].mxu0 %v3116
    %v3214 = vpop.f32.mrb[0].mxu0
    %v3215 = vadd.f32 0.0, %v3214
    %v3216 = vpop.f32.mrb[0].mxu0
    %v3217 = vpop.f32.mrb[0].mxu0
    %v3218 = vadd.f32 0.0, %v3217
    %v3219 = vpop.f32.mrb[0].mxu0
    %3220 = vdwg.mxu0
    %3221 = vmatprep.subr.bf16.mxu0 0
    %3222 = vmatpush1.bf16.msra.mxu0 %v2916
    %3223 = vmatprep.subr.bf16.mxu0 0
    %3224 = vmatpush1.bf16.msra.mxu0 %v2917
    %3225 = vmatprep.subr.bf16.mxu0 0
    %3226 = vmatpush1.bf16.msra.mxu0 %v2918
    %3227 = vmatprep.subr.bf16.mxu0 0
    %3228 = vmatpush1.bf16.msra.mxu0 %v2919
    %3229 = vmatprep.subr.bf16.mxu0 0
    %3230 = vmatpush1.bf16.msra.mxu0 %v2920
    %3231 = vmatprep.subr.bf16.mxu0 0
    %3232 = vmatpush1.bf16.msra.mxu0 %v2921
    %3233 = vmatprep.subr.bf16.mxu0 0
    %3234 = vmatpush1.bf16.msra.mxu0 %v2922
    %3235 = vmatprep.subr.bf16.mxu0 0
    %3236 = vmatpush1.bf16.msra.mxu0 %v2923
    %3237 = vmatprep.subr.bf16.mxu0 0
    %3238 = vmatpush1.bf16.msra.mxu0 %v2924
    %3239 = vmatprep.subr.bf16.mxu0 0
    %3240 = vmatpush1.bf16.msra.mxu0 %v2925
    %3241 = vmatprep.subr.bf16.mxu0 0
    %3242 = vmatpush1.bf16.msra.mxu0 %v2926
    %3243 = vmatprep.subr.bf16.mxu0 0
    %3244 = vmatpush1.bf16.msra.mxu0 %v2927
    %3245 = vmatprep.subr.bf16.mxu0 0
    %3246 = vmatpush1.bf16.msra.mxu0 %v2928
    %3247 = vmatprep.subr.bf16.mxu0 0
    %3248 = vmatpush1.bf16.msra.mxu0 %v2929
    %3249 = vmatprep.subr.bf16.mxu0 0
    %3250 = vmatpush1.bf16.msra.mxu0 %v2930
    %3251 = vmatprep.subr.bf16.mxu0 0
    %3252 = vmatpush1.bf16.msra.mxu0 %v2931
    %3253 = vmatprep.mubr.bf16.mxu0 %v3095
    %3254 = vmatmul.mubr.bf16.gmra.mrb[0].mxu0 %v3094
    %v3255 = vpop.f32.mrb[0].mxu0
    %v3256 = vadd.f32 %v3191, %v3255
    %v3257 = vpop.f32.mrb[0].mxu0
    %v3258 = vpop.f32.mrb[0].mxu0
    %v3259 = vadd.f32 %v3194, %v3258
    %v3260 = vpop.f32.mrb[0].mxu0
    %3261 = vmatprep.mubr.bf16.mxu0 %v3103
    %3262 = vmatmul.mubr.bf16.gmra.mrb[0].mxu0 %v3102
    %v3263 = vpop.f32.mrb[0].mxu0
    %v3264 = vadd.f32 %v3199, %v3263
    %v3265 = vpop.f32.mrb[0].mxu0
    %v3266 = vpop.f32.mrb[0].mxu0
    %v3267 = vadd.f32 %v3202, %v3266
    %v3268 = vpop.f32.mrb[0].mxu0
    %3269 = vmatprep.mubr.bf16.mxu0 %v3111
    %3270 = vmatmul.mubr.bf16.gmra.mrb[0].mxu0 %v3110
    %v3271 = vpop.f32.mrb[0].mxu0
    %v3272 = vadd.f32 %v3207, %v3271
    %v3273 = vpop.f32.mrb[0].mxu0
    %v3274 = vpop.f32.mrb[0].mxu0
    %v3275 = vadd.f32 %v3210, %v3274
    %v3276 = vpop.f32.mrb[0].mxu0
    %3277 = vmatprep.mubr.bf16.mxu0 %v3119
    %3278 = vmatmul.mubr.bf16.gmra.mrb[0].mxu0 %v3118
    %v3279 = vpop.f32.mrb[0].mxu0
    %v3280 = vadd.f32 %v3215, %v3279
    %v3281 = vpop.f32.mrb[0].mxu0
    %v3282 = vpop.f32.mrb[0].mxu0
    %v3283 = vadd.f32 %v3218, %v3282
    %v3284 = vpop.f32.mrb[0].mxu0
    %3285 = vdwg.mxu0
    %3286 = vmatprep.subr.bf16.mxu0 0
    %3287 = vmatpush1.bf16.msra.mxu0 %v2932
    %3288 = vmatprep.subr.bf16.mxu0 0
    %3289 = vmatpush1.bf16.msra.mxu0 %v2933
    %3290 = vmatprep.subr.bf16.mxu0 0
    %3291 = vmatpush1.bf16.msra.mxu0 %v2934
    %3292 = vmatprep.subr.bf16.mxu0 0
    %3293 = vmatpush1.bf16.msra.mxu0 %v2935
    %3294 = vmatprep.subr.bf16.mxu0 0
    %3295 = vmatpush1.bf16.msra.mxu0 %v2936
    %3296 = vmatprep.subr.bf16.mxu0 0
    %3297 = vmatpush1.bf16.msra.mxu0 %v2937
    %3298 = vmatprep.subr.bf16.mxu0 0
    %3299 = vmatpush1.bf16.msra.mxu0 %v2938
    %3300 = vmatprep.subr.bf16.mxu0 0
    %3301 = vmatpush1.bf16.msra.mxu0 %v2939
    %3302 = vmatprep.subr.bf16.mxu0 0
    %3303 = vmatpush1.bf16.msra.mxu0 %v2940
    %3304 = vmatprep.subr.bf16.mxu0 0
    %3305 = vmatpush1.bf16.msra.mxu0 %v2941
    %3306 = vmatprep.subr.bf16.mxu0 0
    %3307 = vmatpush1.bf16.msra.mxu0 %v2942
    %3308 = vmatprep.subr.bf16.mxu0 0
    %3309 = vmatpush1.bf16.msra.mxu0 %v2943
    %3310 = vmatprep.subr.bf16.mxu0 0
    %3311 = vmatpush1.bf16.msra.mxu0 %v2944
    %3312 = vmatprep.subr.bf16.mxu0 0
    %3313 = vmatpush1.bf16.msra.mxu0 %v2945
    %3314 = vmatprep.subr.bf16.mxu0 0
    %3315 = vmatpush1.bf16.msra.mxu0 %v2946
    %3316 = vmatprep.subr.bf16.mxu0 0
    %3317 = vmatpush1.bf16.msra.mxu0 %v2947
    %3318 = vmatprep.mubr.bf16.mxu0 %v3097
    %3319 = vmatmul.mubr.bf16.gmra.mrb[0].mxu0 %v3096
    %v3320 = vpop.f32.mrb[0].mxu0
    %v3321 = vadd.f32 %v3256, %v3320
    %v3322 = vpop.f32.mrb[0].mxu0
    %v3323 = vpop.f32.mrb[0].mxu0
    %v3324 = vadd.f32 %v3259, %v3323
    %v3325 = vpop.f32.mrb[0].mxu0
    %3326 = vmatprep.mubr.bf16.mxu0 %v3105
    %3327 = vmatmul.mubr.bf16.gmra.mrb[0].mxu0 %v3104
    %v3328 = vpop.f32.mrb[0].mxu0
    %v3329 = vadd.f32 %v3264, %v3328
    %v3330 = vpop.f32.mrb[0].mxu0
    %v3331 = vpop.f32.mrb[0].mxu0
    %v3332 = vadd.f32 %v3267, %v3331
    %v3333 = vpop.f32.mrb[0].mxu0
    %3334 = vmatprep.mubr.bf16.mxu0 %v3113
    %3335 = vmatmul.mubr.bf16.gmra.mrb[0].mxu0 %v3112
    %v3336 = vpop.f32.mrb[0].mxu0
    %v3337 = vadd.f32 %v3272, %v3336
    %v3338 = vpop.f32.mrb[0].mxu0
    %v3339 = vpop.f32.mrb[0].mxu0
    %v3340 = vadd.f32 %v3275, %v3339
    %v3341 = vpop.f32.mrb[0].mxu0
    %3342 = vmatprep.mubr.bf16.mxu0 %v3121
    %3343 = vmatmul.mubr.bf16.gmra.mrb[0].mxu0 %v3120
    %v3344 = vpop.f32.mrb[0].mxu0
    %v3345 = vadd.f32 %v3280, %v3344
    %v3346 = vpop.f32.mrb[0].mxu0
    %v3347 = vpop.f32.mrb[0].mxu0
    %v3348 = vadd.f32 %v3283, %v3347
    %v3349 = vpop.f32.mrb[0].mxu0
    %3350 = vdwg.mxu0
    %3351 = vmatprep.subr.bf16.mxu0 0
    %3352 = vmatpush1.bf16.msra.mxu0 %v2948
    %3353 = vmatprep.subr.bf16.mxu0 0
    %3354 = vmatpush1.bf16.msra.mxu0 %v2949
    %3355 = vmatprep.subr.bf16.mxu0 0
    %3356 = vmatpush1.bf16.msra.mxu0 %v2950
    %3357 = vmatprep.subr.bf16.mxu0 0
    %3358 = vmatpush1.bf16.msra.mxu0 %v2951
    %3359 = vmatprep.subr.bf16.mxu0 0
    %3360 = vmatpush1.bf16.msra.mxu0 %v2952
    %3361 = vmatprep.subr.bf16.mxu0 0
    %3362 = vmatpush1.bf16.msra.mxu0 %v2953
    %3363 = vmatprep.subr.bf16.mxu0 0
    %3364 = vmatpush1.bf16.msra.mxu0 %v2954
    %3365 = vmatprep.subr.bf16.mxu0 0
    %3366 = vmatpush1.bf16.msra.mxu0 %v2955
    %3367 = vmatprep.subr.bf16.mxu0 0
    %3368 = vmatpush1.bf16.msra.mxu0 %v2956
    %3369 = vmatprep.subr.bf16.mxu0 0
    %3370 = vmatpush1.bf16.msra.mxu0 %v2957
    %3371 = vmatprep.subr.bf16.mxu0 0
    %3372 = vmatpush1.bf16.msra.mxu0 %v2958
    %3373 = vmatprep.subr.bf16.mxu0 0
    %3374 = vmatpush1.bf16.msra.mxu0 %v2959
    %3375 = vmatprep.subr.bf16.mxu0 0
    %3376 = vmatpush1.bf16.msra.mxu0 %v2960
    %3377 = vmatprep.subr.bf16.mxu0 0
    %3378 = vmatpush1.bf16.msra.mxu0 %v2961
    %3379 = vmatprep.subr.bf16.mxu0 0
    %3380 = vmatpush1.bf16.msra.mxu0 %v2962
    %3381 = vmatprep.subr.bf16.mxu0 0
    %3382 = vmatpush1.bf16.msra.mxu0 %v2963
    %3383 = vmatprep.mubr.bf16.mxu0 %v3099
    %3384 = vmatmul.mubr.bf16.gmra.mrb[0].mxu0 %v3098
    %v3385 = vpop.f32.mrb[0].mxu0
    %v3386 = vadd.f32 %v3321, %v3385
    %v3387 = vpop.f32.mrb[0].mxu0
    %v3388 = vpop.f32.mrb[0].mxu0
    %v3389 = vadd.f32 %v3324, %v3388
    %v3390 = vpop.f32.mrb[0].mxu0
    %3391 = vmatprep.mubr.bf16.mxu0 %v3107
    %3392 = vmatmul.mubr.bf16.gmra.mrb[0].mxu0 %v3106
    %v3393 = vpop.f32.mrb[0].mxu0
    %v3394 = vadd.f32 %v3329, %v3393
    %v3395 = vpop.f32.mrb[0].mxu0
    %v3396 = vpop.f32.mrb[0].mxu0
    %v3397 = vadd.f32 %v3332, %v3396
    %v3398 = vpop.f32.mrb[0].mxu0
    %3399 = vmatprep.mubr.bf16.mxu0 %v3115
    %3400 = vmatmul.mubr.bf16.gmra.mrb[0].mxu0 %v3114
    %v3401 = vpop.f32.mrb[0].mxu0
    %v3402 = vadd.f32 %v3337, %v3401
    %v3403 = vpop.f32.mrb[0].mxu0
    %v3404 = vpop.f32.mrb[0].mxu0
    %v3405 = vadd.f32 %v3340, %v3404
    %v3406 = vpop.f32.mrb[0].mxu0
    %3407 = vmatprep.mubr.bf16.mxu0 %v3123
    %3408 = vmatmul.mubr.bf16.gmra.mrb[0].mxu0 %v3122
    %v3409 = vpop.f32.mrb[0].mxu0
    %v3410 = vadd.f32 %v3345, %v3409
    %v3411 = vpop.f32.mrb[0].mxu0
    %v3412 = vpop.f32.mrb[0].mxu0
    %v3413 = vadd.f32 %v3348, %v3412
    %v3414 = vpop.f32.mrb[0].mxu0
    %3415 = vdwg.mxu0
    %v3416 = vpack.c.bf16 %v3389, %v3386
    %v3417 = vpack.c.bf16 %v3397, %v3394
    %v3418 = vpack.c.bf16 %v3405, %v3402
    %v3419 = vpack.c.bf16 %v3413, %v3410
    %v3420 = vld [vmem:[%s4] sm:$0xf]
    %v3421 = vld [vmem:[%s4 + $0x4] sm:$0xf]
    %v3422 = vld [vmem:[%s4 + $0x8] sm:$0xf]
    %v3423 = vld [vmem:[%s4 + $0xc] sm:$0xf]
    %v3424 = vld [vmem:[%s4 + $0x10] sm:$0xf]
    %v3425 = vld [vmem:[%s4 + $0x14] sm:$0xf]
    %v3426 = vld [vmem:[%s4 + $0x18] sm:$0xf]
    %v3427 = vld [vmem:[%s4 + $0x1c] sm:$0xf]
    %v3428 = vld [vmem:[%s4 + $0x20] sm:$0xf]
    %v3429 = vld [vmem:[%s4 + $0x24] sm:$0xf]
    %v3430 = vld [vmem:[%s4 + $0x28] sm:$0xf]
    %v3431 = vld [vmem:[%s4 + $0x2c] sm:$0xf]
    %v3432 = vld [vmem:[%s4 + $0x30] sm:$0xf]
    %v3433 = vld [vmem:[%s4 + $0x34] sm:$0xf]
    %v3434 = vld [vmem:[%s4 + $0x38] sm:$0xf]
    %v3435 = vld [vmem:[%s4 + $0x3c] sm:$0xf]
    %v3436 = vld [vmem:[%s5] sm:$0x1]
    %v3438 = vlaneseq
    %v3439 = vshrl.u32 %v3438, 7
    %v3440 = vsub.s32 0, %v3439
    %v3441 = vrot.slane %v3436, %v3440
    %v3459 = vunpack.c.l.b16 %v3420
    %v3460 = vunpack.c.l.b16 %v3421
    %v3461 = vunpack.c.l.b16 %v3422
    %v3462 = vunpack.c.l.b16 %v3423
    %v3463 = vunpack.c.l.b16 %v3424
    %v3464 = vunpack.c.l.b16 %v3425
    %v3465 = vunpack.c.l.b16 %v3426
    %v3466 = vunpack.c.l.b16 %v3427
    %v3467 = vunpack.c.l.b16 %v3428
    %v3468 = vunpack.c.l.b16 %v3429
    %v3469 = vunpack.c.l.b16 %v3430
    %v3470 = vunpack.c.l.b16 %v3431
    %v3471 = vunpack.c.l.b16 %v3432
    %v3472 = vunpack.c.l.b16 %v3433
    %v3473 = vunpack.c.l.b16 %v3434
    %v3474 = vunpack.c.l.b16 %v3435
    %v3475 = vpack.c.b16 %v3460, %v3459
    %v3476 = vpack.c.b16 %v3462, %v3461
    %v3477 = vpack.c.b16 %v3464, %v3463
    %v3478 = vpack.c.b16 %v3466, %v3465
    %v3479 = vpack.c.b16 %v3468, %v3467
    %v3480 = vpack.c.b16 %v3470, %v3469
    %v3481 = vpack.c.b16 %v3472, %v3471
    %v3482 = vpack.c.b16 %v3474, %v3473
    %3491 = vmatprep.subr.bf16.mxu0 0
    %3492 = vmatpush1.bf16.msra.mxu0 %v3475
    %3493 = vmatprep.subr.bf16.mxu0 0
    %3494 = vmatpush1.bf16.msra.mxu0 %v3476
    %3495 = vmatprep.subr.bf16.mxu0 0
    %3496 = vmatpush1.bf16.msra.mxu0 %v3477
    %3497 = vmatprep.subr.bf16.mxu0 0
    %3498 = vmatpush1.bf16.msra.mxu0 %v3478
    %3499 = vmatprep.subr.bf16.mxu0 0
    %3500 = vmatpush1.bf16.msra.mxu0 %v3479
    %3501 = vmatprep.subr.bf16.mxu0 0
    %3502 = vmatpush1.bf16.msra.mxu0 %v3480
    %3503 = vmatprep.subr.bf16.mxu0 0
    %3504 = vmatpush1.bf16.msra.mxu0 %v3481
    %3505 = vmatprep.subr.bf16.mxu0 0
    %3506 = vmatpush1.bf16.msra.mxu0 %v3482
    %3507 = vmatprep.subr.bf16.mxu0 0
    %3508 = vmatpush1.bf16.msra.mxu0 0
    %3509 = vmatprep.subr.bf16.mxu0 0
    %3510 = vmatpush1.bf16.msra.mxu0 0
    %3511 = vmatprep.subr.bf16.mxu0 0
    %3512 = vmatpush1.bf16.msra.mxu0 0
    %3513 = vmatprep.subr.bf16.mxu0 0
    %3514 = vmatpush1.bf16.msra.mxu0 0
    %3515 = vmatprep.subr.bf16.mxu0 0
    %3516 = vmatpush1.bf16.msra.mxu0 0
    %3517 = vmatprep.subr.bf16.mxu0 0
    %3518 = vmatpush1.bf16.msra.mxu0 0
    %3519 = vmatprep.subr.bf16.mxu0 0
    %3520 = vmatpush1.bf16.msra.mxu0 0
    %3521 = vmatprep.subr.bf16.mxu0 0
    %3522 = vmatpush1.bf16.msra.mxu0 0
    %3523 = vmatprep.mubr.bf16.mxu0 0
    %3524 = vmatmul.mubr.bf16.gmra.mrb[0].mxu0 %v3416
    %v3525 = vpop.f32.mrb[0].mxu0
    %v3526 = vadd.f32 %v3441, %v3525
    %v3527 = vpop.f32.mrb[0].mxu0
    %v3528 = vpop.f32.mrb[0].mxu0
    %v3529 = vadd.f32 %v3441, %v3528
    %v3530 = vpop.f32.mrb[0].mxu0
    %3531 = vmatprep.mubr.bf16.mxu0 0
    %3532 = vmatmul.mubr.bf16.gmra.mrb[0].mxu0 %v3417
    %v3533 = vpop.f32.mrb[0].mxu0
    %v3534 = vadd.f32 %v3441, %v3533
    %v3535 = vpop.f32.mrb[0].mxu0
    %v3536 = vpop.f32.mrb[0].mxu0
    %v3537 = vadd.f32 %v3441, %v3536
    %v3538 = vpop.f32.mrb[0].mxu0
    %3539 = vmatprep.mubr.bf16.mxu0 0
    %3540 = vmatmul.mubr.bf16.gmra.mrb[0].mxu0 %v3418
    %v3541 = vpop.f32.mrb[0].mxu0
    %v3542 = vadd.f32 %v3441, %v3541
    %v3543 = vpop.f32.mrb[0].mxu0
    %v3544 = vpop.f32.mrb[0].mxu0
    %v3545 = vadd.f32 %v3441, %v3544
    %v3546 = vpop.f32.mrb[0].mxu0
    %3547 = vmatprep.mubr.bf16.mxu0 0
    %3548 = vmatmul.mubr.bf16.gmra.mrb[0].mxu0 %v3419
    %v3549 = vpop.f32.mrb[0].mxu0
    %v3550 = vadd.f32 %v3441, %v3549
    %v3551 = vpop.f32.mrb[0].mxu0
    %v3552 = vpop.f32.mrb[0].mxu0
    %v3553 = vadd.f32 %v3441, %v3552
    %v3554 = vpop.f32.mrb[0].mxu0
    %3555 = vdwg.mxu0
    %v3556 = vmax.f32 %v3526, 0.0
    %v3557 = vmax.f32 %v3529, 0.0
    %v3558 = vmax.f32 %v3534, 0.0
    %v3559 = vmax.f32 %v3537, 0.0
    %v3560 = vmax.f32 %v3542, 0.0
    %v3561 = vmax.f32 %v3545, 0.0
    %v3562 = vmax.f32 %v3550, 0.0
    %v3563 = vmax.f32 %v3553, 0.0
    %3564 = vst [vmem:[#allocation2] sm:$0xff] %v3556
    %3565 = vst [vmem:[#allocation2 + $0x10] sm:$0xff] %v3557
    %3566 = vst [vmem:[#allocation2 + $0x20] sm:$0xff] %v3558
    %3567 = vst [vmem:[#allocation2 + $0x30] sm:$0xff] %v3559
    %3568 = vst [vmem:[#allocation2 + $0x40] sm:$0xff] %v3560
    %3569 = vst [vmem:[#allocation2 + $0x50] sm:$0xff] %v3561
    %3570 = vst [vmem:[#allocation2 + $0x60] sm:$0xff] %v3562
    %3571 = vst [vmem:[#allocation2 + $0x70] sm:$0xff] %v3563
    %3572 = vst [vmem:[#allocation2 + $0x8] sm:$0xff] 0.0
    %3573 = vst [vmem:[#allocation2 + $0x18] sm:$0xff] 0.0
    %3574 = vst [vmem:[#allocation2 + $0x28] sm:$0xff] 0.0
    %3575 = vst [vmem:[#allocation2 + $0x38] sm:$0xff] 0.0
    %3576 = vst [vmem:[#allocation2 + $0x48] sm:$0xff] 0.0
    %3577 = vst [vmem:[#allocation2 + $0x58] sm:$0xff] 0.0
    %3578 = vst [vmem:[#allocation2 + $0x68] sm:$0xff] 0.0
    %3579 = vst [vmem:[#allocation2 + $0x78] sm:$0xff] 0.0
    // Predicated region
    $region26: #{tpu_custom_call.1} parent=1 // pred_check
      _
    $region27: #{tpu_custom_call.1} parent=1 // pred_check_branch
      %3581 = sbr.rel (0) target = $region29
    $region28: #{tpu_custom_call.1} parent=1 // pred_region
      %s3583 = ssub.s32 2048, 2048
      %3584 = vsyncadd [#allocation3], %s3583
      %s3585 = sshll.u32 [#allocation2], 4
      %s3586 = int_to_ptr.vmem [resolvable:$true] %s3585
      %3591 = dma.vmem_to_hbm [thread:$0]  %s3586, 2048, %s6, [#allocation3], 256, 256, 16
    $region29: #{tpu_custom_call.1} parent=1 // pred_fallthru
      _
    // Predicated region
    $region30: #{tpu_custom_call.1} parent=1 // pred_check
      _
    $region31: #{tpu_custom_call.1} parent=1 // pred_check_branch
      %3593 = sbr.rel (0) target = $region33
    $region32: #{tpu_custom_call.1} parent=1 // pred_region
      %3594 = dma.done [#allocation3], 2048
    $region33: #{tpu_custom_call.1} parent=1 // pred_fallthru
      _
    %3595 = vsyncpa [#allocation3], 1

</llo_original>
